<compile_context>
chip_gen: v6e
topology: v6e:2x2x1
jax: 0.10.0
libtpu: 0.0.40
codegen_flags: <defaults>
</compile_context>

<pallas_src>
import jax
import jax.numpy as jnp
from jax.experimental import pallas as pl
from jax.experimental.pallas import tpu as pltpu

# ---------------- problem sizes (consistent with the module) -----------------
B = 2            # batch
S = 8            # seq_len (queries)
CK = 16          # context_len (keys/values)
CD = 32          # context_dim
D = 64           # dim
H = 8            # num_heads
HD = D // H      # head_dim
MLP = 4 * D      # mlp hidden (256)
EPS = 1e-5       # nn.LayerNorm default eps
NEG_INF = -1e30  # additive mask value for cross-batch attention
LOG2_S = 3       # S  == 2**3
LOG2_CK = 4      # CK == 2**4

# ---------------- theta slab layout -------------------------------------------
TH_COLS = H * D + D          # 576  (== MLP + MLP + D as well)
PROWS = 16                   # rows 0..15: packed 1-D params (11 used, rest zero)
R_NC_W, R_NC_B = 0, 1        # norm_context
R_N1_W, R_N1_B = 2, 3        # norm1
R_N2_W, R_N2_B = 4, 5        # norm2
R_BQ, R_BCK, R_BO, R_B1, R_B2 = 6, 7, 8, 9, 10
CW_R0 = PROWS                # rows 16..47  : [Wcvo | Wck]   (CD = 32 rows)
WS_R0 = PROWS + CD           # rows 48..111 : [W1 | W2^T | Wq] (D = 64 rows)
TH_ROWS = WS_R0 + D          # 112
OFF_WCK = H * D              # 512 (lane offset of Wck inside the context slab)
OFF_W2T = MLP                # 256
OFF_WQ = 2 * MLP             # 512


def _ln(x, w, b):
    """LayerNorm over the last axis; w, b are (1, F)."""
    mu = jnp.mean(x, axis=-1, keepdims=True)
    var = jnp.mean((x - mu) ** 2, axis=-1, keepdims=True)
    return (x - mu) * jax.lax.rsqrt(var + EPS) * w + b


def _erf_poly(x):
    """Abramowitz & Stegun 7.1.26 erf approximation, |abs err| < 1.5e-7 (VPU/EUP ops only)."""
    a1, a2, a3, a4, a5 = 0.254829592, -0.284496736, 1.421413741, -1.453152027, 1.061405429
    pc = 0.3275911
    ax = jnp.abs(x)
    t = 1.0 / (1.0 + pc * ax)
    poly = ((((a5 * t + a4) * t + a3) * t + a2) * t + a1) * t
    y = 1.0 - poly * jnp.exp(-ax * ax)
    return jnp.where(x >= 0, y, -y)


def _gelu_exact(x):
    """PyTorch nn.GELU() default (approximate='none')."""
    return 0.5 * x * (1.0 + _erf_poly(x * 0.7071067811865476))


def _block_kernel(x_ref, ctx_ref, th_ref, o_ref):
    x = x_ref[...]            # (B*S, D)   = (16, 64)
    ctx = ctx_ref[...]        # (B*CK, CD) = (32, 32)

    # ---- unpack the parameter slab (static, tile-aligned slices) -------------
    nc_w = th_ref[R_NC_W:R_NC_W + 1, :CD]
    nc_b = th_ref[R_NC_B:R_NC_B + 1, :CD]
    n1_w = th_ref[R_N1_W:R_N1_W + 1, :D]
    n1_b = th_ref[R_N1_B:R_N1_B + 1, :D]
    n2_w = th_ref[R_N2_W:R_N2_W + 1, :D]
    n2_b = th_ref[R_N2_B:R_N2_B + 1, :D]
    bq   = th_ref[R_BQ:R_BQ + 1, :D]        # already scaled by 1/sqrt(HD)
    bck  = th_ref[R_BCK:R_BCK + 1, :D]
    bo   = th_ref[R_BO:R_BO + 1, :D]        # out_proj bias + folded V-bias term
    b1   = th_ref[R_B1:R_B1 + 1, :MLP]
    b2   = th_ref[R_B2:R_B2 + 1, :D]

    cw  = th_ref[CW_R0:CW_R0 + CD, :]                    # (32, 576) = [Wcvo | Wck]
    w1  = th_ref[WS_R0:WS_R0 + D, :MLP]                  # (64, 256)
    w2t = th_ref[WS_R0:WS_R0 + D, OFF_W2T:OFF_W2T + MLP]  # (64, 256)  (W2 transposed)
    wq  = th_ref[WS_R0:WS_R0 + D, OFF_WQ:OFF_WQ + D]      # (64, 64)   (scale pre-folded)

    # ---- context branch: LN + fused (context_proj ∘ {V·Wo, K}) projection ----
    cn = _ln(ctx, nc_w, nc_b)                                                  # (32, 32)
    kvo = jnp.dot(cn, cw, preferred_element_type=jnp.float32)                  # (32, 576)
    k = kvo[:, OFF_WCK:OFF_WCK + D] + bck                                      # (32, 64)

    # ---- query branch (scale folded into wq/bq at pack time) -----------------
    q = jnp.dot(_ln(x, n1_w, n1_b), wq, preferred_element_type=jnp.float32) + bq   # (16, 64)

    # ---- static block-diagonal batch mask: query batch == key batch ----------
    ri = jax.lax.broadcasted_iota(jnp.int32, (B * S, B * CK), 0)
    ci = jax.lax.broadcasted_iota(jnp.int32, (B * S, B * CK), 1)
    amask = jnp.where((ri >> LOG2_S) == (ci >> LOG2_CK), 0.0, NEG_INF)         # (16, 32)

    # ---- per-head attention; Wo folded into the V path (kvo head slices) -----
    acc = jnp.zeros((B * S, D), jnp.float32)
    for h in range(H):
        sl = slice(h * HD, (h + 1) * HD)
        s = jax.lax.dot_general(q[:, sl], k[:, sl], (((1,), (1,)), ((), ())),
                                preferred_element_type=jnp.float32)            # (16, 32)
        s = s + amask
        s = s - jnp.max(s, axis=-1, keepdims=True)
        p = jnp.exp(s)
        r = pl.reciprocal(jnp.sum(p, axis=-1, keepdims=True), approx=True)     # (16, 1)
        voh = kvo[:, h * D:(h + 1) * D]                                        # (32, 64) = V_h @ Wo_h
        # deferred softmax normalization: scale the result, not the MXU input
        acc = acc + jnp.dot(p, voh, preferred_element_type=jnp.float32) * r    # (16, 64)

    x = x + acc + bo                                                           # residual 1

    # ---- MLP (w2 stored transposed -> lane-dense (64,256) tiles) -------------
    xm = _ln(x, n2_w, n2_b)
    h1 = _gelu_exact(jnp.dot(xm, w1, preferred_element_type=jnp.float32) + b1)  # (16, 256)
    h2 = jax.lax.dot_general(h1, w2t, (((1,), (1,)), ((), ())),
                             preferred_element_type=jnp.float32) + b2           # (16, 64)

    o_ref[...] = x + h2                                                         # residual 2


def cross_attention_block(x, context, theta):
    """x: (B, S, D) f32, context: (B, CK, CD) f32, theta: (112, 576) f32 -> (B, S, D)."""
    x2 = x.reshape(B * S, D)
    c2 = context.reshape(B * CK, CD)
    # Single grid step: at B*S=16 the kernel is fixed-overhead bound; per the review, the
    # real win is batching more tokens/layers per pallas_call (TODO at the call site) and
    # only then giving v7x's second TensorCore a "parallel" grid axis.
    out = pl.pallas_call(
        _block_kernel,
        out_shape=jax.ShapeDtypeStruct((B * S, D), jnp.float32),
        grid_spec=pltpu.PrefetchScalarGridSpec(
            num_scalar_prefetch=0,
            grid=(1,),
            in_specs=[
                pl.BlockSpec((B * S, D), lambda i: (0, 0)),
                pl.BlockSpec((B * CK, CD), lambda i: (0, 0)),
                pl.BlockSpec((TH_ROWS, TH_COLS), lambda i: (0, 0)),
            ],
            out_specs=pl.BlockSpec((B * S, D), lambda i: (0, 0)),
        ),
        compiler_params=pltpu.CompilerParams(
            dimension_semantics=("arbitrary",),
        ),
    )(x2, c2, theta)
    return out.reshape(B, S, D)


# ---------------- parameters --------------------------------------------------
def init_params(key):
    """Logical (PyTorch-layout, pre-transposed) parameters."""
    ks = jax.random.split(key, 16)
    f = jnp.float32
    nrm = lambda k, shp, sc: jax.random.normal(k, shp, f) * sc
    return dict(
        nc_w=jnp.ones((CD,), f), nc_b=jnp.zeros((CD,), f),            # norm_context
        cp_w=nrm(ks[0], (CD, D), 0.05), cp_b=nrm(ks[1], (D,), 0.02),  # context_proj
        n1_w=jnp.ones((D,), f), n1_b=jnp.zeros((D,), f),              # norm1
        wq=nrm(ks[2], (D, D), 0.05), bq=nrm(ks[3], (D,), 0.02),       # MHA q
        wk=nrm(ks[4], (D, D), 0.05), bk=nrm(ks[5], (D,), 0.02),       # MHA k
        wv=nrm(ks[6], (D, D), 0.05), bv=nrm(ks[7], (D,), 0.02),       # MHA v
        wo=nrm(ks[8], (D, D), 0.05), bo=nrm(ks[9], (D,), 0.02),       # MHA out_proj
        n2_w=jnp.ones((D,), f), n2_b=jnp.zeros((D,), f),              # norm2
        w1=nrm(ks[10], (D, MLP), 0.05), b1=nrm(ks[11], (MLP,), 0.02), # mlp fc1
        w2=nrm(ks[12], (MLP, D), 0.05), b2=nrm(ks[13], (D,), 0.02),   # mlp fc2
    )


def pack_params(p):
    """Pack-time algebra folds + single (112,576) f32 theta slab (one DMA descriptor)."""
    f = jnp.float32
    scale = 1.0 / (HD ** 0.5)

    wq_s = p["wq"] * scale                                   # (64, 64)  scale folded
    bq_s = p["bq"] * scale                                   # (64,)
    wck = p["cp_w"] @ p["wk"]                                # (32, 64)  context_proj ∘ K
    bck = p["cp_b"] @ p["wk"] + p["bk"]                      # (64,)
    wcv = p["cp_w"] @ p["wv"]                                # (32, 64)  context_proj ∘ V
    wcvo = jnp.concatenate(                                  # (32, 512) per-head (V ∘ Wo)
        [wcv[:, h * HD:(h + 1) * HD] @ p["wo"][h * HD:(h + 1) * HD, :] for h in range(H)],
        axis=1)
    # V-path bias passes through softmax (rows sum to 1) -> fold into out_proj bias.
    bo_f = p["bo"] + (p["cp_b"] @ p["wv"] + p["bv"]) @ p["wo"]   # (64,)

    pvec = jnp.zeros((PROWS, TH_COLS), f)

    def put(t, r, v):
        return t.at[r, :v.shape[0]].set(v.astype(f))

    pvec = put(pvec, R_NC_W, p["nc_w"]); pvec = put(pvec, R_NC_B, p["nc_b"])
    pvec = put(pvec, R_N1_W, p["n1_w"]); pvec = put(pvec, R_N1_B, p["n1_b"])
    pvec = put(pvec, R_N2_W, p["n2_w"]); pvec = put(pvec, R_N2_B, p["n2_b"])
    pvec = put(pvec, R_BQ, bq_s); pvec = put(pvec, R_BCK, bck); pvec = put(pvec, R_BO, bo_f)
    pvec = put(pvec, R_B1, p["b1"]); pvec = put(pvec, R_B2, p["b2"])

    cw = jnp.concatenate([wcvo, wck], axis=1)                        # (32, 576)
    ws = jnp.concatenate([p["w1"], p["w2"].T, wq_s], axis=1)         # (64, 576) w2 transposed
    theta = jnp.concatenate([pvec, cw, ws], axis=0)                  # (112, 576)
    return theta


# ---------------- pure-JAX reference (original math) for a correctness check --
def reference(x, context, p):
    def ln(t, w, b):
        mu = jnp.mean(t, axis=-1, keepdims=True)
        var = jnp.mean((t - mu) ** 2, axis=-1, keepdims=True)
        return (t - mu) / jnp.sqrt(var + EPS) * w + b

    ctx = ln(context, p["nc_w"], p["nc_b"]) @ p["cp_w"] + p["cp_b"]
    q = ln(x, p["n1_w"], p["n1_b"]) @ p["wq"] + p["bq"]
    k = ctx @ p["wk"] + p["bk"]
    v = ctx @ p["wv"] + p["bv"]
    qh = q.reshape(B, S, H, HD).transpose(0, 2, 1, 3) * (HD ** -0.5)
    kh = k.reshape(B, CK, H, HD).transpose(0, 2, 1, 3)
    vh = v.reshape(B, CK, H, HD).transpose(0, 2, 1, 3)
    s = jnp.einsum("bhqd,bhkd->bhqk", qh, kh)
    pr = jax.nn.softmax(s, axis=-1)
    o = jnp.einsum("bhqk,bhkd->bhqd", pr, vh).transpose(0, 2, 1, 3).reshape(B, S, D)
    x = x + (o @ p["wo"] + p["bo"])
    hm = ln(x, p["n2_w"], p["n2_b"]) @ p["w1"] + p["b1"]
    hm = 0.5 * hm * (1.0 + jax.lax.erf(hm * 0.7071067811865476))
    return x + (hm @ p["w2"] + p["b2"])


if __name__ == "__main__":
    key = jax.random.PRNGKey(0)
    kx, kc, kp = jax.random.split(key, 3)
    x = jax.random.normal(kx, (B, S, D), jnp.float32)
    context = jax.random.normal(kc, (B, CK, CD), jnp.float32)
    logical = init_params(kp)
    theta = pack_params(logical)

    out = jax.block_until_ready(cross_attention_block(x, context, theta))
    ref = jax.block_until_ready(reference(x, context, logical))

    assert out.shape == (B, S, D)
    max_err = float(jnp.max(jnp.abs(out - ref)))
    # 1e-3 tolerance: approx-EUP reciprocal, pack-time algebra folds and the erf polynomial
    # each perturb f32 rounding slightly (expected combined error ~1e-5).
    assert jnp.allclose(out, ref, rtol=1e-3, atol=1e-3), max_err
    print("KERNEL_OK")
</pallas_src>

<mosaic_0001>
module attributes {stable_mosaic.version = 11 : i64} {
  func.func @_block_kernel(%arg0: i32, %arg1: memref<16x64xf32, #tpu.memory_space<vmem>>, %arg2: memref<32x32xf32, #tpu.memory_space<vmem>>, %arg3: memref<112x576xf32, #tpu.memory_space<vmem>>, %arg4: memref<16x64xf32, #tpu.memory_space<vmem>>) attributes {dimension_semantics = [#tpu.dimension_semantics<arbitrary>], iteration_bounds = array<i64: 1>, scalar_prefetch = 0 : i64, scratch_operands = 0 : i64, tpu.core_type = #tpu.core_type<tc>, window_params = [{pipeline_mode = #tpu.pipeline_mode<synchronous>, transform_indices = @transform_0, window_bounds = array<i64: 16, 64>}, {pipeline_mode = #tpu.pipeline_mode<synchronous>, transform_indices = @transform_1, window_bounds = array<i64: 32, 32>}, {pipeline_mode = #tpu.pipeline_mode<synchronous>, transform_indices = @transform_2, window_bounds = array<i64: 112, 576>}, {pipeline_mode = #tpu.pipeline_mode<synchronous>, transform_indices = @transform_3, window_bounds = array<i64: 16, 64>}]} {
    %c0 = arith.constant 0 : index
    %c0_0 = arith.constant 0 : index
    %0 = vector.load %arg1[%c0, %c0_0] : memref<16x64xf32, #tpu.memory_space<vmem>>, vector<16x64xf32>
    %c0_1 = arith.constant 0 : index
    %c0_2 = arith.constant 0 : index
    %1 = vector.load %arg2[%c0_1, %c0_2] : memref<32x32xf32, #tpu.memory_space<vmem>>, vector<32x32xf32>
    %c0_3 = arith.constant 0 : index
    %c0_4 = arith.constant 0 : index
    %2 = vector.load %arg3[%c0_3, %c0_4] : memref<112x576xf32, #tpu.memory_space<vmem>>, vector<1x32xf32>
    %c1 = arith.constant 1 : index
    %c0_5 = arith.constant 0 : index
    %3 = vector.load %arg3[%c1, %c0_5] : memref<112x576xf32, #tpu.memory_space<vmem>>, vector<1x32xf32>
    %c2 = arith.constant 2 : index
    %c0_6 = arith.constant 0 : index
    %4 = vector.load %arg3[%c2, %c0_6] : memref<112x576xf32, #tpu.memory_space<vmem>>, vector<1x64xf32>
    %c3 = arith.constant 3 : index
    %c0_7 = arith.constant 0 : index
    %5 = vector.load %arg3[%c3, %c0_7] : memref<112x576xf32, #tpu.memory_space<vmem>>, vector<1x64xf32>
    %c4 = arith.constant 4 : index
    %c0_8 = arith.constant 0 : index
    %6 = vector.load %arg3[%c4, %c0_8] : memref<112x576xf32, #tpu.memory_space<vmem>>, vector<1x64xf32>
    %c5 = arith.constant 5 : index
    %c0_9 = arith.constant 0 : index
    %7 = vector.load %arg3[%c5, %c0_9] : memref<112x576xf32, #tpu.memory_space<vmem>>, vector<1x64xf32>
    %c6 = arith.constant 6 : index
    %c0_10 = arith.constant 0 : index
    %8 = vector.load %arg3[%c6, %c0_10] : memref<112x576xf32, #tpu.memory_space<vmem>>, vector<1x64xf32>
    %c7 = arith.constant 7 : index
    %c0_11 = arith.constant 0 : index
    %9 = vector.load %arg3[%c7, %c0_11] : memref<112x576xf32, #tpu.memory_space<vmem>>, vector<1x64xf32>
    %c8 = arith.constant 8 : index
    %c0_12 = arith.constant 0 : index
    %10 = vector.load %arg3[%c8, %c0_12] : memref<112x576xf32, #tpu.memory_space<vmem>>, vector<1x64xf32>
    %c9 = arith.constant 9 : index
    %c0_13 = arith.constant 0 : index
    %11 = vector.load %arg3[%c9, %c0_13] : memref<112x576xf32, #tpu.memory_space<vmem>>, vector<1x256xf32>
    %c10 = arith.constant 10 : index
    %c0_14 = arith.constant 0 : index
    %12 = vector.load %arg3[%c10, %c0_14] : memref<112x576xf32, #tpu.memory_space<vmem>>, vector<1x64xf32>
    %c16 = arith.constant 16 : index
    %c0_15 = arith.constant 0 : index
    %13 = vector.load %arg3[%c16, %c0_15] : memref<112x576xf32, #tpu.memory_space<vmem>>, vector<32x576xf32>
    %c48 = arith.constant 48 : index
    %c0_16 = arith.constant 0 : index
    %14 = vector.load %arg3[%c48, %c0_16] : memref<112x576xf32, #tpu.memory_space<vmem>>, vector<64x256xf32>
    %c48_17 = arith.constant 48 : index
    %c256 = arith.constant 256 : index
    %15 = vector.load %arg3[%c48_17, %c256] : memref<112x576xf32, #tpu.memory_space<vmem>>, vector<64x256xf32>
    %c48_18 = arith.constant 48 : index
    %c512 = arith.constant 512 : index
    %16 = vector.load %arg3[%c48_18, %c512] : memref<112x576xf32, #tpu.memory_space<vmem>>, vector<64x64xf32>
    %cst = arith.constant dense<0.000000e+00> : vector<32xf32>
    %17 = vector.multi_reduction <add>, %1, %cst [1] : vector<32x32xf32> to vector<32xf32>
    %18 = vector.shape_cast %17 : vector<32xf32> to vector<32x1xf32>
    %cst_19 = arith.constant 3.200000e+01 : f32
    %19 = vector.broadcast %cst_19 : f32 to vector<32x1xf32>
    %20 = arith.divf %18, %19 : vector<32x1xf32>
    %21 = vector.broadcast %20 : vector<32x1xf32> to vector<32x32xf32>
    %22 = arith.subf %1, %21 : vector<32x32xf32>
    %23 = arith.mulf %22, %22 : vector<32x32xf32>
    %cst_20 = arith.constant dense<0.000000e+00> : vector<32xf32>
    %24 = vector.multi_reduction <add>, %23, %cst_20 [1] : vector<32x32xf32> to vector<32xf32>
    %25 = vector.shape_cast %24 : vector<32xf32> to vector<32x1xf32>
    %cst_21 = arith.constant 3.200000e+01 : f32
    %26 = vector.broadcast %cst_21 : f32 to vector<32x1xf32>
    %27 = arith.divf %25, %26 : vector<32x1xf32>
    %28 = vector.broadcast %20 : vector<32x1xf32> to vector<32x32xf32>
    %29 = arith.subf %1, %28 : vector<32x32xf32>
    %cst_22 = arith.constant 9.99999974E-6 : f32
    %30 = vector.broadcast %cst_22 : f32 to vector<32x1xf32>
    %31 = arith.addf %27, %30 : vector<32x1xf32>
    %32 = math.rsqrt %31 : vector<32x1xf32>
    %33 = vector.broadcast %32 : vector<32x1xf32> to vector<32x32xf32>
    %34 = arith.mulf %29, %33 : vector<32x32xf32>
    %35 = vector.broadcast %2 : vector<1x32xf32> to vector<32x32xf32>
    %36 = arith.mulf %34, %35 : vector<32x32xf32>
    %37 = vector.broadcast %3 : vector<1x32xf32> to vector<32x32xf32>
    %38 = arith.addf %36, %37 : vector<32x32xf32>
    %cst_23 = arith.constant dense<0.000000e+00> : vector<32x576xf32>
    %39 = tpu.matmul %38, %13, %cst_23 {dimension_numbers = #tpu.dot_dimension_numbers<[1], [0], [0], [1], [0, 0, 1, 1], [], []>} : vector<32x32xf32>, vector<32x576xf32>, vector<32x576xf32> -> vector<32x576xf32>
    %40 = vector.extract_strided_slice %39 {offsets = [0, 512], sizes = [32, 64], strides = [1, 1]} : vector<32x576xf32> to vector<32x64xf32>
    %41 = vector.broadcast %9 : vector<1x64xf32> to vector<32x64xf32>
    %42 = arith.addf %40, %41 : vector<32x64xf32>
    %cst_24 = arith.constant dense<0.000000e+00> : vector<16xf32>
    %43 = vector.multi_reduction <add>, %0, %cst_24 [1] : vector<16x64xf32> to vector<16xf32>
    %44 = vector.shape_cast %43 : vector<16xf32> to vector<16x1xf32>
    %cst_25 = arith.constant 6.400000e+01 : f32
    %45 = vector.broadcast %cst_25 : f32 to vector<16x1xf32>
    %46 = arith.divf %44, %45 : vector<16x1xf32>
    %47 = vector.broadcast %46 : vector<16x1xf32> to vector<16x64xf32>
    %48 = arith.subf %0, %47 : vector<16x64xf32>
    %49 = arith.mulf %48, %48 : vector<16x64xf32>
    %cst_26 = arith.constant dense<0.000000e+00> : vector<16xf32>
    %50 = vector.multi_reduction <add>, %49, %cst_26 [1] : vector<16x64xf32> to vector<16xf32>
    %51 = vector.shape_cast %50 : vector<16xf32> to vector<16x1xf32>
    %cst_27 = arith.constant 6.400000e+01 : f32
    %52 = vector.broadcast %cst_27 : f32 to vector<16x1xf32>
    %53 = arith.divf %51, %52 : vector<16x1xf32>
    %54 = vector.broadcast %46 : vector<16x1xf32> to vector<16x64xf32>
    %55 = arith.subf %0, %54 : vector<16x64xf32>
    %cst_28 = arith.constant 9.99999974E-6 : f32
    %56 = vector.broadcast %cst_28 : f32 to vector<16x1xf32>
    %57 = arith.addf %53, %56 : vector<16x1xf32>
    %58 = math.rsqrt %57 : vector<16x1xf32>
    %59 = vector.broadcast %58 : vector<16x1xf32> to vector<16x64xf32>
    %60 = arith.mulf %55, %59 : vector<16x64xf32>
    %61 = vector.broadcast %4 : vector<1x64xf32> to vector<16x64xf32>
    %62 = arith.mulf %60, %61 : vector<16x64xf32>
    %63 = vector.broadcast %5 : vector<1x64xf32> to vector<16x64xf32>
    %64 = arith.addf %62, %63 : vector<16x64xf32>
    %cst_29 = arith.constant dense<0.000000e+00> : vector<16x64xf32>
    %65 = tpu.matmul %64, %16, %cst_29 {dimension_numbers = #tpu.dot_dimension_numbers<[1], [0], [0], [1], [0, 0, 1, 1], [], []>} : vector<16x64xf32>, vector<64x64xf32>, vector<16x64xf32> -> vector<16x64xf32>
    %66 = vector.broadcast %8 : vector<1x64xf32> to vector<16x64xf32>
    %67 = arith.addf %65, %66 : vector<16x64xf32>
    %68 = tpu.iota {dimensions = array<i32: 0>} : vector<16x32xi32>
    %69 = tpu.iota {dimensions = array<i32: 1>} : vector<16x32xi32>
    %c3_i32 = arith.constant 3 : i32
    %70 = vector.broadcast %c3_i32 : i32 to vector<16x32xi32>
    %71 = arith.shrsi %68, %70 : vector<16x32xi32>
    %c4_i32 = arith.constant 4 : i32
    %72 = vector.broadcast %c4_i32 : i32 to vector<16x32xi32>
    %73 = arith.shrsi %69, %72 : vector<16x32xi32>
    %74 = arith.cmpi eq, %71, %73 : vector<16x32xi32>
    %cst_30 = arith.constant 0.000000e+00 : f32
    %cst_31 = arith.constant -1.000000e+30 : f32
    %75 = vector.broadcast %cst_30 : f32 to vector<16x32xf32>
    %76 = vector.broadcast %cst_31 : f32 to vector<16x32xf32>
    %77 = arith.select %74, %75, %76 : vector<16x32xi1>, vector<16x32xf32>
    %cst_32 = arith.constant 0.000000e+00 : f32
    %78 = vector.broadcast %cst_32 : f32 to vector<16x64xf32>
    %79 = vector.extract_strided_slice %67 {offsets = [0, 0], sizes = [16, 8], strides = [1, 1]} : vector<16x64xf32> to vector<16x8xf32>
    %80 = vector.extract_strided_slice %42 {offsets = [0, 0], sizes = [32, 8], strides = [1, 1]} : vector<32x64xf32> to vector<32x8xf32>
    %cst_33 = arith.constant dense<0.000000e+00> : vector<16x32xf32>
    %81 = tpu.matmul %79, %80, %cst_33 {dimension_numbers = #tpu.dot_dimension_numbers<[1], [1], [0], [0], [0, 0, 1, 0], [], []>} : vector<16x8xf32>, vector<32x8xf32>, vector<16x32xf32> -> vector<16x32xf32>
    %82 = arith.addf %81, %77 : vector<16x32xf32>
    %cst_34 = arith.constant dense<0xFF800000> : vector<16xf32>
    %83 = vector.multi_reduction <maximumf>, %82, %cst_34 [1] : vector<16x32xf32> to vector<16xf32>
    %84 = vector.shape_cast %83 : vector<16xf32> to vector<16x1xf32>
    %85 = vector.broadcast %84 : vector<16x1xf32> to vector<16x32xf32>
    %86 = arith.subf %82, %85 : vector<16x32xf32>
    %87 = math.exp %86 : vector<16x32xf32>
    %cst_35 = arith.constant dense<0.000000e+00> : vector<16xf32>
    %88 = vector.multi_reduction <add>, %87, %cst_35 [1] : vector<16x32xf32> to vector<16xf32>
    %89 = vector.shape_cast %88 : vector<16xf32> to vector<16x1xf32>
    %90 = tpu.reciprocal %89 {approx = true} : vector<16x1xf32> -> vector<16x1xf32>
    %91 = vector.extract_strided_slice %39 {offsets = [0, 0], sizes = [32, 64], strides = [1, 1]} : vector<32x576xf32> to vector<32x64xf32>
    %cst_36 = arith.constant dense<0.000000e+00> : vector<16x64xf32>
    %92 = tpu.matmul %87, %91, %cst_36 {dimension_numbers = #tpu.dot_dimension_numbers<[1], [0], [0], [1], [0, 0, 1, 1], [], []>} : vector<16x32xf32>, vector<32x64xf32>, vector<16x64xf32> -> vector<16x64xf32>
    %93 = vector.broadcast %90 : vector<16x1xf32> to vector<16x64xf32>
    %94 = arith.mulf %92, %93 : vector<16x64xf32>
    %95 = arith.addf %78, %94 : vector<16x64xf32>
    %96 = vector.extract_strided_slice %67 {offsets = [0, 8], sizes = [16, 8], strides = [1, 1]} : vector<16x64xf32> to vector<16x8xf32>
    %97 = vector.extract_strided_slice %42 {offsets = [0, 8], sizes = [32, 8], strides = [1, 1]} : vector<32x64xf32> to vector<32x8xf32>
    %cst_37 = arith.constant dense<0.000000e+00> : vector<16x32xf32>
    %98 = tpu.matmul %96, %97, %cst_37 {dimension_numbers = #tpu.dot_dimension_numbers<[1], [1], [0], [0], [0, 0, 1, 0], [], []>} : vector<16x8xf32>, vector<32x8xf32>, vector<16x32xf32> -> vector<16x32xf32>
    %99 = arith.addf %98, %77 : vector<16x32xf32>
    %cst_38 = arith.constant dense<0xFF800000> : vector<16xf32>
    %100 = vector.multi_reduction <maximumf>, %99, %cst_38 [1] : vector<16x32xf32> to vector<16xf32>
    %101 = vector.shape_cast %100 : vector<16xf32> to vector<16x1xf32>
    %102 = vector.broadcast %101 : vector<16x1xf32> to vector<16x32xf32>
    %103 = arith.subf %99, %102 : vector<16x32xf32>
    %104 = math.exp %103 : vector<16x32xf32>
    %cst_39 = arith.constant dense<0.000000e+00> : vector<16xf32>
    %105 = vector.multi_reduction <add>, %104, %cst_39 [1] : vector<16x32xf32> to vector<16xf32>
    %106 = vector.shape_cast %105 : vector<16xf32> to vector<16x1xf32>
    %107 = tpu.reciprocal %106 {approx = true} : vector<16x1xf32> -> vector<16x1xf32>
    %108 = vector.extract_strided_slice %39 {offsets = [0, 64], sizes = [32, 64], strides = [1, 1]} : vector<32x576xf32> to vector<32x64xf32>
    %cst_40 = arith.constant dense<0.000000e+00> : vector<16x64xf32>
    %109 = tpu.matmul %104, %108, %cst_40 {dimension_numbers = #tpu.dot_dimension_numbers<[1], [0], [0], [1], [0, 0, 1, 1], [], []>} : vector<16x32xf32>, vector<32x64xf32>, vector<16x64xf32> -> vector<16x64xf32>
    %110 = vector.broadcast %107 : vector<16x1xf32> to vector<16x64xf32>
    %111 = arith.mulf %109, %110 : vector<16x64xf32>
    %112 = arith.addf %95, %111 : vector<16x64xf32>
    %113 = vector.extract_strided_slice %67 {offsets = [0, 16], sizes = [16, 8], strides = [1, 1]} : vector<16x64xf32> to vector<16x8xf32>
    %114 = vector.extract_strided_slice %42 {offsets = [0, 16], sizes = [32, 8], strides = [1, 1]} : vector<32x64xf32> to vector<32x8xf32>
    %cst_41 = arith.constant dense<0.000000e+00> : vector<16x32xf32>
    %115 = tpu.matmul %113, %114, %cst_41 {dimension_numbers = #tpu.dot_dimension_numbers<[1], [1], [0], [0], [0, 0, 1, 0], [], []>} : vector<16x8xf32>, vector<32x8xf32>, vector<16x32xf32> -> vector<16x32xf32>
    %116 = arith.addf %115, %77 : vector<16x32xf32>
    %cst_42 = arith.constant dense<0xFF800000> : vector<16xf32>
    %117 = vector.multi_reduction <maximumf>, %116, %cst_42 [1] : vector<16x32xf32> to vector<16xf32>
    %118 = vector.shape_cast %117 : vector<16xf32> to vector<16x1xf32>
    %119 = vector.broadcast %118 : vector<16x1xf32> to vector<16x32xf32>
    %120 = arith.subf %116, %119 : vector<16x32xf32>
    %121 = math.exp %120 : vector<16x32xf32>
    %cst_43 = arith.constant dense<0.000000e+00> : vector<16xf32>
    %122 = vector.multi_reduction <add>, %121, %cst_43 [1] : vector<16x32xf32> to vector<16xf32>
    %123 = vector.shape_cast %122 : vector<16xf32> to vector<16x1xf32>
    %124 = tpu.reciprocal %123 {approx = true} : vector<16x1xf32> -> vector<16x1xf32>
    %125 = vector.extract_strided_slice %39 {offsets = [0, 128], sizes = [32, 64], strides = [1, 1]} : vector<32x576xf32> to vector<32x64xf32>
    %cst_44 = arith.constant dense<0.000000e+00> : vector<16x64xf32>
    %126 = tpu.matmul %121, %125, %cst_44 {dimension_numbers = #tpu.dot_dimension_numbers<[1], [0], [0], [1], [0, 0, 1, 1], [], []>} : vector<16x32xf32>, vector<32x64xf32>, vector<16x64xf32> -> vector<16x64xf32>
    %127 = vector.broadcast %124 : vector<16x1xf32> to vector<16x64xf32>
    %128 = arith.mulf %126, %127 : vector<16x64xf32>
    %129 = arith.addf %112, %128 : vector<16x64xf32>
    %130 = vector.extract_strided_slice %67 {offsets = [0, 24], sizes = [16, 8], strides = [1, 1]} : vector<16x64xf32> to vector<16x8xf32>
    %131 = vector.extract_strided_slice %42 {offsets = [0, 24], sizes = [32, 8], strides = [1, 1]} : vector<32x64xf32> to vector<32x8xf32>
    %cst_45 = arith.constant dense<0.000000e+00> : vector<16x32xf32>
    %132 = tpu.matmul %130, %131, %cst_45 {dimension_numbers = #tpu.dot_dimension_numbers<[1], [1], [0], [0], [0, 0, 1, 0], [], []>} : vector<16x8xf32>, vector<32x8xf32>, vector<16x32xf32> -> vector<16x32xf32>
    %133 = arith.addf %132, %77 : vector<16x32xf32>
    %cst_46 = arith.constant dense<0xFF800000> : vector<16xf32>
    %134 = vector.multi_reduction <maximumf>, %133, %cst_46 [1] : vector<16x32xf32> to vector<16xf32>
    %135 = vector.shape_cast %134 : vector<16xf32> to vector<16x1xf32>
    %136 = vector.broadcast %135 : vector<16x1xf32> to vector<16x32xf32>
    %137 = arith.subf %133, %136 : vector<16x32xf32>
    %138 = math.exp %137 : vector<16x32xf32>
    %cst_47 = arith.constant dense<0.000000e+00> : vector<16xf32>
    %139 = vector.multi_reduction <add>, %138, %cst_47 [1] : vector<16x32xf32> to vector<16xf32>
    %140 = vector.shape_cast %139 : vector<16xf32> to vector<16x1xf32>
    %141 = tpu.reciprocal %140 {approx = true} : vector<16x1xf32> -> vector<16x1xf32>
    %142 = vector.extract_strided_slice %39 {offsets = [0, 192], sizes = [32, 64], strides = [1, 1]} : vector<32x576xf32> to vector<32x64xf32>
    %cst_48 = arith.constant dense<0.000000e+00> : vector<16x64xf32>
    %143 = tpu.matmul %138, %142, %cst_48 {dimension_numbers = #tpu.dot_dimension_numbers<[1], [0], [0], [1], [0, 0, 1, 1], [], []>} : vector<16x32xf32>, vector<32x64xf32>, vector<16x64xf32> -> vector<16x64xf32>
    %144 = vector.broadcast %141 : vector<16x1xf32> to vector<16x64xf32>
    %145 = arith.mulf %143, %144 : vector<16x64xf32>
    %146 = arith.addf %129, %145 : vector<16x64xf32>
    %147 = vector.extract_strided_slice %67 {offsets = [0, 32], sizes = [16, 8], strides = [1, 1]} : vector<16x64xf32> to vector<16x8xf32>
    %148 = vector.extract_strided_slice %42 {offsets = [0, 32], sizes = [32, 8], strides = [1, 1]} : vector<32x64xf32> to vector<32x8xf32>
    %cst_49 = arith.constant dense<0.000000e+00> : vector<16x32xf32>
    %149 = tpu.matmul %147, %148, %cst_49 {dimension_numbers = #tpu.dot_dimension_numbers<[1], [1], [0], [0], [0, 0, 1, 0], [], []>} : vector<16x8xf32>, vector<32x8xf32>, vector<16x32xf32> -> vector<16x32xf32>
    %150 = arith.addf %149, %77 : vector<16x32xf32>
    %cst_50 = arith.constant dense<0xFF800000> : vector<16xf32>
    %151 = vector.multi_reduction <maximumf>, %150, %cst_50 [1] : vector<16x32xf32> to vector<16xf32>
    %152 = vector.shape_cast %151 : vector<16xf32> to vector<16x1xf32>
    %153 = vector.broadcast %152 : vector<16x1xf32> to vector<16x32xf32>
    %154 = arith.subf %150, %153 : vector<16x32xf32>
    %155 = math.exp %154 : vector<16x32xf32>
    %cst_51 = arith.constant dense<0.000000e+00> : vector<16xf32>
    %156 = vector.multi_reduction <add>, %155, %cst_51 [1] : vector<16x32xf32> to vector<16xf32>
    %157 = vector.shape_cast %156 : vector<16xf32> to vector<16x1xf32>
    %158 = tpu.reciprocal %157 {approx = true} : vector<16x1xf32> -> vector<16x1xf32>
    %159 = vector.extract_strided_slice %39 {offsets = [0, 256], sizes = [32, 64], strides = [1, 1]} : vector<32x576xf32> to vector<32x64xf32>
    %cst_52 = arith.constant dense<0.000000e+00> : vector<16x64xf32>
    %160 = tpu.matmul %155, %159, %cst_52 {dimension_numbers = #tpu.dot_dimension_numbers<[1], [0], [0], [1], [0, 0, 1, 1], [], []>} : vector<16x32xf32>, vector<32x64xf32>, vector<16x64xf32> -> vector<16x64xf32>
    %161 = vector.broadcast %158 : vector<16x1xf32> to vector<16x64xf32>
    %162 = arith.mulf %160, %161 : vector<16x64xf32>
    %163 = arith.addf %146, %162 : vector<16x64xf32>
    %164 = vector.extract_strided_slice %67 {offsets = [0, 40], sizes = [16, 8], strides = [1, 1]} : vector<16x64xf32> to vector<16x8xf32>
    %165 = vector.extract_strided_slice %42 {offsets = [0, 40], sizes = [32, 8], strides = [1, 1]} : vector<32x64xf32> to vector<32x8xf32>
    %cst_53 = arith.constant dense<0.000000e+00> : vector<16x32xf32>
    %166 = tpu.matmul %164, %165, %cst_53 {dimension_numbers = #tpu.dot_dimension_numbers<[1], [1], [0], [0], [0, 0, 1, 0], [], []>} : vector<16x8xf32>, vector<32x8xf32>, vector<16x32xf32> -> vector<16x32xf32>
    %167 = arith.addf %166, %77 : vector<16x32xf32>
    %cst_54 = arith.constant dense<0xFF800000> : vector<16xf32>
    %168 = vector.multi_reduction <maximumf>, %167, %cst_54 [1] : vector<16x32xf32> to vector<16xf32>
    %169 = vector.shape_cast %168 : vector<16xf32> to vector<16x1xf32>
    %170 = vector.broadcast %169 : vector<16x1xf32> to vector<16x32xf32>
    %171 = arith.subf %167, %170 : vector<16x32xf32>
    %172 = math.exp %171 : vector<16x32xf32>
    %cst_55 = arith.constant dense<0.000000e+00> : vector<16xf32>
    %173 = vector.multi_reduction <add>, %172, %cst_55 [1] : vector<16x32xf32> to vector<16xf32>
    %174 = vector.shape_cast %173 : vector<16xf32> to vector<16x1xf32>
    %175 = tpu.reciprocal %174 {approx = true} : vector<16x1xf32> -> vector<16x1xf32>
    %176 = vector.extract_strided_slice %39 {offsets = [0, 320], sizes = [32, 64], strides = [1, 1]} : vector<32x576xf32> to vector<32x64xf32>
    %cst_56 = arith.constant dense<0.000000e+00> : vector<16x64xf32>
    %177 = tpu.matmul %172, %176, %cst_56 {dimension_numbers = #tpu.dot_dimension_numbers<[1], [0], [0], [1], [0, 0, 1, 1], [], []>} : vector<16x32xf32>, vector<32x64xf32>, vector<16x64xf32> -> vector<16x64xf32>
    %178 = vector.broadcast %175 : vector<16x1xf32> to vector<16x64xf32>
    %179 = arith.mulf %177, %178 : vector<16x64xf32>
    %180 = arith.addf %163, %179 : vector<16x64xf32>
    %181 = vector.extract_strided_slice %67 {offsets = [0, 48], sizes = [16, 8], strides = [1, 1]} : vector<16x64xf32> to vector<16x8xf32>
    %182 = vector.extract_strided_slice %42 {offsets = [0, 48], sizes = [32, 8], strides = [1, 1]} : vector<32x64xf32> to vector<32x8xf32>
    %cst_57 = arith.constant dense<0.000000e+00> : vector<16x32xf32>
    %183 = tpu.matmul %181, %182, %cst_57 {dimension_numbers = #tpu.dot_dimension_numbers<[1], [1], [0], [0], [0, 0, 1, 0], [], []>} : vector<16x8xf32>, vector<32x8xf32>, vector<16x32xf32> -> vector<16x32xf32>
    %184 = arith.addf %183, %77 : vector<16x32xf32>
    %cst_58 = arith.constant dense<0xFF800000> : vector<16xf32>
    %185 = vector.multi_reduction <maximumf>, %184, %cst_58 [1] : vector<16x32xf32> to vector<16xf32>
    %186 = vector.shape_cast %185 : vector<16xf32> to vector<16x1xf32>
    %187 = vector.broadcast %186 : vector<16x1xf32> to vector<16x32xf32>
    %188 = arith.subf %184, %187 : vector<16x32xf32>
    %189 = math.exp %188 : vector<16x32xf32>
    %cst_59 = arith.constant dense<0.000000e+00> : vector<16xf32>
    %190 = vector.multi_reduction <add>, %189, %cst_59 [1] : vector<16x32xf32> to vector<16xf32>
    %191 = vector.shape_cast %190 : vector<16xf32> to vector<16x1xf32>
    %192 = tpu.reciprocal %191 {approx = true} : vector<16x1xf32> -> vector<16x1xf32>
    %193 = vector.extract_strided_slice %39 {offsets = [0, 384], sizes = [32, 64], strides = [1, 1]} : vector<32x576xf32> to vector<32x64xf32>
    %cst_60 = arith.constant dense<0.000000e+00> : vector<16x64xf32>
    %194 = tpu.matmul %189, %193, %cst_60 {dimension_numbers = #tpu.dot_dimension_numbers<[1], [0], [0], [1], [0, 0, 1, 1], [], []>} : vector<16x32xf32>, vector<32x64xf32>, vector<16x64xf32> -> vector<16x64xf32>
    %195 = vector.broadcast %192 : vector<16x1xf32> to vector<16x64xf32>
    %196 = arith.mulf %194, %195 : vector<16x64xf32>
    %197 = arith.addf %180, %196 : vector<16x64xf32>
    %198 = vector.extract_strided_slice %67 {offsets = [0, 56], sizes = [16, 8], strides = [1, 1]} : vector<16x64xf32> to vector<16x8xf32>
    %199 = vector.extract_strided_slice %42 {offsets = [0, 56], sizes = [32, 8], strides = [1, 1]} : vector<32x64xf32> to vector<32x8xf32>
    %cst_61 = arith.constant dense<0.000000e+00> : vector<16x32xf32>
    %200 = tpu.matmul %198, %199, %cst_61 {dimension_numbers = #tpu.dot_dimension_numbers<[1], [1], [0], [0], [0, 0, 1, 0], [], []>} : vector<16x8xf32>, vector<32x8xf32>, vector<16x32xf32> -> vector<16x32xf32>
    %201 = arith.addf %200, %77 : vector<16x32xf32>
    %cst_62 = arith.constant dense<0xFF800000> : vector<16xf32>
    %202 = vector.multi_reduction <maximumf>, %201, %cst_62 [1] : vector<16x32xf32> to vector<16xf32>
    %203 = vector.shape_cast %202 : vector<16xf32> to vector<16x1xf32>
    %204 = vector.broadcast %203 : vector<16x1xf32> to vector<16x32xf32>
    %205 = arith.subf %201, %204 : vector<16x32xf32>
    %206 = math.exp %205 : vector<16x32xf32>
    %cst_63 = arith.constant dense<0.000000e+00> : vector<16xf32>
    %207 = vector.multi_reduction <add>, %206, %cst_63 [1] : vector<16x32xf32> to vector<16xf32>
    %208 = vector.shape_cast %207 : vector<16xf32> to vector<16x1xf32>
    %209 = tpu.reciprocal %208 {approx = true} : vector<16x1xf32> -> vector<16x1xf32>
    %210 = vector.extract_strided_slice %39 {offsets = [0, 448], sizes = [32, 64], strides = [1, 1]} : vector<32x576xf32> to vector<32x64xf32>
    %cst_64 = arith.constant dense<0.000000e+00> : vector<16x64xf32>
    %211 = tpu.matmul %206, %210, %cst_64 {dimension_numbers = #tpu.dot_dimension_numbers<[1], [0], [0], [1], [0, 0, 1, 1], [], []>} : vector<16x32xf32>, vector<32x64xf32>, vector<16x64xf32> -> vector<16x64xf32>
    %212 = vector.broadcast %209 : vector<16x1xf32> to vector<16x64xf32>
    %213 = arith.mulf %211, %212 : vector<16x64xf32>
    %214 = arith.addf %197, %213 : vector<16x64xf32>
    %215 = arith.addf %0, %214 : vector<16x64xf32>
    %216 = vector.broadcast %10 : vector<1x64xf32> to vector<16x64xf32>
    %217 = arith.addf %215, %216 : vector<16x64xf32>
    %cst_65 = arith.constant dense<0.000000e+00> : vector<16xf32>
    %218 = vector.multi_reduction <add>, %217, %cst_65 [1] : vector<16x64xf32> to vector<16xf32>
    %219 = vector.shape_cast %218 : vector<16xf32> to vector<16x1xf32>
    %cst_66 = arith.constant 6.400000e+01 : f32
    %220 = vector.broadcast %cst_66 : f32 to vector<16x1xf32>
    %221 = arith.divf %219, %220 : vector<16x1xf32>
    %222 = vector.broadcast %221 : vector<16x1xf32> to vector<16x64xf32>
    %223 = arith.subf %217, %222 : vector<16x64xf32>
    %224 = arith.mulf %223, %223 : vector<16x64xf32>
    %cst_67 = arith.constant dense<0.000000e+00> : vector<16xf32>
    %225 = vector.multi_reduction <add>, %224, %cst_67 [1] : vector<16x64xf32> to vector<16xf32>
    %226 = vector.shape_cast %225 : vector<16xf32> to vector<16x1xf32>
    %cst_68 = arith.constant 6.400000e+01 : f32
    %227 = vector.broadcast %cst_68 : f32 to vector<16x1xf32>
    %228 = arith.divf %226, %227 : vector<16x1xf32>
    %229 = vector.broadcast %221 : vector<16x1xf32> to vector<16x64xf32>
    %230 = arith.subf %217, %229 : vector<16x64xf32>
    %cst_69 = arith.constant 9.99999974E-6 : f32
    %231 = vector.broadcast %cst_69 : f32 to vector<16x1xf32>
    %232 = arith.addf %228, %231 : vector<16x1xf32>
    %233 = math.rsqrt %232 : vector<16x1xf32>
    %234 = vector.broadcast %233 : vector<16x1xf32> to vector<16x64xf32>
    %235 = arith.mulf %230, %234 : vector<16x64xf32>
    %236 = vector.broadcast %6 : vector<1x64xf32> to vector<16x64xf32>
    %237 = arith.mulf %235, %236 : vector<16x64xf32>
    %238 = vector.broadcast %7 : vector<1x64xf32> to vector<16x64xf32>
    %239 = arith.addf %237, %238 : vector<16x64xf32>
    %cst_70 = arith.constant dense<0.000000e+00> : vector<16x256xf32>
    %240 = tpu.matmul %239, %14, %cst_70 {dimension_numbers = #tpu.dot_dimension_numbers<[1], [0], [0], [1], [0, 0, 1, 1], [], []>} : vector<16x64xf32>, vector<64x256xf32>, vector<16x256xf32> -> vector<16x256xf32>
    %241 = vector.broadcast %11 : vector<1x256xf32> to vector<16x256xf32>
    %242 = arith.addf %240, %241 : vector<16x256xf32>
    %cst_71 = arith.constant 5.000000e-01 : f32
    %243 = vector.broadcast %cst_71 : f32 to vector<16x256xf32>
    %244 = arith.mulf %243, %242 : vector<16x256xf32>
    %cst_72 = arith.constant 0.707106769 : f32
    %245 = vector.broadcast %cst_72 : f32 to vector<16x256xf32>
    %246 = arith.mulf %242, %245 : vector<16x256xf32>
    %247 = math.absf %246 : vector<16x256xf32>
    %cst_73 = arith.constant 0.327591091 : f32
    %248 = vector.broadcast %cst_73 : f32 to vector<16x256xf32>
    %249 = arith.mulf %248, %247 : vector<16x256xf32>
    %cst_74 = arith.constant 1.000000e+00 : f32
    %250 = vector.broadcast %cst_74 : f32 to vector<16x256xf32>
    %251 = arith.addf %250, %249 : vector<16x256xf32>
    %cst_75 = arith.constant 1.000000e+00 : f32
    %252 = vector.broadcast %cst_75 : f32 to vector<16x256xf32>
    %253 = arith.divf %252, %251 : vector<16x256xf32>
    %cst_76 = arith.constant 1.06140542 : f32
    %254 = vector.broadcast %cst_76 : f32 to vector<16x256xf32>
    %255 = arith.mulf %254, %253 : vector<16x256xf32>
    %cst_77 = arith.constant -1.45315206 : f32
    %256 = vector.broadcast %cst_77 : f32 to vector<16x256xf32>
    %257 = arith.addf %255, %256 : vector<16x256xf32>
    %258 = arith.mulf %257, %253 : vector<16x256xf32>
    %cst_78 = arith.constant 1.42141378 : f32
    %259 = vector.broadcast %cst_78 : f32 to vector<16x256xf32>
    %260 = arith.addf %258, %259 : vector<16x256xf32>
    %261 = arith.mulf %260, %253 : vector<16x256xf32>
    %cst_79 = arith.constant -0.284496725 : f32
    %262 = vector.broadcast %cst_79 : f32 to vector<16x256xf32>
    %263 = arith.addf %261, %262 : vector<16x256xf32>
    %264 = arith.mulf %263, %253 : vector<16x256xf32>
    %cst_80 = arith.constant 0.254829586 : f32
    %265 = vector.broadcast %cst_80 : f32 to vector<16x256xf32>
    %266 = arith.addf %264, %265 : vector<16x256xf32>
    %267 = arith.mulf %266, %253 : vector<16x256xf32>
    %cst_81 = arith.constant 0.000000e+00 : f32
    %268 = vector.broadcast %cst_81 : f32 to vector<16x256xf32>
    %269 = arith.subf %268, %247 : vector<16x256xf32>
    %270 = arith.mulf %269, %247 : vector<16x256xf32>
    %271 = math.exp %270 : vector<16x256xf32>
    %272 = arith.mulf %267, %271 : vector<16x256xf32>
    %cst_82 = arith.constant 1.000000e+00 : f32
    %273 = vector.broadcast %cst_82 : f32 to vector<16x256xf32>
    %274 = arith.subf %273, %272 : vector<16x256xf32>
    %cst_83 = arith.constant 0.000000e+00 : f32
    %275 = vector.broadcast %cst_83 : f32 to vector<16x256xf32>
    %276 = arith.cmpf oge, %246, %275 : vector<16x256xf32>
    %cst_84 = arith.constant 0.000000e+00 : f32
    %277 = vector.broadcast %cst_84 : f32 to vector<16x256xf32>
    %278 = arith.subf %277, %274 : vector<16x256xf32>
    %279 = arith.select %276, %274, %278 : vector<16x256xi1>, vector<16x256xf32>
    %cst_85 = arith.constant 1.000000e+00 : f32
    %280 = vector.broadcast %cst_85 : f32 to vector<16x256xf32>
    %281 = arith.addf %280, %279 : vector<16x256xf32>
    %282 = arith.mulf %244, %281 : vector<16x256xf32>
    %cst_86 = arith.constant dense<0.000000e+00> : vector<16x64xf32>
    %283 = tpu.matmul %282, %15, %cst_86 {dimension_numbers = #tpu.dot_dimension_numbers<[1], [1], [0], [0], [0, 0, 1, 0], [], []>} : vector<16x256xf32>, vector<64x256xf32>, vector<16x64xf32> -> vector<16x64xf32>
    %284 = vector.broadcast %12 : vector<1x64xf32> to vector<16x64xf32>
    %285 = arith.addf %283, %284 : vector<16x64xf32>
    %286 = arith.addf %217, %285 : vector<16x64xf32>
    %c0_87 = arith.constant 0 : index
    %c0_88 = arith.constant 0 : index
    %287 = vector.load %arg4[%c0_87, %c0_88] : memref<16x64xf32, #tpu.memory_space<vmem>>, vector<16x64xf32>
    tpu.vector_store %arg4[%c0_87, %c0_88], %286 {strides = array<i32>} : memref<16x64xf32, #tpu.memory_space<vmem>>, vector<16x64xf32>,
    return
  }
  func.func @transform_0(%arg0: i32) -> (i32, i32) {
    %c0_i32 = arith.constant 0 : i32
    %c0_i32_0 = arith.constant 0 : i32
    %c0_i32_1 = arith.constant 0 : i32
    return %c0_i32, %c0_i32_0 : i32, i32
  }
  func.func @transform_1(%arg0: i32) -> (i32, i32) {
    %c0_i32 = arith.constant 0 : i32
    %c0_i32_0 = arith.constant 0 : i32
    %c0_i32_1 = arith.constant 0 : i32
    return %c0_i32, %c0_i32_0 : i32, i32
  }
  func.func @transform_2(%arg0: i32) -> (i32, i32) {
    %c0_i32 = arith.constant 0 : i32
    %c0_i32_0 = arith.constant 0 : i32
    %c0_i32_1 = arith.constant 0 : i32
    return %c0_i32, %c0_i32_0 : i32, i32
  }
  func.func @transform_3(%arg0: i32) -> (i32, i32) {
    %c0_i32 = arith.constant 0 : i32
    %c0_i32_0 = arith.constant 0 : i32
    %c0_i32_1 = arith.constant 0 : i32
    return %c0_i32, %c0_i32_0 : i32, i32
  }
}

</mosaic_0001>

<llo_original>
// kernel: tpu_custom_call.1
$region0: #{tpu_custom_call.1}
  #allocation0 [shape = 'u32[]', space=smem, size = 0x4, offset = 0x4, fixed_abs, tag = 'smem constant byte address 0x4 - core index']
  #allocation1 [shape = 'u32[144,128]{1,0:T(1,128)}', space=vmem, size = 0x12000, scoped, tag = 'internal scratch']
  %s0 = inlined_call_operand.hbm [shape: f32[16,64], index: 0, kind: input, shape index: {}]
  %s1 = inlined_call_operand.hbm [shape: f32[32,32], index: 1, kind: input, shape index: {}]
  %s2 = inlined_call_operand.hbm [shape: f32[112,576], index: 2, kind: input, shape index: {}]
  %s3 = inlined_call_operand.hbm [shape: f32[16,64], index: 3, kind: output, shape index: {}]
  %s4 = sld [smem:[#allocation0]]
  $region34: #{tpu_custom_call.1} parent=0
    _
  %s6 = ssub.s32 1, %s4
  %s7 = scalar_select 0, %s6, %s4
  $region1: #{tpu_custom_call.1} parent=0
    #allocation2 [shape = 'u8[8192]{0}', space=vmem, size = 0x2000, scoped, tag = 'input window, operand 0, single buffered']
    #allocation3 [shape = 's32[1]{0}', space=sflag, size = 0x4, scoped, tag = 'scoped memory for tpu_custom_call.1']
    #allocation4 [shape = 's32[1]{0}', space=sflag, size = 0x4, scoped, tag = 'scoped memory for tpu_custom_call.1']
    #allocation5 [shape = 'u8[16384]{0}', space=vmem, size = 0x4000, scoped, tag = 'input window, operand 1, single buffered']
    #allocation6 [shape = 's32[1]{0}', space=sflag, size = 0x4, scoped, tag = 'scoped memory for tpu_custom_call.1']
    #allocation7 [shape = 'u8[286720]{0}', space=vmem, size = 0x46000, scoped, tag = 'input window, operand 2, single buffered']
    #allocation8 [shape = 'u8[8192]{0}', space=vmem, size = 0x2000, scoped, tag = 'output window, operand 0, single buffered']
    %8 = vsyncpa [#allocation3], 0
    %9 = vsyncpa [#allocation6], 0
    %10 = vsyncpa [#allocation4], 0
    // Predicated region
    $region2: #{tpu_custom_call.1} parent=1 // pred_check
      _
    $region3: #{tpu_custom_call.1} parent=1 // pred_check_branch
      %12 = sbr.rel (0) target = $region5
    $region4: #{tpu_custom_call.1} parent=1 // pred_region
      %s14 = ssub.s32 256, 256
      %15 = vsyncadd [#allocation3], %s14
      %s16 = sshll.u32 [#allocation2], 4
      %s17 = int_to_ptr.vmem [resolvable:$true] %s16
      %22 = dma.hbm_to_vmem [thread:$0]  %s0, 256, %s17, [#allocation3], 128, 128, 8
    $region5: #{tpu_custom_call.1} parent=1 // pred_fallthru
      _
    // Predicated region
    $region6: #{tpu_custom_call.1} parent=1 // pred_check
      _
    $region7: #{tpu_custom_call.1} parent=1 // pred_check_branch
      %24 = sbr.rel (0) target = $region9
    $region8: #{tpu_custom_call.1} parent=1 // pred_region
      %s26 = ssub.s32 512, 512
      %27 = vsyncadd [#allocation6], %s26
      %s28 = sshll.u32 [#allocation5], 4
      %s29 = int_to_ptr.vmem [resolvable:$true] %s28
      %34 = dma.hbm_to_vmem [thread:$0]  %s1, 512, %s29, [#allocation6], 128, 128, 8
    $region9: #{tpu_custom_call.1} parent=1 // pred_fallthru
      _
    // Predicated region
    $region10: #{tpu_custom_call.1} parent=1 // pred_check
      _
    $region11: #{tpu_custom_call.1} parent=1 // pred_check_branch
      %36 = sbr.rel (0) target = $region13
    $region12: #{tpu_custom_call.1} parent=1 // pred_region
      %s38 = ssub.s32 8960, 8960
      %39 = vsyncadd [#allocation6], %s38
      %s40 = sshll.u32 [#allocation7], 4
      %s41 = int_to_ptr.vmem [resolvable:$true] %s40
      %46 = dma.hbm_to_vmem [thread:$0]  %s2, 8960, %s41, [#allocation6], 640, 640, 40
    $region13: #{tpu_custom_call.1} parent=1 // pred_fallthru
      _
    // Predicated region
    $region14: #{tpu_custom_call.1} parent=1 // pred_check
      _
    $region15: #{tpu_custom_call.1} parent=1 // pred_check_branch
      %48 = sbr.rel (0) target = $region17
    $region16: #{tpu_custom_call.1} parent=1 // pred_region
      %49 = dma.done [#allocation3], 256
    $region17: #{tpu_custom_call.1} parent=1 // pred_fallthru
      _
    // Predicated region
    $region18: #{tpu_custom_call.1} parent=1 // pred_check
      _
    $region19: #{tpu_custom_call.1} parent=1 // pred_check_branch
      %51 = sbr.rel (0) target = $region21
    $region20: #{tpu_custom_call.1} parent=1 // pred_region
      %52 = dma.done [#allocation6], 512
    $region21: #{tpu_custom_call.1} parent=1 // pred_fallthru
      _
    // Predicated region
    $region22: #{tpu_custom_call.1} parent=1 // pred_check
      _
    $region23: #{tpu_custom_call.1} parent=1 // pred_check_branch
      %54 = sbr.rel (0) target = $region25
    $region24: #{tpu_custom_call.1} parent=1 // pred_region
      %55 = dma.done [#allocation6], 8960
    $region25: #{tpu_custom_call.1} parent=1 // pred_fallthru
      _
    %v56 = vld [vmem:[#allocation2] sm:$0xff]
    %v57 = vld [vmem:[#allocation2 + $0x8] sm:$0xff]
    %v58 = vld [vmem:[#allocation5] sm:$0xff]
    %v59 = vld [vmem:[#allocation5 + $0x8] sm:$0xff]
    %v60 = vld [vmem:[#allocation5 + $0x10] sm:$0xff]
    %v61 = vld [vmem:[#allocation5 + $0x18] sm:$0xff]
    %v62 = vld [vmem:[#allocation7] ss:$0 sm:$0xff]
    %v63 = vld [vmem:[#allocation7 + $0x1] ss:$0 sm:$0xff]
    %v64 = vld [vmem:[#allocation7 + $0x2] ss:$0 sm:$0xff]
    %v65 = vld [vmem:[#allocation7 + $0x3] ss:$0 sm:$0xff]
    %v66 = vld [vmem:[#allocation7 + $0x4] ss:$0 sm:$0xff]
    %v67 = vld [vmem:[#allocation7 + $0x5] ss:$0 sm:$0xff]
    %v68 = vld [vmem:[#allocation7 + $0x6] ss:$0 sm:$0xff]
    %v69 = vld [vmem:[#allocation7 + $0x7] ss:$0 sm:$0xff]
    %v70 = vld [vmem:[#allocation7 + $0x28] ss:$0 sm:$0xff]
    %s71 = scalar_lea.vmem [#allocation7], 41
    %v72 = vld [vmem:[%s71] ss:$8 sm:$0x3]
    %v73 = vld [vmem:[#allocation7 + $0x2a] ss:$0 sm:$0xff]
    %v74 = vld [vmem:[#allocation7 + $0x50] sm:$0xff]
    %v75 = vld [vmem:[#allocation7 + $0x58] sm:$0xff]
    %v76 = vld [vmem:[#allocation7 + $0x60] sm:$0xff]
    %v77 = vld [vmem:[#allocation7 + $0x68] sm:$0xff]
    %v78 = vld [vmem:[#allocation7 + $0x70] sm:$0xff]
    %v79 = vld [vmem:[#allocation7 + $0x78] sm:$0xff]
    %v80 = vld [vmem:[#allocation7 + $0x80] sm:$0xff]
    %v81 = vld [vmem:[#allocation7 + $0x88] sm:$0xff]
    %v82 = vld [vmem:[#allocation7 + $0x90] sm:$0xff]
    %v83 = vld [vmem:[#allocation7 + $0x98] sm:$0xff]
    %v84 = vld [vmem:[#allocation7 + $0xa0] sm:$0xff]
    %v85 = vld [vmem:[#allocation7 + $0xa8] sm:$0xff]
    %v86 = vld [vmem:[#allocation7 + $0xb0] sm:$0xff]
    %v87 = vld [vmem:[#allocation7 + $0xb8] sm:$0xff]
    %v88 = vld [vmem:[#allocation7 + $0xc0] sm:$0xff]
    %v89 = vld [vmem:[#allocation7 + $0xc8] sm:$0xff]
    %v90 = vld [vmem:[#allocation7 + $0xd0] sm:$0xff]
    %v91 = vld [vmem:[#allocation7 + $0xd8] sm:$0xff]
    %v92 = vld [vmem:[#allocation7 + $0xe0] sm:$0xff]
    %v93 = vld [vmem:[#allocation7 + $0xe8] sm:$0xff]
    %v94 = vld [vmem:[#allocation7 + $0xf0] sm:$0xff]
    %v95 = vld [vmem:[#allocation7 + $0xf8] sm:$0xff]
    %v96 = vld [vmem:[#allocation7 + $0x118] sm:$0xff]
    %v97 = vld [vmem:[#allocation7 + $0x120] sm:$0xff]
    %v98 = vld [vmem:[#allocation7 + $0x140] sm:$0xff]
    %v99 = vld [vmem:[#allocation7 + $0x148] sm:$0xff]
    %v100 = vld [vmem:[#allocation7 + $0x168] sm:$0xff]
    %v101 = vld [vmem:[#allocation7 + $0x170] sm:$0xff]
    %v102 = vld [vmem:[#allocation7 + $0x190] sm:$0xff]
    %v103 = vld [vmem:[#allocation7 + $0x198] sm:$0xff]
    %v104 = vld [vmem:[#allocation7 + $0x1b8] sm:$0xff]
    %v105 = vld [vmem:[#allocation7 + $0x1c0] sm:$0xff]
    %v106 = vld [vmem:[#allocation7 + $0x1e0] sm:$0xff]
    %v107 = vld [vmem:[#allocation7 + $0x1e8] sm:$0xff]
    %v108 = vld [vmem:[#allocation7 + $0x208] sm:$0xff]
    %v109 = vld [vmem:[#allocation7 + $0x210] sm:$0xff]
    %v110 = vld [vmem:[#allocation7 + $0x100] sm:$0xff]
    %v111 = vld [vmem:[#allocation7 + $0x108] sm:$0xff]
    %v112 = vld [vmem:[#allocation7 + $0x128] sm:$0xff]
    %v113 = vld [vmem:[#allocation7 + $0x130] sm:$0xff]
    %v114 = vld [vmem:[#allocation7 + $0x150] sm:$0xff]
    %v115 = vld [vmem:[#allocation7 + $0x158] sm:$0xff]
    %v116 = vld [vmem:[#allocation7 + $0x178] sm:$0xff]
    %v117 = vld [vmem:[#allocation7 + $0x180] sm:$0xff]
    %v118 = vld [vmem:[#allocation7 + $0x1a0] sm:$0xff]
    %v119 = vld [vmem:[#allocation7 + $0x1a8] sm:$0xff]
    %v120 = vld [vmem:[#allocation7 + $0x1c8] sm:$0xff]
    %v121 = vld [vmem:[#allocation7 + $0x1d0] sm:$0xff]
    %v122 = vld [vmem:[#allocation7 + $0x1f0] sm:$0xff]
    %v123 = vld [vmem:[#allocation7 + $0x1f8] sm:$0xff]
    %v124 = vld [vmem:[#allocation7 + $0x218] sm:$0xff]
    %v125 = vld [vmem:[#allocation7 + $0x220] sm:$0xff]
    %v126 = vld [vmem:[#allocation7 + $0x110] sm:$0xff]
    %v127 = vld [vmem:[#allocation7 + $0x138] sm:$0xff]
    %v128 = vld [vmem:[#allocation7 + $0x160] sm:$0xff]
    %v129 = vld [vmem:[#allocation7 + $0x188] sm:$0xff]
    %v130 = vld [vmem:[#allocation7 + $0x1b0] sm:$0xff]
    %v131 = vld [vmem:[#allocation7 + $0x1d8] sm:$0xff]
    %v132 = vld [vmem:[#allocation7 + $0x200] sm:$0xff]
    %v133 = vld [vmem:[#allocation7 + $0x228] sm:$0xff]
    %vm134 = vcmask 261120
    %v135 = vsel %vm134, %v58, 0.0
    %136 = vadd.xlane.f32.xlu0 %v135
    %v137 = vpop.xlane.xlu0 %136
    %v138 = vsel %vm134, %v59, 0.0
    %139 = vadd.xlane.f32.xlu0 %v138
    %v140 = vpop.xlane.xlu0 %139
    %v141 = vsel %vm134, %v60, 0.0
    %142 = vadd.xlane.f32.xlu0 %v141
    %v143 = vpop.xlane.xlu0 %142
    %v144 = vsel %vm134, %v61, 0.0
    %145 = vadd.xlane.f32.xlu0 %v144
    %v146 = vpop.xlane.xlu0 %145
    %v147 = vrcp.pop 32.0
    %v148 = vmul.f32 %v137, %v147
    %v149 = vmul.f32 %v140, %v147
    %v150 = vmul.f32 %v143, %v147
    %v151 = vmul.f32 %v146, %v147
    %v152 = vsub.f32 %v58, %v148
    %v153 = vsub.f32 %v59, %v149
    %v154 = vsub.f32 %v60, %v150
    %v155 = vsub.f32 %v61, %v151
    %v156 = vmul.f32 %v152, %v152
    %v157 = vmul.f32 %v153, %v153
    %v158 = vmul.f32 %v154, %v154
    %v159 = vmul.f32 %v155, %v155
    %v160 = vsel %vm134, %v156, 0.0
    %161 = vadd.xlane.f32.xlu0 %v160
    %v162 = vpop.xlane.xlu0 %161
    %v163 = vsel %vm134, %v157, 0.0
    %164 = vadd.xlane.f32.xlu0 %v163
    %v165 = vpop.xlane.xlu0 %164
    %v166 = vsel %vm134, %v158, 0.0
    %167 = vadd.xlane.f32.xlu0 %v166
    %v168 = vpop.xlane.xlu0 %167
    %v169 = vsel %vm134, %v159, 0.0
    %170 = vadd.xlane.f32.xlu0 %v169
    %v171 = vpop.xlane.xlu0 %170
    %v172 = vmul.f32 %v162, %v147
    %v173 = vmul.f32 %v165, %v147
    %v174 = vmul.f32 %v168, %v147
    %v175 = vmul.f32 %v171, %v147
    %v176 = vadd.f32 %v172, 1e-05
    %v177 = vadd.f32 %v173, 1e-05
    %v178 = vadd.f32 %v174, 1e-05
    %v179 = vadd.f32 %v175, 1e-05
    %v180 = vrsqrt.pop %v176
    %v181 = vrsqrt.pop %v177
    %v182 = vrsqrt.pop %v178
    %v183 = vrsqrt.pop %v179
    %v184 = vmul.f32 %v152, %v180
    %v185 = vmul.f32 %v153, %v181
    %v186 = vmul.f32 %v154, %v182
    %v187 = vmul.f32 %v155, %v183
    %v188 = vmul.f32 %v184, %v62
    %v189 = vmul.f32 %v185, %v62
    %v190 = vmul.f32 %v186, %v62
    %v191 = vmul.f32 %v187, %v62
    %v192 = vadd.f32 %v188, %v63
    %v193 = vadd.f32 %v189, %v63
    %v194 = vadd.f32 %v190, %v63
    %v195 = vadd.f32 %v191, %v63
    %v197 = vsel %vm134, %v192, 0
    %v200 = vsel %vm134, %v193, 0
    %v203 = vsel %vm134, %v194, 0
    %v206 = vsel %vm134, %v195, 0
    %208 = vmatprep.subr.mxu0 0.0
    %209 = vmatpush1.msra.mxu0 0.0
    %210 = vmatprep.subr.mxu0 0.0
    %211 = vmatpush1.msra.mxu0 0.0
    %212 = vmatprep.subr.mxu0 0.0
    %213 = vmatpush1.msra.mxu0 0.0
    %214 = vmatprep.subr.mxu0 0.0
    %215 = vmatpush1.msra.mxu0 0.0
    %216 = vmatprep.subr.mxu0 0.0
    %217 = vmatpush1.msra.mxu0 0.0
    %218 = vmatprep.subr.mxu0 0.0
    %219 = vmatpush1.msra.mxu0 0.0
    %220 = vmatprep.subr.mxu0 0.0
    %221 = vmatpush1.msra.mxu0 0.0
    %222 = vmatprep.subr.mxu0 0.0
    %223 = vmatpush1.msra.mxu0 0.0
    %224 = vmatprep.subr.mxu0 0.0
    %225 = vmatpush1.msra.mxu0 0.0
    %226 = vmatprep.subr.mxu0 0.0
    %227 = vmatpush1.msra.mxu0 0.0
    %228 = vmatprep.subr.mxu0 0.0
    %229 = vmatpush1.msra.mxu0 0.0
    %230 = vmatprep.subr.mxu0 0.0
    %231 = vmatpush1.msra.mxu0 0.0
    %232 = vmatprep.subr.mxu0 %v90
    %233 = vmatpush1.msra.mxu0 %v89
    %234 = vmatprep.subr.mxu0 %v85
    %235 = vmatpush1.msra.mxu0 %v84
    %236 = vmatprep.subr.mxu0 %v80
    %237 = vmatpush1.msra.mxu0 %v79
    %238 = vmatprep.subr.mxu0 %v75
    %239 = vmatpush1.msra.mxu0 %v74
    %240 = vmatprep.subr.mxu0 0.0
    %241 = vmatpush2.msra.mxu0 0.0
    %242 = vmatprep.subr.mxu0 0.0
    %243 = vmatpush2.msra.mxu0 0.0
    %244 = vmatprep.subr.mxu0 0.0
    %245 = vmatpush2.msra.mxu0 0.0
    %246 = vmatprep.subr.mxu0 0.0
    %247 = vmatpush2.msra.mxu0 0.0
    %248 = vmatprep.subr.mxu0 0.0
    %249 = vmatpush2.msra.mxu0 0.0
    %250 = vmatprep.subr.mxu0 0.0
    %251 = vmatpush2.msra.mxu0 0.0
    %252 = vmatprep.subr.mxu0 0.0
    %253 = vmatpush2.msra.mxu0 0.0
    %254 = vmatprep.subr.mxu0 0.0
    %255 = vmatpush2.msra.mxu0 0.0
    %256 = vmatprep.subr.mxu0 0.0
    %257 = vmatpush2.msra.mxu0 0.0
    %258 = vmatprep.subr.mxu0 0.0
    %259 = vmatpush2.msra.mxu0 0.0
    %260 = vmatprep.subr.mxu0 0.0
    %261 = vmatpush2.msra.mxu0 0.0
    %262 = vmatprep.subr.mxu0 0.0
    %263 = vmatpush2.msra.mxu0 0.0
    %264 = vmatprep.subr.mxu0 0.0
    %265 = vmatpush2.msra.mxu0 0.0
    %266 = vmatprep.subr.mxu0 0.0
    %267 = vmatpush2.msra.mxu0 0.0
    %268 = vmatprep.subr.mxu0 0.0
    %269 = vmatpush2.msra.mxu0 0.0
    %270 = vmatprep.subr.mxu0 0.0
    %271 = vmatpush2.msra.mxu0 0.0
    %272 = vmatprep.mubr.f32.mxu0 0.0
    %273 = vmatmul.mubr.f32.gmra.mxu0 %v197
    %v274 = vpop.f32.mrf.mxu0
    %v275 = vadd.f32 0.0, %v274
    %v276 = vpop.f32.mrf.mxu0
    %v277 = vadd.f32 0.0, %v276
    %278 = vmatprep.mubr.f32.mxu0 0.0
    %279 = vmatmul.mubr.f32.gmra.mxu0 %v200
    %v280 = vpop.f32.mrf.mxu0
    %v281 = vadd.f32 0.0, %v280
    %v282 = vpop.f32.mrf.mxu0
    %v283 = vadd.f32 0.0, %v282
    %284 = vmatprep.mubr.f32.mxu0 0.0
    %285 = vmatmul.mubr.f32.gmra.mxu0 %v203
    %v286 = vpop.f32.mrf.mxu0
    %v287 = vadd.f32 0.0, %v286
    %v288 = vpop.f32.mrf.mxu0
    %v289 = vadd.f32 0.0, %v288
    %290 = vmatprep.mubr.f32.mxu0 0.0
    %291 = vmatmul.mubr.f32.gmra.mxu0 %v206
    %v292 = vpop.f32.mrf.mxu0
    %v293 = vadd.f32 0.0, %v292
    %v294 = vpop.f32.mrf.mxu0
    %v295 = vadd.f32 0.0, %v294
    %296 = vdwg.mxu0
    %297 = vmatprep.subr.mxu0 0.0
    %298 = vmatpush1.msra.mxu0 0.0
    %299 = vmatprep.subr.mxu0 0.0
    %300 = vmatpush1.msra.mxu0 0.0
    %301 = vmatprep.subr.mxu0 0.0
    %302 = vmatpush1.msra.mxu0 0.0
    %303 = vmatprep.subr.mxu0 0.0
    %304 = vmatpush1.msra.mxu0 0.0
    %305 = vmatprep.subr.mxu0 0.0
    %306 = vmatpush1.msra.mxu0 0.0
    %307 = vmatprep.subr.mxu0 0.0
    %308 = vmatpush1.msra.mxu0 0.0
    %309 = vmatprep.subr.mxu0 0.0
    %310 = vmatpush1.msra.mxu0 0.0
    %311 = vmatprep.subr.mxu0 0.0
    %312 = vmatpush1.msra.mxu0 0.0
    %313 = vmatprep.subr.mxu0 0.0
    %314 = vmatpush1.msra.mxu0 0.0
    %315 = vmatprep.subr.mxu0 0.0
    %316 = vmatpush1.msra.mxu0 0.0
    %317 = vmatprep.subr.mxu0 0.0
    %318 = vmatpush1.msra.mxu0 0.0
    %319 = vmatprep.subr.mxu0 0.0
    %320 = vmatpush1.msra.mxu0 0.0
    %321 = vmatprep.subr.mxu0 %v92
    %322 = vmatpush1.msra.mxu0 %v91
    %323 = vmatprep.subr.mxu0 %v87
    %324 = vmatpush1.msra.mxu0 %v86
    %325 = vmatprep.subr.mxu0 %v82
    %326 = vmatpush1.msra.mxu0 %v81
    %327 = vmatprep.subr.mxu0 %v77
    %328 = vmatpush1.msra.mxu0 %v76
    %329 = vmatprep.subr.mxu0 0.0
    %330 = vmatpush2.msra.mxu0 0.0
    %331 = vmatprep.subr.mxu0 0.0
    %332 = vmatpush2.msra.mxu0 0.0
    %333 = vmatprep.subr.mxu0 0.0
    %334 = vmatpush2.msra.mxu0 0.0
    %335 = vmatprep.subr.mxu0 0.0
    %336 = vmatpush2.msra.mxu0 0.0
    %337 = vmatprep.subr.mxu0 0.0
    %338 = vmatpush2.msra.mxu0 0.0
    %339 = vmatprep.subr.mxu0 0.0
    %340 = vmatpush2.msra.mxu0 0.0
    %341 = vmatprep.subr.mxu0 0.0
    %342 = vmatpush2.msra.mxu0 0.0
    %343 = vmatprep.subr.mxu0 0.0
    %344 = vmatpush2.msra.mxu0 0.0
    %345 = vmatprep.subr.mxu0 0.0
    %346 = vmatpush2.msra.mxu0 0.0
    %347 = vmatprep.subr.mxu0 0.0
    %348 = vmatpush2.msra.mxu0 0.0
    %349 = vmatprep.subr.mxu0 0.0
    %350 = vmatpush2.msra.mxu0 0.0
    %351 = vmatprep.subr.mxu0 0.0
    %352 = vmatpush2.msra.mxu0 0.0
    %353 = vmatprep.subr.mxu0 0.0
    %354 = vmatpush2.msra.mxu0 0.0
    %355 = vmatprep.subr.mxu0 0.0
    %356 = vmatpush2.msra.mxu0 0.0
    %357 = vmatprep.subr.mxu0 0.0
    %358 = vmatpush2.msra.mxu0 0.0
    %359 = vmatprep.subr.mxu0 0.0
    %360 = vmatpush2.msra.mxu0 0.0
    %361 = vmatprep.mubr.f32.mxu0 0.0
    %362 = vmatmul.mubr.f32.gmra.mxu0 %v197
    %v363 = vpop.f32.mrf.mxu0
    %v364 = vadd.f32 0.0, %v363
    %v365 = vpop.f32.mrf.mxu0
    %v366 = vadd.f32 0.0, %v365
    %367 = vmatprep.mubr.f32.mxu0 0.0
    %368 = vmatmul.mubr.f32.gmra.mxu0 %v200
    %v369 = vpop.f32.mrf.mxu0
    %v370 = vadd.f32 0.0, %v369
    %v371 = vpop.f32.mrf.mxu0
    %v372 = vadd.f32 0.0, %v371
    %373 = vmatprep.mubr.f32.mxu0 0.0
    %374 = vmatmul.mubr.f32.gmra.mxu0 %v203
    %v375 = vpop.f32.mrf.mxu0
    %v376 = vadd.f32 0.0, %v375
    %v377 = vpop.f32.mrf.mxu0
    %v378 = vadd.f32 0.0, %v377
    %379 = vmatprep.mubr.f32.mxu0 0.0
    %380 = vmatmul.mubr.f32.gmra.mxu0 %v206
    %v381 = vpop.f32.mrf.mxu0
    %v382 = vadd.f32 0.0, %v381
    %v383 = vpop.f32.mrf.mxu0
    %v384 = vadd.f32 0.0, %v383
    %385 = vdwg.mxu0
    %386 = vmatprep.subr.mxu0 0.0
    %387 = vmatpush1.msra.mxu0 0.0
    %388 = vmatprep.subr.mxu0 0.0
    %389 = vmatpush1.msra.mxu0 0.0
    %390 = vmatprep.subr.mxu0 0.0
    %391 = vmatpush1.msra.mxu0 0.0
    %392 = vmatprep.subr.mxu0 0.0
    %393 = vmatpush1.msra.mxu0 0.0
    %394 = vmatprep.subr.mxu0 0.0
    %395 = vmatpush1.msra.mxu0 0.0
    %396 = vmatprep.subr.mxu0 0.0
    %397 = vmatpush1.msra.mxu0 0.0
    %398 = vmatprep.subr.mxu0 0.0
    %399 = vmatpush1.msra.mxu0 0.0
    %400 = vmatprep.subr.mxu0 0.0
    %401 = vmatpush1.msra.mxu0 0.0
    %402 = vmatprep.subr.mxu0 0.0
    %403 = vmatpush1.msra.mxu0 0.0
    %404 = vmatprep.subr.mxu0 0.0
    %405 = vmatpush1.msra.mxu0 0.0
    %406 = vmatprep.subr.mxu0 0.0
    %407 = vmatpush1.msra.mxu0 0.0
    %408 = vmatprep.subr.mxu0 0.0
    %409 = vmatpush1.msra.mxu0 0.0
    %410 = vmatprep.subr.mxu0 0.0
    %411 = vmatpush1.msra.mxu0 %v93
    %412 = vmatprep.subr.mxu0 0.0
    %413 = vmatpush1.msra.mxu0 %v88
    %414 = vmatprep.subr.mxu0 0.0
    %415 = vmatpush1.msra.mxu0 %v83
    %416 = vmatprep.subr.mxu0 0.0
    %417 = vmatpush1.msra.mxu0 %v78
    %418 = vmatprep.subr.mxu0 0.0
    %419 = vmatpush2.msra.mxu0 0.0
    %420 = vmatprep.subr.mxu0 0.0
    %421 = vmatpush2.msra.mxu0 0.0
    %422 = vmatprep.subr.mxu0 0.0
    %423 = vmatpush2.msra.mxu0 0.0
    %424 = vmatprep.subr.mxu0 0.0
    %425 = vmatpush2.msra.mxu0 0.0
    %426 = vmatprep.subr.mxu0 0.0
    %427 = vmatpush2.msra.mxu0 0.0
    %428 = vmatprep.subr.mxu0 0.0
    %429 = vmatpush2.msra.mxu0 0.0
    %430 = vmatprep.subr.mxu0 0.0
    %431 = vmatpush2.msra.mxu0 0.0
    %432 = vmatprep.subr.mxu0 0.0
    %433 = vmatpush2.msra.mxu0 0.0
    %434 = vmatprep.subr.mxu0 0.0
    %435 = vmatpush2.msra.mxu0 0.0
    %436 = vmatprep.subr.mxu0 0.0
    %437 = vmatpush2.msra.mxu0 0.0
    %438 = vmatprep.subr.mxu0 0.0
    %439 = vmatpush2.msra.mxu0 0.0
    %440 = vmatprep.subr.mxu0 0.0
    %441 = vmatpush2.msra.mxu0 0.0
    %442 = vmatprep.subr.mxu0 0.0
    %443 = vmatpush2.msra.mxu0 0.0
    %444 = vmatprep.subr.mxu0 0.0
    %445 = vmatpush2.msra.mxu0 0.0
    %446 = vmatprep.subr.mxu0 0.0
    %447 = vmatpush2.msra.mxu0 0.0
    %448 = vmatprep.subr.mxu0 0.0
    %449 = vmatpush2.msra.mxu0 0.0
    %450 = vmatprep.mubr.f32.mxu0 0.0
    %451 = vmatmul.mubr.f32.gmra.mxu0 %v197
    %v452 = vpop.f32.mrf.mxu0
    %v453 = vadd.f32 0.0, %v452
    %v454 = vpop.f32.mrf.mxu0
    %455 = vmatprep.mubr.f32.mxu0 0.0
    %456 = vmatmul.mubr.f32.gmra.mxu0 %v200
    %v457 = vpop.f32.mrf.mxu0
    %v458 = vadd.f32 0.0, %v457
    %v459 = vpop.f32.mrf.mxu0
    %460 = vmatprep.mubr.f32.mxu0 0.0
    %461 = vmatmul.mubr.f32.gmra.mxu0 %v203
    %v462 = vpop.f32.mrf.mxu0
    %v463 = vadd.f32 0.0, %v462
    %v464 = vpop.f32.mrf.mxu0
    %465 = vmatprep.mubr.f32.mxu0 0.0
    %466 = vmatmul.mubr.f32.gmra.mxu0 %v206
    %v467 = vpop.f32.mrf.mxu0
    %v468 = vadd.f32 0.0, %v467
    %v469 = vpop.f32.mrf.mxu0
    %470 = vdwg.mxu0
    %v471 = vadd.f32 %v453, %v69
    %v472 = vadd.f32 %v458, %v69
    %v473 = vadd.f32 %v463, %v69
    %v474 = vadd.f32 %v468, %v69
    %vm475 = vcmask 523264
    %v476 = vsel %vm475, %v56, 0.0
    %477 = vadd.xlane.f32.xlu0 %v476
    %v478 = vpop.xlane.xlu0 %477
    %v479 = vsel %vm475, %v57, 0.0
    %480 = vadd.xlane.f32.xlu0 %v479
    %v481 = vpop.xlane.xlu0 %480
    %v482 = vrcp.pop 64.0
    %v483 = vmul.f32 %v478, %v482
    %v484 = vmul.f32 %v481, %v482
    %v485 = vsub.f32 %v56, %v483
    %v486 = vsub.f32 %v57, %v484
    %v487 = vmul.f32 %v485, %v485
    %v488 = vmul.f32 %v486, %v486
    %v489 = vsel %vm475, %v487, 0.0
    %490 = vadd.xlane.f32.xlu0 %v489
    %v491 = vpop.xlane.xlu0 %490
    %v492 = vsel %vm475, %v488, 0.0
    %493 = vadd.xlane.f32.xlu0 %v492
    %v494 = vpop.xlane.xlu0 %493
    %v495 = vmul.f32 %v491, %v482
    %v496 = vmul.f32 %v494, %v482
    %v497 = vadd.f32 %v495, 1e-05
    %v498 = vadd.f32 %v496, 1e-05
    %v499 = vrsqrt.pop %v497
    %v500 = vrsqrt.pop %v498
    %v501 = vmul.f32 %v485, %v499
    %v502 = vmul.f32 %v486, %v500
    %v503 = vmul.f32 %v501, %v64
    %v504 = vmul.f32 %v502, %v64
    %v505 = vadd.f32 %v503, %v65
    %v506 = vadd.f32 %v504, %v65
    %v508 = vsel %vm475, %v505, 0
    %v511 = vsel %vm475, %v506, 0
    %513 = vmatprep.subr.mxu0 0.0
    %514 = vmatpush1.msra.mxu0 0.0
    %515 = vmatprep.subr.mxu0 0.0
    %516 = vmatpush1.msra.mxu0 0.0
    %517 = vmatprep.subr.mxu0 0.0
    %518 = vmatpush1.msra.mxu0 0.0
    %519 = vmatprep.subr.mxu0 0.0
    %520 = vmatpush1.msra.mxu0 0.0
    %521 = vmatprep.subr.mxu0 0.0
    %522 = vmatpush1.msra.mxu0 0.0
    %523 = vmatprep.subr.mxu0 0.0
    %524 = vmatpush1.msra.mxu0 0.0
    %525 = vmatprep.subr.mxu0 0.0
    %526 = vmatpush1.msra.mxu0 0.0
    %527 = vmatprep.subr.mxu0 0.0
    %528 = vmatpush1.msra.mxu0 0.0
    %529 = vmatprep.subr.mxu0 0.0
    %530 = vmatpush1.msra.mxu0 %v133
    %531 = vmatprep.subr.mxu0 0.0
    %532 = vmatpush1.msra.mxu0 %v132
    %533 = vmatprep.subr.mxu0 0.0
    %534 = vmatpush1.msra.mxu0 %v131
    %535 = vmatprep.subr.mxu0 0.0
    %536 = vmatpush1.msra.mxu0 %v130
    %537 = vmatprep.subr.mxu0 0.0
    %538 = vmatpush1.msra.mxu0 %v129
    %539 = vmatprep.subr.mxu0 0.0
    %540 = vmatpush1.msra.mxu0 %v128
    %541 = vmatprep.subr.mxu0 0.0
    %542 = vmatpush1.msra.mxu0 %v127
    %543 = vmatprep.subr.mxu0 0.0
    %544 = vmatpush1.msra.mxu0 %v126
    %545 = vmatprep.subr.mxu0 0.0
    %546 = vmatpush2.msra.mxu0 0.0
    %547 = vmatprep.subr.mxu0 0.0
    %548 = vmatpush2.msra.mxu0 0.0
    %549 = vmatprep.subr.mxu0 0.0
    %550 = vmatpush2.msra.mxu0 0.0
    %551 = vmatprep.subr.mxu0 0.0
    %552 = vmatpush2.msra.mxu0 0.0
    %553 = vmatprep.subr.mxu0 0.0
    %554 = vmatpush2.msra.mxu0 0.0
    %555 = vmatprep.subr.mxu0 0.0
    %556 = vmatpush2.msra.mxu0 0.0
    %557 = vmatprep.subr.mxu0 0.0
    %558 = vmatpush2.msra.mxu0 0.0
    %559 = vmatprep.subr.mxu0 0.0
    %560 = vmatpush2.msra.mxu0 0.0
    %561 = vmatprep.subr.mxu0 0.0
    %562 = vmatpush2.msra.mxu0 0.0
    %563 = vmatprep.subr.mxu0 0.0
    %564 = vmatpush2.msra.mxu0 0.0
    %565 = vmatprep.subr.mxu0 0.0
    %566 = vmatpush2.msra.mxu0 0.0
    %567 = vmatprep.subr.mxu0 0.0
    %568 = vmatpush2.msra.mxu0 0.0
    %569 = vmatprep.subr.mxu0 0.0
    %570 = vmatpush2.msra.mxu0 0.0
    %571 = vmatprep.subr.mxu0 0.0
    %572 = vmatpush2.msra.mxu0 0.0
    %573 = vmatprep.subr.mxu0 0.0
    %574 = vmatpush2.msra.mxu0 0.0
    %575 = vmatprep.subr.mxu0 0.0
    %576 = vmatpush2.msra.mxu0 0.0
    %577 = vmatprep.mubr.f32.mxu0 0.0
    %578 = vmatmul.mubr.f32.gmra.mxu0 %v508
    %v579 = vpop.f32.mrf.mxu0
    %v580 = vadd.f32 %v68, %v579
    %v581 = vpop.f32.mrf.mxu0
    %582 = vmatprep.mubr.f32.mxu0 0.0
    %583 = vmatmul.mubr.f32.gmra.mxu0 %v511
    %v584 = vpop.f32.mrf.mxu0
    %v585 = vadd.f32 %v68, %v584
    %v586 = vpop.f32.mrf.mxu0
    %587 = vdwg.mxu0
    %v588 = vlaneseq
    %v589 = vshrl.u32 %v588, 7
    %v590 = vadd.s32 %v589, 8
    %v591 = vlaneseq
    %v592 = vand.u32 %v591, 127
    %v593 = vshra.s32 %v589, 3
    %v594 = vshra.s32 %v590, 3
    %v595 = vshra.s32 %v592, 4
    %vm596 = vcmp.eq.s32.totalorder %v593, %v595
    %vm597 = vcmp.eq.s32.totalorder %v594, %v595
    %v598 = vsel %vm596, 0.0, -1e+30
    %v599 = vsel %vm597, 0.0, -1e+30
    %vm600 = vcmask 64512
    %v602 = vsel %vm600, %v580, 0
    %v605 = vsel %vm600, %v585, 0
    %v608 = vsel %vm600, %v471, 0
    %v611 = vsel %vm600, %v472, 0
    %v614 = vsel %vm600, %v473, 0
    %v617 = vsel %vm600, %v474, 0
    %619 = vmatprep.subr.mxu0 0.0
    %620 = vmatpush1.xpose.msra.mxu0 0.0
    %621 = vmatprep.subr.mxu0 0.0
    %622 = vmatpush1.xpose.msra.mxu0 0.0
    %623 = vmatprep.subr.mxu0 0.0
    %624 = vmatpush1.xpose.msra.mxu0 0.0
    %625 = vmatprep.subr.mxu0 0.0
    %626 = vmatpush1.xpose.msra.mxu0 0.0
    %627 = vmatprep.subr.mxu0 0.0
    %628 = vmatpush1.xpose.msra.mxu0 0.0
    %629 = vmatprep.subr.mxu0 0.0
    %630 = vmatpush1.xpose.msra.mxu0 0.0
    %631 = vmatprep.subr.mxu0 0.0
    %632 = vmatpush1.xpose.msra.mxu0 0.0
    %633 = vmatprep.subr.mxu0 0.0
    %634 = vmatpush1.xpose.msra.mxu0 0.0
    %635 = vmatprep.subr.mxu0 0.0
    %636 = vmatpush1.xpose.msra.mxu0 0.0
    %637 = vmatprep.subr.mxu0 0.0
    %638 = vmatpush1.xpose.msra.mxu0 0.0
    %639 = vmatprep.subr.mxu0 0.0
    %640 = vmatpush1.xpose.msra.mxu0 0.0
    %641 = vmatprep.subr.mxu0 0.0
    %642 = vmatpush1.xpose.msra.mxu0 0.0
    %643 = vmatprep.subr.mxu0 0.0
    %644 = vmatpush1.xpose.msra.mxu0 %v617
    %645 = vmatprep.subr.mxu0 0.0
    %646 = vmatpush1.xpose.msra.mxu0 %v614
    %647 = vmatprep.subr.mxu0 0.0
    %648 = vmatpush1.xpose.msra.mxu0 %v611
    %649 = vmatprep.subr.mxu0 0.0
    %650 = vmatpush1.xpose.msra.mxu0 %v608
    %651 = vmatprep.subr.mxu0 0.0
    %652 = vmatpush2.xpose.msra.mxu0 0.0
    %653 = vmatprep.subr.mxu0 0.0
    %654 = vmatpush2.xpose.msra.mxu0 0.0
    %655 = vmatprep.subr.mxu0 0.0
    %656 = vmatpush2.xpose.msra.mxu0 0.0
    %657 = vmatprep.subr.mxu0 0.0
    %658 = vmatpush2.xpose.msra.mxu0 0.0
    %659 = vmatprep.subr.mxu0 0.0
    %660 = vmatpush2.xpose.msra.mxu0 0.0
    %661 = vmatprep.subr.mxu0 0.0
    %662 = vmatpush2.xpose.msra.mxu0 0.0
    %663 = vmatprep.subr.mxu0 0.0
    %664 = vmatpush2.xpose.msra.mxu0 0.0
    %665 = vmatprep.subr.mxu0 0.0
    %666 = vmatpush2.xpose.msra.mxu0 0.0
    %667 = vmatprep.subr.mxu0 0.0
    %668 = vmatpush2.xpose.msra.mxu0 0.0
    %669 = vmatprep.subr.mxu0 0.0
    %670 = vmatpush2.xpose.msra.mxu0 0.0
    %671 = vmatprep.subr.mxu0 0.0
    %672 = vmatpush2.xpose.msra.mxu0 0.0
    %673 = vmatprep.subr.mxu0 0.0
    %674 = vmatpush2.xpose.msra.mxu0 0.0
    %675 = vmatprep.subr.mxu0 0.0
    %676 = vmatpush2.xpose.msra.mxu0 0.0
    %677 = vmatprep.subr.mxu0 0.0
    %678 = vmatpush2.xpose.msra.mxu0 0.0
    %679 = vmatprep.subr.mxu0 0.0
    %680 = vmatpush2.xpose.msra.mxu0 0.0
    %681 = vmatprep.subr.mxu0 0.0
    %682 = vmatpush2.xpose.msra.mxu0 0.0
    %683 = vmatprep.mubr.f32.mxu0 0.0
    %684 = vmatmul.mubr.f32.gmra.mxu0 %v602
    %v685 = vpop.f32.mrf.mxu0
    %v686 = vadd.f32 %v598, %v685
    %v687 = vpop.f32.mrf.mxu0
    %688 = vmatprep.mubr.f32.mxu0 0.0
    %689 = vmatmul.mubr.f32.gmra.mxu0 %v605
    %v690 = vpop.f32.mrf.mxu0
    %v691 = vadd.f32 %v599, %v690
    %v692 = vpop.f32.mrf.mxu0
    %693 = vdwg.mxu0
    %v694 = vsel %vm134, %v686, -inf
    %695 = vmax.xlane.f32.xlu0 %v694
    %v696 = vpop.xlane.xlu0 %695
    %v697 = vsel %vm134, %v691, -inf
    %698 = vmax.xlane.f32.xlu0 %v697
    %v699 = vpop.xlane.xlu0 %698
    %v700 = vsub.f32 %v686, %v696
    %v701 = vsub.f32 %v691, %v699
    %v702 = vmul.f32 %v700, 1.442695
    %v703 = vpow.pop %v702
    %v704 = vmul.f32 %v701, 1.442695
    %v705 = vpow.pop %v704
    %v706 = vsel %vm134, %v703, 0.0
    %707 = vadd.xlane.f32.xlu0 %v706
    %v708 = vpop.xlane.xlu0 %707
    %v709 = vsel %vm134, %v705, 0.0
    %710 = vadd.xlane.f32.xlu0 %v709
    %v711 = vpop.xlane.xlu0 %710
    %v712 = vrcp.pop %v708
    %v713 = vrcp.pop %v711
    %v715 = vsel %vm134, %v703, 0
    %v718 = vsel %vm134, %v705, 0
    %720 = vmatprep.subr.mxu0 0.0
    %721 = vmatpush1.msra.mxu0 0.0
    %722 = vmatprep.subr.mxu0 0.0
    %723 = vmatpush1.msra.mxu0 0.0
    %724 = vmatprep.subr.mxu0 0.0
    %725 = vmatpush1.msra.mxu0 0.0
    %726 = vmatprep.subr.mxu0 0.0
    %727 = vmatpush1.msra.mxu0 0.0
    %728 = vmatprep.subr.mxu0 0.0
    %729 = vmatpush1.msra.mxu0 0.0
    %730 = vmatprep.subr.mxu0 0.0
    %731 = vmatpush1.msra.mxu0 0.0
    %732 = vmatprep.subr.mxu0 0.0
    %733 = vmatpush1.msra.mxu0 0.0
    %734 = vmatprep.subr.mxu0 0.0
    %735 = vmatpush1.msra.mxu0 0.0
    %736 = vmatprep.subr.mxu0 0.0
    %737 = vmatpush1.msra.mxu0 0.0
    %738 = vmatprep.subr.mxu0 0.0
    %739 = vmatpush1.msra.mxu0 0.0
    %740 = vmatprep.subr.mxu0 0.0
    %741 = vmatpush1.msra.mxu0 0.0
    %742 = vmatprep.subr.mxu0 0.0
    %743 = vmatpush1.msra.mxu0 0.0
    %744 = vmatprep.subr.mxu0 0.0
    %745 = vmatpush1.msra.mxu0 %v293
    %746 = vmatprep.subr.mxu0 0.0
    %747 = vmatpush1.msra.mxu0 %v287
    %748 = vmatprep.subr.mxu0 0.0
    %749 = vmatpush1.msra.mxu0 %v281
    %750 = vmatprep.subr.mxu0 0.0
    %751 = vmatpush1.msra.mxu0 %v275
    %752 = vmatprep.subr.mxu0 0.0
    %753 = vmatpush2.msra.mxu0 0.0
    %754 = vmatprep.subr.mxu0 0.0
    %755 = vmatpush2.msra.mxu0 0.0
    %756 = vmatprep.subr.mxu0 0.0
    %757 = vmatpush2.msra.mxu0 0.0
    %758 = vmatprep.subr.mxu0 0.0
    %759 = vmatpush2.msra.mxu0 0.0
    %760 = vmatprep.subr.mxu0 0.0
    %761 = vmatpush2.msra.mxu0 0.0
    %762 = vmatprep.subr.mxu0 0.0
    %763 = vmatpush2.msra.mxu0 0.0
    %764 = vmatprep.subr.mxu0 0.0
    %765 = vmatpush2.msra.mxu0 0.0
    %766 = vmatprep.subr.mxu0 0.0
    %767 = vmatpush2.msra.mxu0 0.0
    %768 = vmatprep.subr.mxu0 0.0
    %769 = vmatpush2.msra.mxu0 0.0
    %770 = vmatprep.subr.mxu0 0.0
    %771 = vmatpush2.msra.mxu0 0.0
    %772 = vmatprep.subr.mxu0 0.0
    %773 = vmatpush2.msra.mxu0 0.0
    %774 = vmatprep.subr.mxu0 0.0
    %775 = vmatpush2.msra.mxu0 0.0
    %776 = vmatprep.subr.mxu0 0.0
    %777 = vmatpush2.msra.mxu0 0.0
    %778 = vmatprep.subr.mxu0 0.0
    %779 = vmatpush2.msra.mxu0 0.0
    %780 = vmatprep.subr.mxu0 0.0
    %781 = vmatpush2.msra.mxu0 0.0
    %782 = vmatprep.subr.mxu0 0.0
    %783 = vmatpush2.msra.mxu0 0.0
    %784 = vmatprep.mubr.f32.mxu0 0.0
    %785 = vmatmul.mubr.f32.gmra.mxu0 %v715
    %v786 = vpop.f32.mrf.mxu0
    %v787 = vadd.f32 0.0, %v786
    %v788 = vpop.f32.mrf.mxu0
    %789 = vmatprep.mubr.f32.mxu0 0.0
    %790 = vmatmul.mubr.f32.gmra.mxu0 %v718
    %v791 = vpop.f32.mrf.mxu0
    %v792 = vadd.f32 0.0, %v791
    %v793 = vpop.f32.mrf.mxu0
    %794 = vdwg.mxu0
    %v795 = vmul.f32 %v787, %v712
    %v796 = vmul.f32 %v792, %v713
    %v797 = vadd.f32 %v795, 0.0
    %v798 = vadd.f32 %v796, 0.0
    %799 = vrot.lane.b32.xlu0 %v580, 120
    %v800 = vpop.permute.xlu0 %799
    %801 = vrot.lane.b32.xlu0 %v585, 120
    %v802 = vpop.permute.xlu0 %801
    %803 = vrot.lane.b32.xlu0 %v471, 120
    %v804 = vpop.permute.xlu0 %803
    %805 = vrot.lane.b32.xlu0 %v472, 120
    %v806 = vpop.permute.xlu0 %805
    %807 = vrot.lane.b32.xlu0 %v473, 120
    %v808 = vpop.permute.xlu0 %807
    %809 = vrot.lane.b32.xlu0 %v474, 120
    %v810 = vpop.permute.xlu0 %809
    %v811 = vsel %vm600, %v800, 0
    %v813 = vsel %vm600, %v802, 0
    %v815 = vsel %vm600, %v804, 0
    %v817 = vsel %vm600, %v806, 0
    %v819 = vsel %vm600, %v808, 0
    %v821 = vsel %vm600, %v810, 0
    %823 = vmatprep.subr.mxu0 0.0
    %824 = vmatpush1.xpose.msra.mxu0 0.0
    %825 = vmatprep.subr.mxu0 0.0
    %826 = vmatpush1.xpose.msra.mxu0 0.0
    %827 = vmatprep.subr.mxu0 0.0
    %828 = vmatpush1.xpose.msra.mxu0 0.0
    %829 = vmatprep.subr.mxu0 0.0
    %830 = vmatpush1.xpose.msra.mxu0 0.0
    %831 = vmatprep.subr.mxu0 0.0
    %832 = vmatpush1.xpose.msra.mxu0 0.0
    %833 = vmatprep.subr.mxu0 0.0
    %834 = vmatpush1.xpose.msra.mxu0 0.0
    %835 = vmatprep.subr.mxu0 0.0
    %836 = vmatpush1.xpose.msra.mxu0 0.0
    %837 = vmatprep.subr.mxu0 0.0
    %838 = vmatpush1.xpose.msra.mxu0 0.0
    %839 = vmatprep.subr.mxu0 0.0
    %840 = vmatpush1.xpose.msra.mxu0 0.0
    %841 = vmatprep.subr.mxu0 0.0
    %842 = vmatpush1.xpose.msra.mxu0 0.0
    %843 = vmatprep.subr.mxu0 0.0
    %844 = vmatpush1.xpose.msra.mxu0 0.0
    %845 = vmatprep.subr.mxu0 0.0
    %846 = vmatpush1.xpose.msra.mxu0 0.0
    %847 = vmatprep.subr.mxu0 0.0
    %848 = vmatpush1.xpose.msra.mxu0 %v821
    %849 = vmatprep.subr.mxu0 0.0
    %850 = vmatpush1.xpose.msra.mxu0 %v819
    %851 = vmatprep.subr.mxu0 0.0
    %852 = vmatpush1.xpose.msra.mxu0 %v817
    %853 = vmatprep.subr.mxu0 0.0
    %854 = vmatpush1.xpose.msra.mxu0 %v815
    %855 = vmatprep.subr.mxu0 0.0
    %856 = vmatpush2.xpose.msra.mxu0 0.0
    %857 = vmatprep.subr.mxu0 0.0
    %858 = vmatpush2.xpose.msra.mxu0 0.0
    %859 = vmatprep.subr.mxu0 0.0
    %860 = vmatpush2.xpose.msra.mxu0 0.0
    %861 = vmatprep.subr.mxu0 0.0
    %862 = vmatpush2.xpose.msra.mxu0 0.0
    %863 = vmatprep.subr.mxu0 0.0
    %864 = vmatpush2.xpose.msra.mxu0 0.0
    %865 = vmatprep.subr.mxu0 0.0
    %866 = vmatpush2.xpose.msra.mxu0 0.0
    %867 = vmatprep.subr.mxu0 0.0
    %868 = vmatpush2.xpose.msra.mxu0 0.0
    %869 = vmatprep.subr.mxu0 0.0
    %870 = vmatpush2.xpose.msra.mxu0 0.0
    %871 = vmatprep.subr.mxu0 0.0
    %872 = vmatpush2.xpose.msra.mxu0 0.0
    %873 = vmatprep.subr.mxu0 0.0
    %874 = vmatpush2.xpose.msra.mxu0 0.0
    %875 = vmatprep.subr.mxu0 0.0
    %876 = vmatpush2.xpose.msra.mxu0 0.0
    %877 = vmatprep.subr.mxu0 0.0
    %878 = vmatpush2.xpose.msra.mxu0 0.0
    %879 = vmatprep.subr.mxu0 0.0
    %880 = vmatpush2.xpose.msra.mxu0 0.0
    %881 = vmatprep.subr.mxu0 0.0
    %882 = vmatpush2.xpose.msra.mxu0 0.0
    %883 = vmatprep.subr.mxu0 0.0
    %884 = vmatpush2.xpose.msra.mxu0 0.0
    %885 = vmatprep.subr.mxu0 0.0
    %886 = vmatpush2.xpose.msra.mxu0 0.0
    %887 = vmatprep.mubr.f32.mxu0 0.0
    %888 = vmatmul.mubr.f32.gmra.mxu0 %v811
    %v889 = vpop.f32.mrf.mxu0
    %v890 = vadd.f32 %v598, %v889
    %v891 = vpop.f32.mrf.mxu0
    %892 = vmatprep.mubr.f32.mxu0 0.0
    %893 = vmatmul.mubr.f32.gmra.mxu0 %v813
    %v894 = vpop.f32.mrf.mxu0
    %v895 = vadd.f32 %v599, %v894
    %v896 = vpop.f32.mrf.mxu0
    %897 = vdwg.mxu0
    %v898 = vsel %vm134, %v890, -inf
    %899 = vmax.xlane.f32.xlu0 %v898
    %v900 = vpop.xlane.xlu0 %899
    %v901 = vsel %vm134, %v895, -inf
    %902 = vmax.xlane.f32.xlu0 %v901
    %v903 = vpop.xlane.xlu0 %902
    %v904 = vsub.f32 %v890, %v900
    %v905 = vsub.f32 %v895, %v903
    %v906 = vmul.f32 %v904, 1.442695
    %v907 = vpow.pop %v906
    %v908 = vmul.f32 %v905, 1.442695
    %v909 = vpow.pop %v908
    %v910 = vsel %vm134, %v907, 0.0
    %911 = vadd.xlane.f32.xlu0 %v910
    %v912 = vpop.xlane.xlu0 %911
    %v913 = vsel %vm134, %v909, 0.0
    %914 = vadd.xlane.f32.xlu0 %v913
    %v915 = vpop.xlane.xlu0 %914
    %v916 = vrcp.pop %v912
    %v917 = vrcp.pop %v915
    %922 = vrot.lane.b32.xlu0 %v275, 64
    %v923 = vpop.permute.xlu0 %922
    %924 = vrot.lane.b32.xlu0 %v281, 64
    %v925 = vpop.permute.xlu0 %924
    %926 = vrot.lane.b32.xlu0 %v287, 64
    %v927 = vpop.permute.xlu0 %926
    %928 = vrot.lane.b32.xlu0 %v293, 64
    %v929 = vpop.permute.xlu0 %928
    %v935 = vsel %vm134, %v907, 0
    %v938 = vsel %vm134, %v909, 0
    %940 = vmatprep.subr.mxu0 0.0
    %941 = vmatpush1.msra.mxu0 0.0
    %942 = vmatprep.subr.mxu0 0.0
    %943 = vmatpush1.msra.mxu0 0.0
    %944 = vmatprep.subr.mxu0 0.0
    %945 = vmatpush1.msra.mxu0 0.0
    %946 = vmatprep.subr.mxu0 0.0
    %947 = vmatpush1.msra.mxu0 0.0
    %948 = vmatprep.subr.mxu0 0.0
    %949 = vmatpush1.msra.mxu0 0.0
    %950 = vmatprep.subr.mxu0 0.0
    %951 = vmatpush1.msra.mxu0 0.0
    %952 = vmatprep.subr.mxu0 0.0
    %953 = vmatpush1.msra.mxu0 0.0
    %954 = vmatprep.subr.mxu0 0.0
    %955 = vmatpush1.msra.mxu0 0.0
    %956 = vmatprep.subr.mxu0 0.0
    %957 = vmatpush1.msra.mxu0 0.0
    %958 = vmatprep.subr.mxu0 0.0
    %959 = vmatpush1.msra.mxu0 0.0
    %960 = vmatprep.subr.mxu0 0.0
    %961 = vmatpush1.msra.mxu0 0.0
    %962 = vmatprep.subr.mxu0 0.0
    %963 = vmatpush1.msra.mxu0 0.0
    %964 = vmatprep.subr.mxu0 0.0
    %965 = vmatpush1.msra.mxu0 %v929
    %966 = vmatprep.subr.mxu0 0.0
    %967 = vmatpush1.msra.mxu0 %v927
    %968 = vmatprep.subr.mxu0 0.0
    %969 = vmatpush1.msra.mxu0 %v925
    %970 = vmatprep.subr.mxu0 0.0
    %971 = vmatpush1.msra.mxu0 %v923
    %972 = vmatprep.subr.mxu0 0.0
    %973 = vmatpush2.msra.mxu0 0.0
    %974 = vmatprep.subr.mxu0 0.0
    %975 = vmatpush2.msra.mxu0 0.0
    %976 = vmatprep.subr.mxu0 0.0
    %977 = vmatpush2.msra.mxu0 0.0
    %978 = vmatprep.subr.mxu0 0.0
    %979 = vmatpush2.msra.mxu0 0.0
    %980 = vmatprep.subr.mxu0 0.0
    %981 = vmatpush2.msra.mxu0 0.0
    %982 = vmatprep.subr.mxu0 0.0
    %983 = vmatpush2.msra.mxu0 0.0
    %984 = vmatprep.subr.mxu0 0.0
    %985 = vmatpush2.msra.mxu0 0.0
    %986 = vmatprep.subr.mxu0 0.0
    %987 = vmatpush2.msra.mxu0 0.0
    %988 = vmatprep.subr.mxu0 0.0
    %989 = vmatpush2.msra.mxu0 0.0
    %990 = vmatprep.subr.mxu0 0.0
    %991 = vmatpush2.msra.mxu0 0.0
    %992 = vmatprep.subr.mxu0 0.0
    %993 = vmatpush2.msra.mxu0 0.0
    %994 = vmatprep.subr.mxu0 0.0
    %995 = vmatpush2.msra.mxu0 0.0
    %996 = vmatprep.subr.mxu0 0.0
    %997 = vmatpush2.msra.mxu0 0.0
    %998 = vmatprep.subr.mxu0 0.0
    %999 = vmatpush2.msra.mxu0 0.0
    %1000 = vmatprep.subr.mxu0 0.0
    %1001 = vmatpush2.msra.mxu0 0.0
    %1002 = vmatprep.subr.mxu0 0.0
    %1003 = vmatpush2.msra.mxu0 0.0
    %1004 = vmatprep.mubr.f32.mxu0 0.0
    %1005 = vmatmul.mubr.f32.gmra.mxu0 %v935
    %v1006 = vpop.f32.mrf.mxu0
    %v1007 = vadd.f32 0.0, %v1006
    %v1008 = vpop.f32.mrf.mxu0
    %1009 = vmatprep.mubr.f32.mxu0 0.0
    %1010 = vmatmul.mubr.f32.gmra.mxu0 %v938
    %v1011 = vpop.f32.mrf.mxu0
    %v1012 = vadd.f32 0.0, %v1011
    %v1013 = vpop.f32.mrf.mxu0
    %1014 = vdwg.mxu0
    %v1015 = vmul.f32 %v1007, %v916
    %v1016 = vmul.f32 %v1012, %v917
    %v1017 = vadd.f32 %v797, %v1015
    %v1018 = vadd.f32 %v798, %v1016
    %1019 = vrot.lane.b32.xlu0 %v580, 112
    %v1020 = vpop.permute.xlu0 %1019
    %1021 = vrot.lane.b32.xlu0 %v585, 112
    %v1022 = vpop.permute.xlu0 %1021
    %1023 = vrot.lane.b32.xlu0 %v471, 112
    %v1024 = vpop.permute.xlu0 %1023
    %1025 = vrot.lane.b32.xlu0 %v472, 112
    %v1026 = vpop.permute.xlu0 %1025
    %1027 = vrot.lane.b32.xlu0 %v473, 112
    %v1028 = vpop.permute.xlu0 %1027
    %1029 = vrot.lane.b32.xlu0 %v474, 112
    %v1030 = vpop.permute.xlu0 %1029
    %v1031 = vsel %vm600, %v1020, 0
    %v1033 = vsel %vm600, %v1022, 0
    %v1035 = vsel %vm600, %v1024, 0
    %v1037 = vsel %vm600, %v1026, 0
    %v1039 = vsel %vm600, %v1028, 0
    %v1041 = vsel %vm600, %v1030, 0
    %1043 = vmatprep.subr.mxu0 0.0
    %1044 = vmatpush1.xpose.msra.mxu0 0.0
    %1045 = vmatprep.subr.mxu0 0.0
    %1046 = vmatpush1.xpose.msra.mxu0 0.0
    %1047 = vmatprep.subr.mxu0 0.0
    %1048 = vmatpush1.xpose.msra.mxu0 0.0
    %1049 = vmatprep.subr.mxu0 0.0
    %1050 = vmatpush1.xpose.msra.mxu0 0.0
    %1051 = vmatprep.subr.mxu0 0.0
    %1052 = vmatpush1.xpose.msra.mxu0 0.0
    %1053 = vmatprep.subr.mxu0 0.0
    %1054 = vmatpush1.xpose.msra.mxu0 0.0
    %1055 = vmatprep.subr.mxu0 0.0
    %1056 = vmatpush1.xpose.msra.mxu0 0.0
    %1057 = vmatprep.subr.mxu0 0.0
    %1058 = vmatpush1.xpose.msra.mxu0 0.0
    %1059 = vmatprep.subr.mxu0 0.0
    %1060 = vmatpush1.xpose.msra.mxu0 0.0
    %1061 = vmatprep.subr.mxu0 0.0
    %1062 = vmatpush1.xpose.msra.mxu0 0.0
    %1063 = vmatprep.subr.mxu0 0.0
    %1064 = vmatpush1.xpose.msra.mxu0 0.0
    %1065 = vmatprep.subr.mxu0 0.0
    %1066 = vmatpush1.xpose.msra.mxu0 0.0
    %1067 = vmatprep.subr.mxu0 0.0
    %1068 = vmatpush1.xpose.msra.mxu0 %v1041
    %1069 = vmatprep.subr.mxu0 0.0
    %1070 = vmatpush1.xpose.msra.mxu0 %v1039
    %1071 = vmatprep.subr.mxu0 0.0
    %1072 = vmatpush1.xpose.msra.mxu0 %v1037
    %1073 = vmatprep.subr.mxu0 0.0
    %1074 = vmatpush1.xpose.msra.mxu0 %v1035
    %1075 = vmatprep.subr.mxu0 0.0
    %1076 = vmatpush2.xpose.msra.mxu0 0.0
    %1077 = vmatprep.subr.mxu0 0.0
    %1078 = vmatpush2.xpose.msra.mxu0 0.0
    %1079 = vmatprep.subr.mxu0 0.0
    %1080 = vmatpush2.xpose.msra.mxu0 0.0
    %1081 = vmatprep.subr.mxu0 0.0
    %1082 = vmatpush2.xpose.msra.mxu0 0.0
    %1083 = vmatprep.subr.mxu0 0.0
    %1084 = vmatpush2.xpose.msra.mxu0 0.0
    %1085 = vmatprep.subr.mxu0 0.0
    %1086 = vmatpush2.xpose.msra.mxu0 0.0
    %1087 = vmatprep.subr.mxu0 0.0
    %1088 = vmatpush2.xpose.msra.mxu0 0.0
    %1089 = vmatprep.subr.mxu0 0.0
    %1090 = vmatpush2.xpose.msra.mxu0 0.0
    %1091 = vmatprep.subr.mxu0 0.0
    %1092 = vmatpush2.xpose.msra.mxu0 0.0
    %1093 = vmatprep.subr.mxu0 0.0
    %1094 = vmatpush2.xpose.msra.mxu0 0.0
    %1095 = vmatprep.subr.mxu0 0.0
    %1096 = vmatpush2.xpose.msra.mxu0 0.0
    %1097 = vmatprep.subr.mxu0 0.0
    %1098 = vmatpush2.xpose.msra.mxu0 0.0
    %1099 = vmatprep.subr.mxu0 0.0
    %1100 = vmatpush2.xpose.msra.mxu0 0.0
    %1101 = vmatprep.subr.mxu0 0.0
    %1102 = vmatpush2.xpose.msra.mxu0 0.0
    %1103 = vmatprep.subr.mxu0 0.0
    %1104 = vmatpush2.xpose.msra.mxu0 0.0
    %1105 = vmatprep.subr.mxu0 0.0
    %1106 = vmatpush2.xpose.msra.mxu0 0.0
    %1107 = vmatprep.mubr.f32.mxu0 0.0
    %1108 = vmatmul.mubr.f32.gmra.mxu0 %v1031
    %v1109 = vpop.f32.mrf.mxu0
    %v1110 = vadd.f32 %v598, %v1109
    %v1111 = vpop.f32.mrf.mxu0
    %1112 = vmatprep.mubr.f32.mxu0 0.0
    %1113 = vmatmul.mubr.f32.gmra.mxu0 %v1033
    %v1114 = vpop.f32.mrf.mxu0
    %v1115 = vadd.f32 %v599, %v1114
    %v1116 = vpop.f32.mrf.mxu0
    %1117 = vdwg.mxu0
    %v1118 = vsel %vm134, %v1110, -inf
    %1119 = vmax.xlane.f32.xlu0 %v1118
    %v1120 = vpop.xlane.xlu0 %1119
    %v1121 = vsel %vm134, %v1115, -inf
    %1122 = vmax.xlane.f32.xlu0 %v1121
    %v1123 = vpop.xlane.xlu0 %1122
    %v1124 = vsub.f32 %v1110, %v1120
    %v1125 = vsub.f32 %v1115, %v1123
    %v1126 = vmul.f32 %v1124, 1.442695
    %v1127 = vpow.pop %v1126
    %v1128 = vmul.f32 %v1125, 1.442695
    %v1129 = vpow.pop %v1128
    %v1130 = vsel %vm134, %v1127, 0.0
    %1131 = vadd.xlane.f32.xlu0 %v1130
    %v1132 = vpop.xlane.xlu0 %1131
    %v1133 = vsel %vm134, %v1129, 0.0
    %1134 = vadd.xlane.f32.xlu0 %v1133
    %v1135 = vpop.xlane.xlu0 %1134
    %v1136 = vrcp.pop %v1132
    %v1137 = vrcp.pop %v1135
    %v1139 = vsel %vm134, %v1127, 0
    %v1142 = vsel %vm134, %v1129, 0
    %1144 = vmatprep.subr.mxu0 0.0
    %1145 = vmatpush1.msra.mxu0 0.0
    %1146 = vmatprep.subr.mxu0 0.0
    %1147 = vmatpush1.msra.mxu0 0.0
    %1148 = vmatprep.subr.mxu0 0.0
    %1149 = vmatpush1.msra.mxu0 0.0
    %1150 = vmatprep.subr.mxu0 0.0
    %1151 = vmatpush1.msra.mxu0 0.0
    %1152 = vmatprep.subr.mxu0 0.0
    %1153 = vmatpush1.msra.mxu0 0.0
    %1154 = vmatprep.subr.mxu0 0.0
    %1155 = vmatpush1.msra.mxu0 0.0
    %1156 = vmatprep.subr.mxu0 0.0
    %1157 = vmatpush1.msra.mxu0 0.0
    %1158 = vmatprep.subr.mxu0 0.0
    %1159 = vmatpush1.msra.mxu0 0.0
    %1160 = vmatprep.subr.mxu0 0.0
    %1161 = vmatpush1.msra.mxu0 0.0
    %1162 = vmatprep.subr.mxu0 0.0
    %1163 = vmatpush1.msra.mxu0 0.0
    %1164 = vmatprep.subr.mxu0 0.0
    %1165 = vmatpush1.msra.mxu0 0.0
    %1166 = vmatprep.subr.mxu0 0.0
    %1167 = vmatpush1.msra.mxu0 0.0
    %1168 = vmatprep.subr.mxu0 0.0
    %1169 = vmatpush1.msra.mxu0 %v295
    %1170 = vmatprep.subr.mxu0 0.0
    %1171 = vmatpush1.msra.mxu0 %v289
    %1172 = vmatprep.subr.mxu0 0.0
    %1173 = vmatpush1.msra.mxu0 %v283
    %1174 = vmatprep.subr.mxu0 0.0
    %1175 = vmatpush1.msra.mxu0 %v277
    %1176 = vmatprep.subr.mxu0 0.0
    %1177 = vmatpush2.msra.mxu0 0.0
    %1178 = vmatprep.subr.mxu0 0.0
    %1179 = vmatpush2.msra.mxu0 0.0
    %1180 = vmatprep.subr.mxu0 0.0
    %1181 = vmatpush2.msra.mxu0 0.0
    %1182 = vmatprep.subr.mxu0 0.0
    %1183 = vmatpush2.msra.mxu0 0.0
    %1184 = vmatprep.subr.mxu0 0.0
    %1185 = vmatpush2.msra.mxu0 0.0
    %1186 = vmatprep.subr.mxu0 0.0
    %1187 = vmatpush2.msra.mxu0 0.0
    %1188 = vmatprep.subr.mxu0 0.0
    %1189 = vmatpush2.msra.mxu0 0.0
    %1190 = vmatprep.subr.mxu0 0.0
    %1191 = vmatpush2.msra.mxu0 0.0
    %1192 = vmatprep.subr.mxu0 0.0
    %1193 = vmatpush2.msra.mxu0 0.0
    %1194 = vmatprep.subr.mxu0 0.0
    %1195 = vmatpush2.msra.mxu0 0.0
    %1196 = vmatprep.subr.mxu0 0.0
    %1197 = vmatpush2.msra.mxu0 0.0
    %1198 = vmatprep.subr.mxu0 0.0
    %1199 = vmatpush2.msra.mxu0 0.0
    %1200 = vmatprep.subr.mxu0 0.0
    %1201 = vmatpush2.msra.mxu0 0.0
    %1202 = vmatprep.subr.mxu0 0.0
    %1203 = vmatpush2.msra.mxu0 0.0
    %1204 = vmatprep.subr.mxu0 0.0
    %1205 = vmatpush2.msra.mxu0 0.0
    %1206 = vmatprep.subr.mxu0 0.0
    %1207 = vmatpush2.msra.mxu0 0.0
    %1208 = vmatprep.mubr.f32.mxu0 0.0
    %1209 = vmatmul.mubr.f32.gmra.mxu0 %v1139
    %v1210 = vpop.f32.mrf.mxu0
    %v1211 = vadd.f32 0.0, %v1210
    %v1212 = vpop.f32.mrf.mxu0
    %1213 = vmatprep.mubr.f32.mxu0 0.0
    %1214 = vmatmul.mubr.f32.gmra.mxu0 %v1142
    %v1215 = vpop.f32.mrf.mxu0
    %v1216 = vadd.f32 0.0, %v1215
    %v1217 = vpop.f32.mrf.mxu0
    %1218 = vdwg.mxu0
    %v1219 = vmul.f32 %v1211, %v1136
    %v1220 = vmul.f32 %v1216, %v1137
    %v1221 = vadd.f32 %v1017, %v1219
    %v1222 = vadd.f32 %v1018, %v1220
    %1223 = vrot.lane.b32.xlu0 %v580, 104
    %v1224 = vpop.permute.xlu0 %1223
    %1225 = vrot.lane.b32.xlu0 %v585, 104
    %v1226 = vpop.permute.xlu0 %1225
    %1227 = vrot.lane.b32.xlu0 %v471, 104
    %v1228 = vpop.permute.xlu0 %1227
    %1229 = vrot.lane.b32.xlu0 %v472, 104
    %v1230 = vpop.permute.xlu0 %1229
    %1231 = vrot.lane.b32.xlu0 %v473, 104
    %v1232 = vpop.permute.xlu0 %1231
    %1233 = vrot.lane.b32.xlu0 %v474, 104
    %v1234 = vpop.permute.xlu0 %1233
    %v1235 = vsel %vm600, %v1224, 0
    %v1237 = vsel %vm600, %v1226, 0
    %v1239 = vsel %vm600, %v1228, 0
    %v1241 = vsel %vm600, %v1230, 0
    %v1243 = vsel %vm600, %v1232, 0
    %v1245 = vsel %vm600, %v1234, 0
    %1247 = vmatprep.subr.mxu0 0.0
    %1248 = vmatpush1.xpose.msra.mxu0 0.0
    %1249 = vmatprep.subr.mxu0 0.0
    %1250 = vmatpush1.xpose.msra.mxu0 0.0
    %1251 = vmatprep.subr.mxu0 0.0
    %1252 = vmatpush1.xpose.msra.mxu0 0.0
    %1253 = vmatprep.subr.mxu0 0.0
    %1254 = vmatpush1.xpose.msra.mxu0 0.0
    %1255 = vmatprep.subr.mxu0 0.0
    %1256 = vmatpush1.xpose.msra.mxu0 0.0
    %1257 = vmatprep.subr.mxu0 0.0
    %1258 = vmatpush1.xpose.msra.mxu0 0.0
    %1259 = vmatprep.subr.mxu0 0.0
    %1260 = vmatpush1.xpose.msra.mxu0 0.0
    %1261 = vmatprep.subr.mxu0 0.0
    %1262 = vmatpush1.xpose.msra.mxu0 0.0
    %1263 = vmatprep.subr.mxu0 0.0
    %1264 = vmatpush1.xpose.msra.mxu0 0.0
    %1265 = vmatprep.subr.mxu0 0.0
    %1266 = vmatpush1.xpose.msra.mxu0 0.0
    %1267 = vmatprep.subr.mxu0 0.0
    %1268 = vmatpush1.xpose.msra.mxu0 0.0
    %1269 = vmatprep.subr.mxu0 0.0
    %1270 = vmatpush1.xpose.msra.mxu0 0.0
    %1271 = vmatprep.subr.mxu0 0.0
    %1272 = vmatpush1.xpose.msra.mxu0 %v1245
    %1273 = vmatprep.subr.mxu0 0.0
    %1274 = vmatpush1.xpose.msra.mxu0 %v1243
    %1275 = vmatprep.subr.mxu0 0.0
    %1276 = vmatpush1.xpose.msra.mxu0 %v1241
    %1277 = vmatprep.subr.mxu0 0.0
    %1278 = vmatpush1.xpose.msra.mxu0 %v1239
    %1279 = vmatprep.subr.mxu0 0.0
    %1280 = vmatpush2.xpose.msra.mxu0 0.0
    %1281 = vmatprep.subr.mxu0 0.0
    %1282 = vmatpush2.xpose.msra.mxu0 0.0
    %1283 = vmatprep.subr.mxu0 0.0
    %1284 = vmatpush2.xpose.msra.mxu0 0.0
    %1285 = vmatprep.subr.mxu0 0.0
    %1286 = vmatpush2.xpose.msra.mxu0 0.0
    %1287 = vmatprep.subr.mxu0 0.0
    %1288 = vmatpush2.xpose.msra.mxu0 0.0
    %1289 = vmatprep.subr.mxu0 0.0
    %1290 = vmatpush2.xpose.msra.mxu0 0.0
    %1291 = vmatprep.subr.mxu0 0.0
    %1292 = vmatpush2.xpose.msra.mxu0 0.0
    %1293 = vmatprep.subr.mxu0 0.0
    %1294 = vmatpush2.xpose.msra.mxu0 0.0
    %1295 = vmatprep.subr.mxu0 0.0
    %1296 = vmatpush2.xpose.msra.mxu0 0.0
    %1297 = vmatprep.subr.mxu0 0.0
    %1298 = vmatpush2.xpose.msra.mxu0 0.0
    %1299 = vmatprep.subr.mxu0 0.0
    %1300 = vmatpush2.xpose.msra.mxu0 0.0
    %1301 = vmatprep.subr.mxu0 0.0
    %1302 = vmatpush2.xpose.msra.mxu0 0.0
    %1303 = vmatprep.subr.mxu0 0.0
    %1304 = vmatpush2.xpose.msra.mxu0 0.0
    %1305 = vmatprep.subr.mxu0 0.0
    %1306 = vmatpush2.xpose.msra.mxu0 0.0
    %1307 = vmatprep.subr.mxu0 0.0
    %1308 = vmatpush2.xpose.msra.mxu0 0.0
    %1309 = vmatprep.subr.mxu0 0.0
    %1310 = vmatpush2.xpose.msra.mxu0 0.0
    %1311 = vmatprep.mubr.f32.mxu0 0.0
    %1312 = vmatmul.mubr.f32.gmra.mxu0 %v1235
    %v1313 = vpop.f32.mrf.mxu0
    %v1314 = vadd.f32 %v598, %v1313
    %v1315 = vpop.f32.mrf.mxu0
    %1316 = vmatprep.mubr.f32.mxu0 0.0
    %1317 = vmatmul.mubr.f32.gmra.mxu0 %v1237
    %v1318 = vpop.f32.mrf.mxu0
    %v1319 = vadd.f32 %v599, %v1318
    %v1320 = vpop.f32.mrf.mxu0
    %1321 = vdwg.mxu0
    %v1322 = vsel %vm134, %v1314, -inf
    %1323 = vmax.xlane.f32.xlu0 %v1322
    %v1324 = vpop.xlane.xlu0 %1323
    %v1325 = vsel %vm134, %v1319, -inf
    %1326 = vmax.xlane.f32.xlu0 %v1325
    %v1327 = vpop.xlane.xlu0 %1326
    %v1328 = vsub.f32 %v1314, %v1324
    %v1329 = vsub.f32 %v1319, %v1327
    %v1330 = vmul.f32 %v1328, 1.442695
    %v1331 = vpow.pop %v1330
    %v1332 = vmul.f32 %v1329, 1.442695
    %v1333 = vpow.pop %v1332
    %v1334 = vsel %vm134, %v1331, 0.0
    %1335 = vadd.xlane.f32.xlu0 %v1334
    %v1336 = vpop.xlane.xlu0 %1335
    %v1337 = vsel %vm134, %v1333, 0.0
    %1338 = vadd.xlane.f32.xlu0 %v1337
    %v1339 = vpop.xlane.xlu0 %1338
    %v1340 = vrcp.pop %v1336
    %v1341 = vrcp.pop %v1339
    %1346 = vrot.lane.b32.xlu0 %v277, 64
    %v1347 = vpop.permute.xlu0 %1346
    %1348 = vrot.lane.b32.xlu0 %v283, 64
    %v1349 = vpop.permute.xlu0 %1348
    %1350 = vrot.lane.b32.xlu0 %v289, 64
    %v1351 = vpop.permute.xlu0 %1350
    %1352 = vrot.lane.b32.xlu0 %v295, 64
    %v1353 = vpop.permute.xlu0 %1352
    %v1359 = vsel %vm134, %v1331, 0
    %v1362 = vsel %vm134, %v1333, 0
    %1364 = vmatprep.subr.mxu0 0.0
    %1365 = vmatpush1.msra.mxu0 0.0
    %1366 = vmatprep.subr.mxu0 0.0
    %1367 = vmatpush1.msra.mxu0 0.0
    %1368 = vmatprep.subr.mxu0 0.0
    %1369 = vmatpush1.msra.mxu0 0.0
    %1370 = vmatprep.subr.mxu0 0.0
    %1371 = vmatpush1.msra.mxu0 0.0
    %1372 = vmatprep.subr.mxu0 0.0
    %1373 = vmatpush1.msra.mxu0 0.0
    %1374 = vmatprep.subr.mxu0 0.0
    %1375 = vmatpush1.msra.mxu0 0.0
    %1376 = vmatprep.subr.mxu0 0.0
    %1377 = vmatpush1.msra.mxu0 0.0
    %1378 = vmatprep.subr.mxu0 0.0
    %1379 = vmatpush1.msra.mxu0 0.0
    %1380 = vmatprep.subr.mxu0 0.0
    %1381 = vmatpush1.msra.mxu0 0.0
    %1382 = vmatprep.subr.mxu0 0.0
    %1383 = vmatpush1.msra.mxu0 0.0
    %1384 = vmatprep.subr.mxu0 0.0
    %1385 = vmatpush1.msra.mxu0 0.0
    %1386 = vmatprep.subr.mxu0 0.0
    %1387 = vmatpush1.msra.mxu0 0.0
    %1388 = vmatprep.subr.mxu0 0.0
    %1389 = vmatpush1.msra.mxu0 %v1353
    %1390 = vmatprep.subr.mxu0 0.0
    %1391 = vmatpush1.msra.mxu0 %v1351
    %1392 = vmatprep.subr.mxu0 0.0
    %1393 = vmatpush1.msra.mxu0 %v1349
    %1394 = vmatprep.subr.mxu0 0.0
    %1395 = vmatpush1.msra.mxu0 %v1347
    %1396 = vmatprep.subr.mxu0 0.0
    %1397 = vmatpush2.msra.mxu0 0.0
    %1398 = vmatprep.subr.mxu0 0.0
    %1399 = vmatpush2.msra.mxu0 0.0
    %1400 = vmatprep.subr.mxu0 0.0
    %1401 = vmatpush2.msra.mxu0 0.0
    %1402 = vmatprep.subr.mxu0 0.0
    %1403 = vmatpush2.msra.mxu0 0.0
    %1404 = vmatprep.subr.mxu0 0.0
    %1405 = vmatpush2.msra.mxu0 0.0
    %1406 = vmatprep.subr.mxu0 0.0
    %1407 = vmatpush2.msra.mxu0 0.0
    %1408 = vmatprep.subr.mxu0 0.0
    %1409 = vmatpush2.msra.mxu0 0.0
    %1410 = vmatprep.subr.mxu0 0.0
    %1411 = vmatpush2.msra.mxu0 0.0
    %1412 = vmatprep.subr.mxu0 0.0
    %1413 = vmatpush2.msra.mxu0 0.0
    %1414 = vmatprep.subr.mxu0 0.0
    %1415 = vmatpush2.msra.mxu0 0.0
    %1416 = vmatprep.subr.mxu0 0.0
    %1417 = vmatpush2.msra.mxu0 0.0
    %1418 = vmatprep.subr.mxu0 0.0
    %1419 = vmatpush2.msra.mxu0 0.0
    %1420 = vmatprep.subr.mxu0 0.0
    %1421 = vmatpush2.msra.mxu0 0.0
    %1422 = vmatprep.subr.mxu0 0.0
    %1423 = vmatpush2.msra.mxu0 0.0
    %1424 = vmatprep.subr.mxu0 0.0
    %1425 = vmatpush2.msra.mxu0 0.0
    %1426 = vmatprep.subr.mxu0 0.0
    %1427 = vmatpush2.msra.mxu0 0.0
    %1428 = vmatprep.mubr.f32.mxu0 0.0
    %1429 = vmatmul.mubr.f32.gmra.mxu0 %v1359
    %v1430 = vpop.f32.mrf.mxu0
    %v1431 = vadd.f32 0.0, %v1430
    %v1432 = vpop.f32.mrf.mxu0
    %1433 = vmatprep.mubr.f32.mxu0 0.0
    %1434 = vmatmul.mubr.f32.gmra.mxu0 %v1362
    %v1435 = vpop.f32.mrf.mxu0
    %v1436 = vadd.f32 0.0, %v1435
    %v1437 = vpop.f32.mrf.mxu0
    %1438 = vdwg.mxu0
    %v1439 = vmul.f32 %v1431, %v1340
    %v1440 = vmul.f32 %v1436, %v1341
    %v1441 = vadd.f32 %v1221, %v1439
    %v1442 = vadd.f32 %v1222, %v1440
    %1443 = vrot.lane.b32.xlu0 %v580, 96
    %v1444 = vpop.permute.xlu0 %1443
    %1445 = vrot.lane.b32.xlu0 %v585, 96
    %v1446 = vpop.permute.xlu0 %1445
    %1447 = vrot.lane.b32.xlu0 %v471, 96
    %v1448 = vpop.permute.xlu0 %1447
    %1449 = vrot.lane.b32.xlu0 %v472, 96
    %v1450 = vpop.permute.xlu0 %1449
    %1451 = vrot.lane.b32.xlu0 %v473, 96
    %v1452 = vpop.permute.xlu0 %1451
    %1453 = vrot.lane.b32.xlu0 %v474, 96
    %v1454 = vpop.permute.xlu0 %1453
    %v1455 = vsel %vm600, %v1444, 0
    %v1457 = vsel %vm600, %v1446, 0
    %v1459 = vsel %vm600, %v1448, 0
    %v1461 = vsel %vm600, %v1450, 0
    %v1463 = vsel %vm600, %v1452, 0
    %v1465 = vsel %vm600, %v1454, 0
    %1467 = vmatprep.subr.mxu0 0.0
    %1468 = vmatpush1.xpose.msra.mxu0 0.0
    %1469 = vmatprep.subr.mxu0 0.0
    %1470 = vmatpush1.xpose.msra.mxu0 0.0
    %1471 = vmatprep.subr.mxu0 0.0
    %1472 = vmatpush1.xpose.msra.mxu0 0.0
    %1473 = vmatprep.subr.mxu0 0.0
    %1474 = vmatpush1.xpose.msra.mxu0 0.0
    %1475 = vmatprep.subr.mxu0 0.0
    %1476 = vmatpush1.xpose.msra.mxu0 0.0
    %1477 = vmatprep.subr.mxu0 0.0
    %1478 = vmatpush1.xpose.msra.mxu0 0.0
    %1479 = vmatprep.subr.mxu0 0.0
    %1480 = vmatpush1.xpose.msra.mxu0 0.0
    %1481 = vmatprep.subr.mxu0 0.0
    %1482 = vmatpush1.xpose.msra.mxu0 0.0
    %1483 = vmatprep.subr.mxu0 0.0
    %1484 = vmatpush1.xpose.msra.mxu0 0.0
    %1485 = vmatprep.subr.mxu0 0.0
    %1486 = vmatpush1.xpose.msra.mxu0 0.0
    %1487 = vmatprep.subr.mxu0 0.0
    %1488 = vmatpush1.xpose.msra.mxu0 0.0
    %1489 = vmatprep.subr.mxu0 0.0
    %1490 = vmatpush1.xpose.msra.mxu0 0.0
    %1491 = vmatprep.subr.mxu0 0.0
    %1492 = vmatpush1.xpose.msra.mxu0 %v1465
    %1493 = vmatprep.subr.mxu0 0.0
    %1494 = vmatpush1.xpose.msra.mxu0 %v1463
    %1495 = vmatprep.subr.mxu0 0.0
    %1496 = vmatpush1.xpose.msra.mxu0 %v1461
    %1497 = vmatprep.subr.mxu0 0.0
    %1498 = vmatpush1.xpose.msra.mxu0 %v1459
    %1499 = vmatprep.subr.mxu0 0.0
    %1500 = vmatpush2.xpose.msra.mxu0 0.0
    %1501 = vmatprep.subr.mxu0 0.0
    %1502 = vmatpush2.xpose.msra.mxu0 0.0
    %1503 = vmatprep.subr.mxu0 0.0
    %1504 = vmatpush2.xpose.msra.mxu0 0.0
    %1505 = vmatprep.subr.mxu0 0.0
    %1506 = vmatpush2.xpose.msra.mxu0 0.0
    %1507 = vmatprep.subr.mxu0 0.0
    %1508 = vmatpush2.xpose.msra.mxu0 0.0
    %1509 = vmatprep.subr.mxu0 0.0
    %1510 = vmatpush2.xpose.msra.mxu0 0.0
    %1511 = vmatprep.subr.mxu0 0.0
    %1512 = vmatpush2.xpose.msra.mxu0 0.0
    %1513 = vmatprep.subr.mxu0 0.0
    %1514 = vmatpush2.xpose.msra.mxu0 0.0
    %1515 = vmatprep.subr.mxu0 0.0
    %1516 = vmatpush2.xpose.msra.mxu0 0.0
    %1517 = vmatprep.subr.mxu0 0.0
    %1518 = vmatpush2.xpose.msra.mxu0 0.0
    %1519 = vmatprep.subr.mxu0 0.0
    %1520 = vmatpush2.xpose.msra.mxu0 0.0
    %1521 = vmatprep.subr.mxu0 0.0
    %1522 = vmatpush2.xpose.msra.mxu0 0.0
    %1523 = vmatprep.subr.mxu0 0.0
    %1524 = vmatpush2.xpose.msra.mxu0 0.0
    %1525 = vmatprep.subr.mxu0 0.0
    %1526 = vmatpush2.xpose.msra.mxu0 0.0
    %1527 = vmatprep.subr.mxu0 0.0
    %1528 = vmatpush2.xpose.msra.mxu0 0.0
    %1529 = vmatprep.subr.mxu0 0.0
    %1530 = vmatpush2.xpose.msra.mxu0 0.0
    %1531 = vmatprep.mubr.f32.mxu0 0.0
    %1532 = vmatmul.mubr.f32.gmra.mxu0 %v1455
    %v1533 = vpop.f32.mrf.mxu0
    %v1534 = vadd.f32 %v598, %v1533
    %v1535 = vpop.f32.mrf.mxu0
    %1536 = vmatprep.mubr.f32.mxu0 0.0
    %1537 = vmatmul.mubr.f32.gmra.mxu0 %v1457
    %v1538 = vpop.f32.mrf.mxu0
    %v1539 = vadd.f32 %v599, %v1538
    %v1540 = vpop.f32.mrf.mxu0
    %1541 = vdwg.mxu0
    %v1542 = vsel %vm134, %v1534, -inf
    %1543 = vmax.xlane.f32.xlu0 %v1542
    %v1544 = vpop.xlane.xlu0 %1543
    %v1545 = vsel %vm134, %v1539, -inf
    %1546 = vmax.xlane.f32.xlu0 %v1545
    %v1547 = vpop.xlane.xlu0 %1546
    %v1548 = vsub.f32 %v1534, %v1544
    %v1549 = vsub.f32 %v1539, %v1547
    %v1550 = vmul.f32 %v1548, 1.442695
    %v1551 = vpow.pop %v1550
    %v1552 = vmul.f32 %v1549, 1.442695
    %v1553 = vpow.pop %v1552
    %v1554 = vsel %vm134, %v1551, 0.0
    %1555 = vadd.xlane.f32.xlu0 %v1554
    %v1556 = vpop.xlane.xlu0 %1555
    %v1557 = vsel %vm134, %v1553, 0.0
    %1558 = vadd.xlane.f32.xlu0 %v1557
    %v1559 = vpop.xlane.xlu0 %1558
    %v1560 = vrcp.pop %v1556
    %v1561 = vrcp.pop %v1559
    %v1563 = vsel %vm134, %v1551, 0
    %v1566 = vsel %vm134, %v1553, 0
    %1568 = vmatprep.subr.mxu0 0.0
    %1569 = vmatpush1.msra.mxu0 0.0
    %1570 = vmatprep.subr.mxu0 0.0
    %1571 = vmatpush1.msra.mxu0 0.0
    %1572 = vmatprep.subr.mxu0 0.0
    %1573 = vmatpush1.msra.mxu0 0.0
    %1574 = vmatprep.subr.mxu0 0.0
    %1575 = vmatpush1.msra.mxu0 0.0
    %1576 = vmatprep.subr.mxu0 0.0
    %1577 = vmatpush1.msra.mxu0 0.0
    %1578 = vmatprep.subr.mxu0 0.0
    %1579 = vmatpush1.msra.mxu0 0.0
    %1580 = vmatprep.subr.mxu0 0.0
    %1581 = vmatpush1.msra.mxu0 0.0
    %1582 = vmatprep.subr.mxu0 0.0
    %1583 = vmatpush1.msra.mxu0 0.0
    %1584 = vmatprep.subr.mxu0 0.0
    %1585 = vmatpush1.msra.mxu0 0.0
    %1586 = vmatprep.subr.mxu0 0.0
    %1587 = vmatpush1.msra.mxu0 0.0
    %1588 = vmatprep.subr.mxu0 0.0
    %1589 = vmatpush1.msra.mxu0 0.0
    %1590 = vmatprep.subr.mxu0 0.0
    %1591 = vmatpush1.msra.mxu0 0.0
    %1592 = vmatprep.subr.mxu0 0.0
    %1593 = vmatpush1.msra.mxu0 %v382
    %1594 = vmatprep.subr.mxu0 0.0
    %1595 = vmatpush1.msra.mxu0 %v376
    %1596 = vmatprep.subr.mxu0 0.0
    %1597 = vmatpush1.msra.mxu0 %v370
    %1598 = vmatprep.subr.mxu0 0.0
    %1599 = vmatpush1.msra.mxu0 %v364
    %1600 = vmatprep.subr.mxu0 0.0
    %1601 = vmatpush2.msra.mxu0 0.0
    %1602 = vmatprep.subr.mxu0 0.0
    %1603 = vmatpush2.msra.mxu0 0.0
    %1604 = vmatprep.subr.mxu0 0.0
    %1605 = vmatpush2.msra.mxu0 0.0
    %1606 = vmatprep.subr.mxu0 0.0
    %1607 = vmatpush2.msra.mxu0 0.0
    %1608 = vmatprep.subr.mxu0 0.0
    %1609 = vmatpush2.msra.mxu0 0.0
    %1610 = vmatprep.subr.mxu0 0.0
    %1611 = vmatpush2.msra.mxu0 0.0
    %1612 = vmatprep.subr.mxu0 0.0
    %1613 = vmatpush2.msra.mxu0 0.0
    %1614 = vmatprep.subr.mxu0 0.0
    %1615 = vmatpush2.msra.mxu0 0.0
    %1616 = vmatprep.subr.mxu0 0.0
    %1617 = vmatpush2.msra.mxu0 0.0
    %1618 = vmatprep.subr.mxu0 0.0
    %1619 = vmatpush2.msra.mxu0 0.0
    %1620 = vmatprep.subr.mxu0 0.0
    %1621 = vmatpush2.msra.mxu0 0.0
    %1622 = vmatprep.subr.mxu0 0.0
    %1623 = vmatpush2.msra.mxu0 0.0
    %1624 = vmatprep.subr.mxu0 0.0
    %1625 = vmatpush2.msra.mxu0 0.0
    %1626 = vmatprep.subr.mxu0 0.0
    %1627 = vmatpush2.msra.mxu0 0.0
    %1628 = vmatprep.subr.mxu0 0.0
    %1629 = vmatpush2.msra.mxu0 0.0
    %1630 = vmatprep.subr.mxu0 0.0
    %1631 = vmatpush2.msra.mxu0 0.0
    %1632 = vmatprep.mubr.f32.mxu0 0.0
    %1633 = vmatmul.mubr.f32.gmra.mxu0 %v1563
    %v1634 = vpop.f32.mrf.mxu0
    %v1635 = vadd.f32 0.0, %v1634
    %v1636 = vpop.f32.mrf.mxu0
    %1637 = vmatprep.mubr.f32.mxu0 0.0
    %1638 = vmatmul.mubr.f32.gmra.mxu0 %v1566
    %v1639 = vpop.f32.mrf.mxu0
    %v1640 = vadd.f32 0.0, %v1639
    %v1641 = vpop.f32.mrf.mxu0
    %1642 = vdwg.mxu0
    %v1643 = vmul.f32 %v1635, %v1560
    %v1644 = vmul.f32 %v1640, %v1561
    %v1645 = vadd.f32 %v1441, %v1643
    %v1646 = vadd.f32 %v1442, %v1644
    %1647 = vrot.lane.b32.xlu0 %v580, 88
    %v1648 = vpop.permute.xlu0 %1647
    %1649 = vrot.lane.b32.xlu0 %v585, 88
    %v1650 = vpop.permute.xlu0 %1649
    %1651 = vrot.lane.b32.xlu0 %v471, 88
    %v1652 = vpop.permute.xlu0 %1651
    %1653 = vrot.lane.b32.xlu0 %v472, 88
    %v1654 = vpop.permute.xlu0 %1653
    %1655 = vrot.lane.b32.xlu0 %v473, 88
    %v1656 = vpop.permute.xlu0 %1655
    %1657 = vrot.lane.b32.xlu0 %v474, 88
    %v1658 = vpop.permute.xlu0 %1657
    %v1659 = vsel %vm600, %v1648, 0
    %v1661 = vsel %vm600, %v1650, 0
    %v1663 = vsel %vm600, %v1652, 0
    %v1665 = vsel %vm600, %v1654, 0
    %v1667 = vsel %vm600, %v1656, 0
    %v1669 = vsel %vm600, %v1658, 0
    %1671 = vmatprep.subr.mxu0 0.0
    %1672 = vmatpush1.xpose.msra.mxu0 0.0
    %1673 = vmatprep.subr.mxu0 0.0
    %1674 = vmatpush1.xpose.msra.mxu0 0.0
    %1675 = vmatprep.subr.mxu0 0.0
    %1676 = vmatpush1.xpose.msra.mxu0 0.0
    %1677 = vmatprep.subr.mxu0 0.0
    %1678 = vmatpush1.xpose.msra.mxu0 0.0
    %1679 = vmatprep.subr.mxu0 0.0
    %1680 = vmatpush1.xpose.msra.mxu0 0.0
    %1681 = vmatprep.subr.mxu0 0.0
    %1682 = vmatpush1.xpose.msra.mxu0 0.0
    %1683 = vmatprep.subr.mxu0 0.0
    %1684 = vmatpush1.xpose.msra.mxu0 0.0
    %1685 = vmatprep.subr.mxu0 0.0
    %1686 = vmatpush1.xpose.msra.mxu0 0.0
    %1687 = vmatprep.subr.mxu0 0.0
    %1688 = vmatpush1.xpose.msra.mxu0 0.0
    %1689 = vmatprep.subr.mxu0 0.0
    %1690 = vmatpush1.xpose.msra.mxu0 0.0
    %1691 = vmatprep.subr.mxu0 0.0
    %1692 = vmatpush1.xpose.msra.mxu0 0.0
    %1693 = vmatprep.subr.mxu0 0.0
    %1694 = vmatpush1.xpose.msra.mxu0 0.0
    %1695 = vmatprep.subr.mxu0 0.0
    %1696 = vmatpush1.xpose.msra.mxu0 %v1669
    %1697 = vmatprep.subr.mxu0 0.0
    %1698 = vmatpush1.xpose.msra.mxu0 %v1667
    %1699 = vmatprep.subr.mxu0 0.0
    %1700 = vmatpush1.xpose.msra.mxu0 %v1665
    %1701 = vmatprep.subr.mxu0 0.0
    %1702 = vmatpush1.xpose.msra.mxu0 %v1663
    %1703 = vmatprep.subr.mxu0 0.0
    %1704 = vmatpush2.xpose.msra.mxu0 0.0
    %1705 = vmatprep.subr.mxu0 0.0
    %1706 = vmatpush2.xpose.msra.mxu0 0.0
    %1707 = vmatprep.subr.mxu0 0.0
    %1708 = vmatpush2.xpose.msra.mxu0 0.0
    %1709 = vmatprep.subr.mxu0 0.0
    %1710 = vmatpush2.xpose.msra.mxu0 0.0
    %1711 = vmatprep.subr.mxu0 0.0
    %1712 = vmatpush2.xpose.msra.mxu0 0.0
    %1713 = vmatprep.subr.mxu0 0.0
    %1714 = vmatpush2.xpose.msra.mxu0 0.0
    %1715 = vmatprep.subr.mxu0 0.0
    %1716 = vmatpush2.xpose.msra.mxu0 0.0
    %1717 = vmatprep.subr.mxu0 0.0
    %1718 = vmatpush2.xpose.msra.mxu0 0.0
    %1719 = vmatprep.subr.mxu0 0.0
    %1720 = vmatpush2.xpose.msra.mxu0 0.0
    %1721 = vmatprep.subr.mxu0 0.0
    %1722 = vmatpush2.xpose.msra.mxu0 0.0
    %1723 = vmatprep.subr.mxu0 0.0
    %1724 = vmatpush2.xpose.msra.mxu0 0.0
    %1725 = vmatprep.subr.mxu0 0.0
    %1726 = vmatpush2.xpose.msra.mxu0 0.0
    %1727 = vmatprep.subr.mxu0 0.0
    %1728 = vmatpush2.xpose.msra.mxu0 0.0
    %1729 = vmatprep.subr.mxu0 0.0
    %1730 = vmatpush2.xpose.msra.mxu0 0.0
    %1731 = vmatprep.subr.mxu0 0.0
    %1732 = vmatpush2.xpose.msra.mxu0 0.0
    %1733 = vmatprep.subr.mxu0 0.0
    %1734 = vmatpush2.xpose.msra.mxu0 0.0
    %1735 = vmatprep.mubr.f32.mxu0 0.0
    %1736 = vmatmul.mubr.f32.gmra.mxu0 %v1659
    %v1737 = vpop.f32.mrf.mxu0
    %v1738 = vadd.f32 %v598, %v1737
    %v1739 = vpop.f32.mrf.mxu0
    %1740 = vmatprep.mubr.f32.mxu0 0.0
    %1741 = vmatmul.mubr.f32.gmra.mxu0 %v1661
    %v1742 = vpop.f32.mrf.mxu0
    %v1743 = vadd.f32 %v599, %v1742
    %v1744 = vpop.f32.mrf.mxu0
    %1745 = vdwg.mxu0
    %v1746 = vsel %vm134, %v1738, -inf
    %1747 = vmax.xlane.f32.xlu0 %v1746
    %v1748 = vpop.xlane.xlu0 %1747
    %v1749 = vsel %vm134, %v1743, -inf
    %1750 = vmax.xlane.f32.xlu0 %v1749
    %v1751 = vpop.xlane.xlu0 %1750
    %v1752 = vsub.f32 %v1738, %v1748
    %v1753 = vsub.f32 %v1743, %v1751
    %v1754 = vmul.f32 %v1752, 1.442695
    %v1755 = vpow.pop %v1754
    %v1756 = vmul.f32 %v1753, 1.442695
    %v1757 = vpow.pop %v1756
    %v1758 = vsel %vm134, %v1755, 0.0
    %1759 = vadd.xlane.f32.xlu0 %v1758
    %v1760 = vpop.xlane.xlu0 %1759
    %v1761 = vsel %vm134, %v1757, 0.0
    %1762 = vadd.xlane.f32.xlu0 %v1761
    %v1763 = vpop.xlane.xlu0 %1762
    %v1764 = vrcp.pop %v1760
    %v1765 = vrcp.pop %v1763
    %1770 = vrot.lane.b32.xlu0 %v364, 64
    %v1771 = vpop.permute.xlu0 %1770
    %1772 = vrot.lane.b32.xlu0 %v370, 64
    %v1773 = vpop.permute.xlu0 %1772
    %1774 = vrot.lane.b32.xlu0 %v376, 64
    %v1775 = vpop.permute.xlu0 %1774
    %1776 = vrot.lane.b32.xlu0 %v382, 64
    %v1777 = vpop.permute.xlu0 %1776
    %v1783 = vsel %vm134, %v1755, 0
    %v1786 = vsel %vm134, %v1757, 0
    %1788 = vmatprep.subr.mxu0 0.0
    %1789 = vmatpush1.msra.mxu0 0.0
    %1790 = vmatprep.subr.mxu0 0.0
    %1791 = vmatpush1.msra.mxu0 0.0
    %1792 = vmatprep.subr.mxu0 0.0
    %1793 = vmatpush1.msra.mxu0 0.0
    %1794 = vmatprep.subr.mxu0 0.0
    %1795 = vmatpush1.msra.mxu0 0.0
    %1796 = vmatprep.subr.mxu0 0.0
    %1797 = vmatpush1.msra.mxu0 0.0
    %1798 = vmatprep.subr.mxu0 0.0
    %1799 = vmatpush1.msra.mxu0 0.0
    %1800 = vmatprep.subr.mxu0 0.0
    %1801 = vmatpush1.msra.mxu0 0.0
    %1802 = vmatprep.subr.mxu0 0.0
    %1803 = vmatpush1.msra.mxu0 0.0
    %1804 = vmatprep.subr.mxu0 0.0
    %1805 = vmatpush1.msra.mxu0 0.0
    %1806 = vmatprep.subr.mxu0 0.0
    %1807 = vmatpush1.msra.mxu0 0.0
    %1808 = vmatprep.subr.mxu0 0.0
    %1809 = vmatpush1.msra.mxu0 0.0
    %1810 = vmatprep.subr.mxu0 0.0
    %1811 = vmatpush1.msra.mxu0 0.0
    %1812 = vmatprep.subr.mxu0 0.0
    %1813 = vmatpush1.msra.mxu0 %v1777
    %1814 = vmatprep.subr.mxu0 0.0
    %1815 = vmatpush1.msra.mxu0 %v1775
    %1816 = vmatprep.subr.mxu0 0.0
    %1817 = vmatpush1.msra.mxu0 %v1773
    %1818 = vmatprep.subr.mxu0 0.0
    %1819 = vmatpush1.msra.mxu0 %v1771
    %1820 = vmatprep.subr.mxu0 0.0
    %1821 = vmatpush2.msra.mxu0 0.0
    %1822 = vmatprep.subr.mxu0 0.0
    %1823 = vmatpush2.msra.mxu0 0.0
    %1824 = vmatprep.subr.mxu0 0.0
    %1825 = vmatpush2.msra.mxu0 0.0
    %1826 = vmatprep.subr.mxu0 0.0
    %1827 = vmatpush2.msra.mxu0 0.0
    %1828 = vmatprep.subr.mxu0 0.0
    %1829 = vmatpush2.msra.mxu0 0.0
    %1830 = vmatprep.subr.mxu0 0.0
    %1831 = vmatpush2.msra.mxu0 0.0
    %1832 = vmatprep.subr.mxu0 0.0
    %1833 = vmatpush2.msra.mxu0 0.0
    %1834 = vmatprep.subr.mxu0 0.0
    %1835 = vmatpush2.msra.mxu0 0.0
    %1836 = vmatprep.subr.mxu0 0.0
    %1837 = vmatpush2.msra.mxu0 0.0
    %1838 = vmatprep.subr.mxu0 0.0
    %1839 = vmatpush2.msra.mxu0 0.0
    %1840 = vmatprep.subr.mxu0 0.0
    %1841 = vmatpush2.msra.mxu0 0.0
    %1842 = vmatprep.subr.mxu0 0.0
    %1843 = vmatpush2.msra.mxu0 0.0
    %1844 = vmatprep.subr.mxu0 0.0
    %1845 = vmatpush2.msra.mxu0 0.0
    %1846 = vmatprep.subr.mxu0 0.0
    %1847 = vmatpush2.msra.mxu0 0.0
    %1848 = vmatprep.subr.mxu0 0.0
    %1849 = vmatpush2.msra.mxu0 0.0
    %1850 = vmatprep.subr.mxu0 0.0
    %1851 = vmatpush2.msra.mxu0 0.0
    %1852 = vmatprep.mubr.f32.mxu0 0.0
    %1853 = vmatmul.mubr.f32.gmra.mxu0 %v1783
    %v1854 = vpop.f32.mrf.mxu0
    %v1855 = vadd.f32 0.0, %v1854
    %v1856 = vpop.f32.mrf.mxu0
    %1857 = vmatprep.mubr.f32.mxu0 0.0
    %1858 = vmatmul.mubr.f32.gmra.mxu0 %v1786
    %v1859 = vpop.f32.mrf.mxu0
    %v1860 = vadd.f32 0.0, %v1859
    %v1861 = vpop.f32.mrf.mxu0
    %1862 = vdwg.mxu0
    %v1863 = vmul.f32 %v1855, %v1764
    %v1864 = vmul.f32 %v1860, %v1765
    %v1865 = vadd.f32 %v1645, %v1863
    %v1866 = vadd.f32 %v1646, %v1864
    %1867 = vrot.lane.b32.xlu0 %v580, 80
    %v1868 = vpop.permute.xlu0 %1867
    %1869 = vrot.lane.b32.xlu0 %v585, 80
    %v1870 = vpop.permute.xlu0 %1869
    %1871 = vrot.lane.b32.xlu0 %v471, 80
    %v1872 = vpop.permute.xlu0 %1871
    %1873 = vrot.lane.b32.xlu0 %v472, 80
    %v1874 = vpop.permute.xlu0 %1873
    %1875 = vrot.lane.b32.xlu0 %v473, 80
    %v1876 = vpop.permute.xlu0 %1875
    %1877 = vrot.lane.b32.xlu0 %v474, 80
    %v1878 = vpop.permute.xlu0 %1877
    %v1879 = vsel %vm600, %v1868, 0
    %v1881 = vsel %vm600, %v1870, 0
    %v1883 = vsel %vm600, %v1872, 0
    %v1885 = vsel %vm600, %v1874, 0
    %v1887 = vsel %vm600, %v1876, 0
    %v1889 = vsel %vm600, %v1878, 0
    %1891 = vmatprep.subr.mxu0 0.0
    %1892 = vmatpush1.xpose.msra.mxu0 0.0
    %1893 = vmatprep.subr.mxu0 0.0
    %1894 = vmatpush1.xpose.msra.mxu0 0.0
    %1895 = vmatprep.subr.mxu0 0.0
    %1896 = vmatpush1.xpose.msra.mxu0 0.0
    %1897 = vmatprep.subr.mxu0 0.0
    %1898 = vmatpush1.xpose.msra.mxu0 0.0
    %1899 = vmatprep.subr.mxu0 0.0
    %1900 = vmatpush1.xpose.msra.mxu0 0.0
    %1901 = vmatprep.subr.mxu0 0.0
    %1902 = vmatpush1.xpose.msra.mxu0 0.0
    %1903 = vmatprep.subr.mxu0 0.0
    %1904 = vmatpush1.xpose.msra.mxu0 0.0
    %1905 = vmatprep.subr.mxu0 0.0
    %1906 = vmatpush1.xpose.msra.mxu0 0.0
    %1907 = vmatprep.subr.mxu0 0.0
    %1908 = vmatpush1.xpose.msra.mxu0 0.0
    %1909 = vmatprep.subr.mxu0 0.0
    %1910 = vmatpush1.xpose.msra.mxu0 0.0
    %1911 = vmatprep.subr.mxu0 0.0
    %1912 = vmatpush1.xpose.msra.mxu0 0.0
    %1913 = vmatprep.subr.mxu0 0.0
    %1914 = vmatpush1.xpose.msra.mxu0 0.0
    %1915 = vmatprep.subr.mxu0 0.0
    %1916 = vmatpush1.xpose.msra.mxu0 %v1889
    %1917 = vmatprep.subr.mxu0 0.0
    %1918 = vmatpush1.xpose.msra.mxu0 %v1887
    %1919 = vmatprep.subr.mxu0 0.0
    %1920 = vmatpush1.xpose.msra.mxu0 %v1885
    %1921 = vmatprep.subr.mxu0 0.0
    %1922 = vmatpush1.xpose.msra.mxu0 %v1883
    %1923 = vmatprep.subr.mxu0 0.0
    %1924 = vmatpush2.xpose.msra.mxu0 0.0
    %1925 = vmatprep.subr.mxu0 0.0
    %1926 = vmatpush2.xpose.msra.mxu0 0.0
    %1927 = vmatprep.subr.mxu0 0.0
    %1928 = vmatpush2.xpose.msra.mxu0 0.0
    %1929 = vmatprep.subr.mxu0 0.0
    %1930 = vmatpush2.xpose.msra.mxu0 0.0
    %1931 = vmatprep.subr.mxu0 0.0
    %1932 = vmatpush2.xpose.msra.mxu0 0.0
    %1933 = vmatprep.subr.mxu0 0.0
    %1934 = vmatpush2.xpose.msra.mxu0 0.0
    %1935 = vmatprep.subr.mxu0 0.0
    %1936 = vmatpush2.xpose.msra.mxu0 0.0
    %1937 = vmatprep.subr.mxu0 0.0
    %1938 = vmatpush2.xpose.msra.mxu0 0.0
    %1939 = vmatprep.subr.mxu0 0.0
    %1940 = vmatpush2.xpose.msra.mxu0 0.0
    %1941 = vmatprep.subr.mxu0 0.0
    %1942 = vmatpush2.xpose.msra.mxu0 0.0
    %1943 = vmatprep.subr.mxu0 0.0
    %1944 = vmatpush2.xpose.msra.mxu0 0.0
    %1945 = vmatprep.subr.mxu0 0.0
    %1946 = vmatpush2.xpose.msra.mxu0 0.0
    %1947 = vmatprep.subr.mxu0 0.0
    %1948 = vmatpush2.xpose.msra.mxu0 0.0
    %1949 = vmatprep.subr.mxu0 0.0
    %1950 = vmatpush2.xpose.msra.mxu0 0.0
    %1951 = vmatprep.subr.mxu0 0.0
    %1952 = vmatpush2.xpose.msra.mxu0 0.0
    %1953 = vmatprep.subr.mxu0 0.0
    %1954 = vmatpush2.xpose.msra.mxu0 0.0
    %1955 = vmatprep.mubr.f32.mxu0 0.0
    %1956 = vmatmul.mubr.f32.gmra.mxu0 %v1879
    %v1957 = vpop.f32.mrf.mxu0
    %v1958 = vadd.f32 %v598, %v1957
    %v1959 = vpop.f32.mrf.mxu0
    %1960 = vmatprep.mubr.f32.mxu0 0.0
    %1961 = vmatmul.mubr.f32.gmra.mxu0 %v1881
    %v1962 = vpop.f32.mrf.mxu0
    %v1963 = vadd.f32 %v599, %v1962
    %v1964 = vpop.f32.mrf.mxu0
    %1965 = vdwg.mxu0
    %v1966 = vsel %vm134, %v1958, -inf
    %1967 = vmax.xlane.f32.xlu0 %v1966
    %v1968 = vpop.xlane.xlu0 %1967
    %v1969 = vsel %vm134, %v1963, -inf
    %1970 = vmax.xlane.f32.xlu0 %v1969
    %v1971 = vpop.xlane.xlu0 %1970
    %v1972 = vsub.f32 %v1958, %v1968
    %v1973 = vsub.f32 %v1963, %v1971
    %v1974 = vmul.f32 %v1972, 1.442695
    %v1975 = vpow.pop %v1974
    %v1976 = vmul.f32 %v1973, 1.442695
    %v1977 = vpow.pop %v1976
    %v1978 = vsel %vm134, %v1975, 0.0
    %1979 = vadd.xlane.f32.xlu0 %v1978
    %v1980 = vpop.xlane.xlu0 %1979
    %v1981 = vsel %vm134, %v1977, 0.0
    %1982 = vadd.xlane.f32.xlu0 %v1981
    %v1983 = vpop.xlane.xlu0 %1982
    %v1984 = vrcp.pop %v1980
    %v1985 = vrcp.pop %v1983
    %v1987 = vsel %vm134, %v1975, 0
    %v1990 = vsel %vm134, %v1977, 0
    %1992 = vmatprep.subr.mxu0 0.0
    %1993 = vmatpush1.msra.mxu0 0.0
    %1994 = vmatprep.subr.mxu0 0.0
    %1995 = vmatpush1.msra.mxu0 0.0
    %1996 = vmatprep.subr.mxu0 0.0
    %1997 = vmatpush1.msra.mxu0 0.0
    %1998 = vmatprep.subr.mxu0 0.0
    %1999 = vmatpush1.msra.mxu0 0.0
    %2000 = vmatprep.subr.mxu0 0.0
    %2001 = vmatpush1.msra.mxu0 0.0
    %2002 = vmatprep.subr.mxu0 0.0
    %2003 = vmatpush1.msra.mxu0 0.0
    %2004 = vmatprep.subr.mxu0 0.0
    %2005 = vmatpush1.msra.mxu0 0.0
    %2006 = vmatprep.subr.mxu0 0.0
    %2007 = vmatpush1.msra.mxu0 0.0
    %2008 = vmatprep.subr.mxu0 0.0
    %2009 = vmatpush1.msra.mxu0 0.0
    %2010 = vmatprep.subr.mxu0 0.0
    %2011 = vmatpush1.msra.mxu0 0.0
    %2012 = vmatprep.subr.mxu0 0.0
    %2013 = vmatpush1.msra.mxu0 0.0
    %2014 = vmatprep.subr.mxu0 0.0
    %2015 = vmatpush1.msra.mxu0 0.0
    %2016 = vmatprep.subr.mxu0 0.0
    %2017 = vmatpush1.msra.mxu0 %v384
    %2018 = vmatprep.subr.mxu0 0.0
    %2019 = vmatpush1.msra.mxu0 %v378
    %2020 = vmatprep.subr.mxu0 0.0
    %2021 = vmatpush1.msra.mxu0 %v372
    %2022 = vmatprep.subr.mxu0 0.0
    %2023 = vmatpush1.msra.mxu0 %v366
    %2024 = vmatprep.subr.mxu0 0.0
    %2025 = vmatpush2.msra.mxu0 0.0
    %2026 = vmatprep.subr.mxu0 0.0
    %2027 = vmatpush2.msra.mxu0 0.0
    %2028 = vmatprep.subr.mxu0 0.0
    %2029 = vmatpush2.msra.mxu0 0.0
    %2030 = vmatprep.subr.mxu0 0.0
    %2031 = vmatpush2.msra.mxu0 0.0
    %2032 = vmatprep.subr.mxu0 0.0
    %2033 = vmatpush2.msra.mxu0 0.0
    %2034 = vmatprep.subr.mxu0 0.0
    %2035 = vmatpush2.msra.mxu0 0.0
    %2036 = vmatprep.subr.mxu0 0.0
    %2037 = vmatpush2.msra.mxu0 0.0
    %2038 = vmatprep.subr.mxu0 0.0
    %2039 = vmatpush2.msra.mxu0 0.0
    %2040 = vmatprep.subr.mxu0 0.0
    %2041 = vmatpush2.msra.mxu0 0.0
    %2042 = vmatprep.subr.mxu0 0.0
    %2043 = vmatpush2.msra.mxu0 0.0
    %2044 = vmatprep.subr.mxu0 0.0
    %2045 = vmatpush2.msra.mxu0 0.0
    %2046 = vmatprep.subr.mxu0 0.0
    %2047 = vmatpush2.msra.mxu0 0.0
    %2048 = vmatprep.subr.mxu0 0.0
    %2049 = vmatpush2.msra.mxu0 0.0
    %2050 = vmatprep.subr.mxu0 0.0
    %2051 = vmatpush2.msra.mxu0 0.0
    %2052 = vmatprep.subr.mxu0 0.0
    %2053 = vmatpush2.msra.mxu0 0.0
    %2054 = vmatprep.subr.mxu0 0.0
    %2055 = vmatpush2.msra.mxu0 0.0
    %2056 = vmatprep.mubr.f32.mxu0 0.0
    %2057 = vmatmul.mubr.f32.gmra.mxu0 %v1987
    %v2058 = vpop.f32.mrf.mxu0
    %v2059 = vadd.f32 0.0, %v2058
    %v2060 = vpop.f32.mrf.mxu0
    %2061 = vmatprep.mubr.f32.mxu0 0.0
    %2062 = vmatmul.mubr.f32.gmra.mxu0 %v1990
    %v2063 = vpop.f32.mrf.mxu0
    %v2064 = vadd.f32 0.0, %v2063
    %v2065 = vpop.f32.mrf.mxu0
    %2066 = vdwg.mxu0
    %v2067 = vmul.f32 %v2059, %v1984
    %v2068 = vmul.f32 %v2064, %v1985
    %v2069 = vadd.f32 %v1865, %v2067
    %v2070 = vadd.f32 %v1866, %v2068
    %2071 = vrot.lane.b32.xlu0 %v580, 72
    %v2072 = vpop.permute.xlu0 %2071
    %2073 = vrot.lane.b32.xlu0 %v585, 72
    %v2074 = vpop.permute.xlu0 %2073
    %2075 = vrot.lane.b32.xlu0 %v471, 72
    %v2076 = vpop.permute.xlu0 %2075
    %2077 = vrot.lane.b32.xlu0 %v472, 72
    %v2078 = vpop.permute.xlu0 %2077
    %2079 = vrot.lane.b32.xlu0 %v473, 72
    %v2080 = vpop.permute.xlu0 %2079
    %2081 = vrot.lane.b32.xlu0 %v474, 72
    %v2082 = vpop.permute.xlu0 %2081
    %v2083 = vsel %vm600, %v2072, 0
    %v2085 = vsel %vm600, %v2074, 0
    %v2087 = vsel %vm600, %v2076, 0
    %v2089 = vsel %vm600, %v2078, 0
    %v2091 = vsel %vm600, %v2080, 0
    %v2093 = vsel %vm600, %v2082, 0
    %2095 = vmatprep.subr.mxu0 0.0
    %2096 = vmatpush1.xpose.msra.mxu0 0.0
    %2097 = vmatprep.subr.mxu0 0.0
    %2098 = vmatpush1.xpose.msra.mxu0 0.0
    %2099 = vmatprep.subr.mxu0 0.0
    %2100 = vmatpush1.xpose.msra.mxu0 0.0
    %2101 = vmatprep.subr.mxu0 0.0
    %2102 = vmatpush1.xpose.msra.mxu0 0.0
    %2103 = vmatprep.subr.mxu0 0.0
    %2104 = vmatpush1.xpose.msra.mxu0 0.0
    %2105 = vmatprep.subr.mxu0 0.0
    %2106 = vmatpush1.xpose.msra.mxu0 0.0
    %2107 = vmatprep.subr.mxu0 0.0
    %2108 = vmatpush1.xpose.msra.mxu0 0.0
    %2109 = vmatprep.subr.mxu0 0.0
    %2110 = vmatpush1.xpose.msra.mxu0 0.0
    %2111 = vmatprep.subr.mxu0 0.0
    %2112 = vmatpush1.xpose.msra.mxu0 0.0
    %2113 = vmatprep.subr.mxu0 0.0
    %2114 = vmatpush1.xpose.msra.mxu0 0.0
    %2115 = vmatprep.subr.mxu0 0.0
    %2116 = vmatpush1.xpose.msra.mxu0 0.0
    %2117 = vmatprep.subr.mxu0 0.0
    %2118 = vmatpush1.xpose.msra.mxu0 0.0
    %2119 = vmatprep.subr.mxu0 0.0
    %2120 = vmatpush1.xpose.msra.mxu0 %v2093
    %2121 = vmatprep.subr.mxu0 0.0
    %2122 = vmatpush1.xpose.msra.mxu0 %v2091
    %2123 = vmatprep.subr.mxu0 0.0
    %2124 = vmatpush1.xpose.msra.mxu0 %v2089
    %2125 = vmatprep.subr.mxu0 0.0
    %2126 = vmatpush1.xpose.msra.mxu0 %v2087
    %2127 = vmatprep.subr.mxu0 0.0
    %2128 = vmatpush2.xpose.msra.mxu0 0.0
    %2129 = vmatprep.subr.mxu0 0.0
    %2130 = vmatpush2.xpose.msra.mxu0 0.0
    %2131 = vmatprep.subr.mxu0 0.0
    %2132 = vmatpush2.xpose.msra.mxu0 0.0
    %2133 = vmatprep.subr.mxu0 0.0
    %2134 = vmatpush2.xpose.msra.mxu0 0.0
    %2135 = vmatprep.subr.mxu0 0.0
    %2136 = vmatpush2.xpose.msra.mxu0 0.0
    %2137 = vmatprep.subr.mxu0 0.0
    %2138 = vmatpush2.xpose.msra.mxu0 0.0
    %2139 = vmatprep.subr.mxu0 0.0
    %2140 = vmatpush2.xpose.msra.mxu0 0.0
    %2141 = vmatprep.subr.mxu0 0.0
    %2142 = vmatpush2.xpose.msra.mxu0 0.0
    %2143 = vmatprep.subr.mxu0 0.0
    %2144 = vmatpush2.xpose.msra.mxu0 0.0
    %2145 = vmatprep.subr.mxu0 0.0
    %2146 = vmatpush2.xpose.msra.mxu0 0.0
    %2147 = vmatprep.subr.mxu0 0.0
    %2148 = vmatpush2.xpose.msra.mxu0 0.0
    %2149 = vmatprep.subr.mxu0 0.0
    %2150 = vmatpush2.xpose.msra.mxu0 0.0
    %2151 = vmatprep.subr.mxu0 0.0
    %2152 = vmatpush2.xpose.msra.mxu0 0.0
    %2153 = vmatprep.subr.mxu0 0.0
    %2154 = vmatpush2.xpose.msra.mxu0 0.0
    %2155 = vmatprep.subr.mxu0 0.0
    %2156 = vmatpush2.xpose.msra.mxu0 0.0
    %2157 = vmatprep.subr.mxu0 0.0
    %2158 = vmatpush2.xpose.msra.mxu0 0.0
    %2159 = vmatprep.mubr.f32.mxu0 0.0
    %2160 = vmatmul.mubr.f32.gmra.mxu0 %v2083
    %v2161 = vpop.f32.mrf.mxu0
    %v2162 = vadd.f32 %v598, %v2161
    %v2163 = vpop.f32.mrf.mxu0
    %2164 = vmatprep.mubr.f32.mxu0 0.0
    %2165 = vmatmul.mubr.f32.gmra.mxu0 %v2085
    %v2166 = vpop.f32.mrf.mxu0
    %v2167 = vadd.f32 %v599, %v2166
    %v2168 = vpop.f32.mrf.mxu0
    %2169 = vdwg.mxu0
    %v2170 = vsel %vm134, %v2162, -inf
    %2171 = vmax.xlane.f32.xlu0 %v2170
    %v2172 = vpop.xlane.xlu0 %2171
    %v2173 = vsel %vm134, %v2167, -inf
    %2174 = vmax.xlane.f32.xlu0 %v2173
    %v2175 = vpop.xlane.xlu0 %2174
    %v2176 = vsub.f32 %v2162, %v2172
    %v2177 = vsub.f32 %v2167, %v2175
    %v2178 = vmul.f32 %v2176, 1.442695
    %v2179 = vpow.pop %v2178
    %v2180 = vmul.f32 %v2177, 1.442695
    %v2181 = vpow.pop %v2180
    %v2182 = vsel %vm134, %v2179, 0.0
    %2183 = vadd.xlane.f32.xlu0 %v2182
    %v2184 = vpop.xlane.xlu0 %2183
    %v2185 = vsel %vm134, %v2181, 0.0
    %2186 = vadd.xlane.f32.xlu0 %v2185
    %v2187 = vpop.xlane.xlu0 %2186
    %v2188 = vrcp.pop %v2184
    %v2189 = vrcp.pop %v2187
    %2194 = vrot.lane.b32.xlu0 %v366, 64
    %v2195 = vpop.permute.xlu0 %2194
    %2196 = vrot.lane.b32.xlu0 %v372, 64
    %v2197 = vpop.permute.xlu0 %2196
    %2198 = vrot.lane.b32.xlu0 %v378, 64
    %v2199 = vpop.permute.xlu0 %2198
    %2200 = vrot.lane.b32.xlu0 %v384, 64
    %v2201 = vpop.permute.xlu0 %2200
    %v2207 = vsel %vm134, %v2179, 0
    %v2210 = vsel %vm134, %v2181, 0
    %2212 = vmatprep.subr.mxu0 0.0
    %2213 = vmatpush1.msra.mxu0 0.0
    %2214 = vmatprep.subr.mxu0 0.0
    %2215 = vmatpush1.msra.mxu0 0.0
    %2216 = vmatprep.subr.mxu0 0.0
    %2217 = vmatpush1.msra.mxu0 0.0
    %2218 = vmatprep.subr.mxu0 0.0
    %2219 = vmatpush1.msra.mxu0 0.0
    %2220 = vmatprep.subr.mxu0 0.0
    %2221 = vmatpush1.msra.mxu0 0.0
    %2222 = vmatprep.subr.mxu0 0.0
    %2223 = vmatpush1.msra.mxu0 0.0
    %2224 = vmatprep.subr.mxu0 0.0
    %2225 = vmatpush1.msra.mxu0 0.0
    %2226 = vmatprep.subr.mxu0 0.0
    %2227 = vmatpush1.msra.mxu0 0.0
    %2228 = vmatprep.subr.mxu0 0.0
    %2229 = vmatpush1.msra.mxu0 0.0
    %2230 = vmatprep.subr.mxu0 0.0
    %2231 = vmatpush1.msra.mxu0 0.0
    %2232 = vmatprep.subr.mxu0 0.0
    %2233 = vmatpush1.msra.mxu0 0.0
    %2234 = vmatprep.subr.mxu0 0.0
    %2235 = vmatpush1.msra.mxu0 0.0
    %2236 = vmatprep.subr.mxu0 0.0
    %2237 = vmatpush1.msra.mxu0 %v2201
    %2238 = vmatprep.subr.mxu0 0.0
    %2239 = vmatpush1.msra.mxu0 %v2199
    %2240 = vmatprep.subr.mxu0 0.0
    %2241 = vmatpush1.msra.mxu0 %v2197
    %2242 = vmatprep.subr.mxu0 0.0
    %2243 = vmatpush1.msra.mxu0 %v2195
    %2244 = vmatprep.subr.mxu0 0.0
    %2245 = vmatpush2.msra.mxu0 0.0
    %2246 = vmatprep.subr.mxu0 0.0
    %2247 = vmatpush2.msra.mxu0 0.0
    %2248 = vmatprep.subr.mxu0 0.0
    %2249 = vmatpush2.msra.mxu0 0.0
    %2250 = vmatprep.subr.mxu0 0.0
    %2251 = vmatpush2.msra.mxu0 0.0
    %2252 = vmatprep.subr.mxu0 0.0
    %2253 = vmatpush2.msra.mxu0 0.0
    %2254 = vmatprep.subr.mxu0 0.0
    %2255 = vmatpush2.msra.mxu0 0.0
    %2256 = vmatprep.subr.mxu0 0.0
    %2257 = vmatpush2.msra.mxu0 0.0
    %2258 = vmatprep.subr.mxu0 0.0
    %2259 = vmatpush2.msra.mxu0 0.0
    %2260 = vmatprep.subr.mxu0 0.0
    %2261 = vmatpush2.msra.mxu0 0.0
    %2262 = vmatprep.subr.mxu0 0.0
    %2263 = vmatpush2.msra.mxu0 0.0
    %2264 = vmatprep.subr.mxu0 0.0
    %2265 = vmatpush2.msra.mxu0 0.0
    %2266 = vmatprep.subr.mxu0 0.0
    %2267 = vmatpush2.msra.mxu0 0.0
    %2268 = vmatprep.subr.mxu0 0.0
    %2269 = vmatpush2.msra.mxu0 0.0
    %2270 = vmatprep.subr.mxu0 0.0
    %2271 = vmatpush2.msra.mxu0 0.0
    %2272 = vmatprep.subr.mxu0 0.0
    %2273 = vmatpush2.msra.mxu0 0.0
    %2274 = vmatprep.subr.mxu0 0.0
    %2275 = vmatpush2.msra.mxu0 0.0
    %2276 = vmatprep.mubr.f32.mxu0 0.0
    %2277 = vmatmul.mubr.f32.gmra.mxu0 %v2207
    %v2278 = vpop.f32.mrf.mxu0
    %v2279 = vadd.f32 0.0, %v2278
    %v2280 = vpop.f32.mrf.mxu0
    %2281 = vmatprep.mubr.f32.mxu0 0.0
    %2282 = vmatmul.mubr.f32.gmra.mxu0 %v2210
    %v2283 = vpop.f32.mrf.mxu0
    %v2284 = vadd.f32 0.0, %v2283
    %v2285 = vpop.f32.mrf.mxu0
    %2286 = vdwg.mxu0
    %v2287 = vmul.f32 %v2279, %v2188
    %v2288 = vmul.f32 %v2284, %v2189
    %v2289 = vadd.f32 %v2069, %v2287
    %v2290 = vadd.f32 %v2070, %v2288
    %v2291 = vadd.f32 %v56, %v2289
    %v2292 = vadd.f32 %v57, %v2290
    %v2293 = vadd.f32 %v2291, %v70
    %v2294 = vadd.f32 %v2292, %v70
    %v2295 = vsel %vm475, %v2293, 0.0
    %2296 = vadd.xlane.f32.xlu0 %v2295
    %v2297 = vpop.xlane.xlu0 %2296
    %v2298 = vsel %vm475, %v2294, 0.0
    %2299 = vadd.xlane.f32.xlu0 %v2298
    %v2300 = vpop.xlane.xlu0 %2299
    %v2301 = vmul.f32 %v2297, %v482
    %v2302 = vmul.f32 %v2300, %v482
    %v2303 = vsub.f32 %v2293, %v2301
    %v2304 = vsub.f32 %v2294, %v2302
    %v2305 = vmul.f32 %v2303, %v2303
    %v2306 = vmul.f32 %v2304, %v2304
    %v2307 = vsel %vm475, %v2305, 0.0
    %2308 = vadd.xlane.f32.xlu0 %v2307
    %v2309 = vpop.xlane.xlu0 %2308
    %v2310 = vsel %vm475, %v2306, 0.0
    %2311 = vadd.xlane.f32.xlu0 %v2310
    %v2312 = vpop.xlane.xlu0 %2311
    %v2313 = vmul.f32 %v2309, %v482
    %v2314 = vmul.f32 %v2312, %v482
    %v2315 = vadd.f32 %v2313, 1e-05
    %v2316 = vadd.f32 %v2314, 1e-05
    %v2317 = vrsqrt.pop %v2315
    %v2318 = vrsqrt.pop %v2316
    %v2319 = vmul.f32 %v2303, %v2317
    %v2320 = vmul.f32 %v2304, %v2318
    %v2321 = vmul.f32 %v2319, %v66
    %v2322 = vmul.f32 %v2320, %v66
    %v2323 = vadd.f32 %v2321, %v67
    %v2324 = vadd.f32 %v2322, %v67
    %v2326 = vlaneseq
    %v2327 = vshrl.u32 %v2326, 7
    %v2328 = vsub.s32 0, %v2327
    %v2329 = vrot.slane %v72, %v2328
    %v2330 = vlaneseq
    %v2331 = vshrl.u32 %v2330, 7
    %v2332 = vsub.s32 1, %v2331
    %v2333 = vrot.slane %v72, %v2332
    %v2337 = vsel %vm475, %v2323, 0
    %v2340 = vsel %vm475, %v2324, 0
    %2342 = vmatprep.subr.mxu0 0.0
    %2343 = vmatpush1.msra.mxu0 0.0
    %2344 = vmatprep.subr.mxu0 0.0
    %2345 = vmatpush1.msra.mxu0 0.0
    %2346 = vmatprep.subr.mxu0 0.0
    %2347 = vmatpush1.msra.mxu0 0.0
    %2348 = vmatprep.subr.mxu0 0.0
    %2349 = vmatpush1.msra.mxu0 0.0
    %2350 = vmatprep.subr.mxu0 0.0
    %2351 = vmatpush1.msra.mxu0 0.0
    %2352 = vmatprep.subr.mxu0 0.0
    %2353 = vmatpush1.msra.mxu0 0.0
    %2354 = vmatprep.subr.mxu0 0.0
    %2355 = vmatpush1.msra.mxu0 0.0
    %2356 = vmatprep.subr.mxu0 0.0
    %2357 = vmatpush1.msra.mxu0 0.0
    %2358 = vmatprep.subr.mxu0 %v109
    %2359 = vmatpush1.msra.mxu0 %v108
    %2360 = vmatprep.subr.mxu0 %v107
    %2361 = vmatpush1.msra.mxu0 %v106
    %2362 = vmatprep.subr.mxu0 %v105
    %2363 = vmatpush1.msra.mxu0 %v104
    %2364 = vmatprep.subr.mxu0 %v103
    %2365 = vmatpush1.msra.mxu0 %v102
    %2366 = vmatprep.subr.mxu0 %v101
    %2367 = vmatpush1.msra.mxu0 %v100
    %2368 = vmatprep.subr.mxu0 %v99
    %2369 = vmatpush1.msra.mxu0 %v98
    %2370 = vmatprep.subr.mxu0 %v97
    %2371 = vmatpush1.msra.mxu0 %v96
    %2372 = vmatprep.subr.mxu0 %v95
    %2373 = vmatpush1.msra.mxu0 %v94
    %2374 = vmatprep.subr.mxu0 0.0
    %2375 = vmatpush2.msra.mxu0 0.0
    %2376 = vmatprep.subr.mxu0 0.0
    %2377 = vmatpush2.msra.mxu0 0.0
    %2378 = vmatprep.subr.mxu0 0.0
    %2379 = vmatpush2.msra.mxu0 0.0
    %2380 = vmatprep.subr.mxu0 0.0
    %2381 = vmatpush2.msra.mxu0 0.0
    %2382 = vmatprep.subr.mxu0 0.0
    %2383 = vmatpush2.msra.mxu0 0.0
    %2384 = vmatprep.subr.mxu0 0.0
    %2385 = vmatpush2.msra.mxu0 0.0
    %2386 = vmatprep.subr.mxu0 0.0
    %2387 = vmatpush2.msra.mxu0 0.0
    %2388 = vmatprep.subr.mxu0 0.0
    %2389 = vmatpush2.msra.mxu0 0.0
    %2390 = vmatprep.subr.mxu0 0.0
    %2391 = vmatpush2.msra.mxu0 0.0
    %2392 = vmatprep.subr.mxu0 0.0
    %2393 = vmatpush2.msra.mxu0 0.0
    %2394 = vmatprep.subr.mxu0 0.0
    %2395 = vmatpush2.msra.mxu0 0.0
    %2396 = vmatprep.subr.mxu0 0.0
    %2397 = vmatpush2.msra.mxu0 0.0
    %2398 = vmatprep.subr.mxu0 0.0
    %2399 = vmatpush2.msra.mxu0 0.0
    %2400 = vmatprep.subr.mxu0 0.0
    %2401 = vmatpush2.msra.mxu0 0.0
    %2402 = vmatprep.subr.mxu0 0.0
    %2403 = vmatpush2.msra.mxu0 0.0
    %2404 = vmatprep.subr.mxu0 0.0
    %2405 = vmatpush2.msra.mxu0 0.0
    %2406 = vmatprep.mubr.f32.mxu0 0.0
    %2407 = vmatmul.mubr.f32.gmra.mxu0 %v2337
    %v2408 = vpop.f32.mrf.mxu0
    %v2409 = vadd.f32 %v2329, %v2408
    %v2410 = vpop.f32.mrf.mxu0
    %v2411 = vadd.f32 %v2333, %v2410
    %2412 = vmatprep.mubr.f32.mxu0 0.0
    %2413 = vmatmul.mubr.f32.gmra.mxu0 %v2340
    %v2414 = vpop.f32.mrf.mxu0
    %v2415 = vadd.f32 %v2329, %v2414
    %v2416 = vpop.f32.mrf.mxu0
    %v2417 = vadd.f32 %v2333, %v2416
    %2418 = vdwg.mxu0
    %v2419 = vmul.f32 %v2409, 0.5
    %v2420 = vmul.f32 %v2411, 0.5
    %v2421 = vmul.f32 %v2415, 0.5
    %v2422 = vmul.f32 %v2417, 0.5
    %v2423 = vmul.f32 %v2409, 0.70710677
    %v2424 = vmul.f32 %v2411, 0.70710677
    %v2425 = vmul.f32 %v2415, 0.70710677
    %v2426 = vmul.f32 %v2417, 0.70710677
    %v2427 = vand.u32 2147483647, %v2423
    %v2428 = vand.u32 2147483647, %v2424
    %v2429 = vand.u32 2147483647, %v2425
    %v2430 = vand.u32 2147483647, %v2426
    %v2431 = vmul.f32 %v2427, 0.3275911
    %v2432 = vmul.f32 %v2428, 0.3275911
    %v2433 = vmul.f32 %v2429, 0.3275911
    %v2434 = vmul.f32 %v2430, 0.3275911
    %v2435 = vadd.f32 %v2431, 1.0
    %v2436 = vadd.f32 %v2432, 1.0
    %v2437 = vadd.f32 %v2433, 1.0
    %v2438 = vadd.f32 %v2434, 1.0
    %v2439 = vrcp.pop %v2435
    %v2440 = vmul.f32 1.0, %v2439
    %v2441 = vrcp.pop %v2436
    %v2442 = vmul.f32 1.0, %v2441
    %v2443 = vrcp.pop %v2437
    %v2444 = vmul.f32 1.0, %v2443
    %v2445 = vrcp.pop %v2438
    %v2446 = vmul.f32 1.0, %v2445
    %v2447 = vmul.f32 %v2440, 1.0614054
    %v2448 = vmul.f32 %v2442, 1.0614054
    %v2449 = vmul.f32 %v2444, 1.0614054
    %v2450 = vmul.f32 %v2446, 1.0614054
    %v2451 = vadd.f32 %v2447, -1.4531521
    %v2452 = vadd.f32 %v2448, -1.4531521
    %v2453 = vadd.f32 %v2449, -1.4531521
    %v2454 = vadd.f32 %v2450, -1.4531521
    %v2455 = vmul.f32 %v2451, %v2440
    %v2456 = vmul.f32 %v2452, %v2442
    %v2457 = vmul.f32 %v2453, %v2444
    %v2458 = vmul.f32 %v2454, %v2446
    %v2459 = vadd.f32 %v2455, 1.4214138
    %v2460 = vadd.f32 %v2456, 1.4214138
    %v2461 = vadd.f32 %v2457, 1.4214138
    %v2462 = vadd.f32 %v2458, 1.4214138
    %v2463 = vmul.f32 %v2459, %v2440
    %v2464 = vmul.f32 %v2460, %v2442
    %v2465 = vmul.f32 %v2461, %v2444
    %v2466 = vmul.f32 %v2462, %v2446
    %v2467 = vadd.f32 %v2463, -0.28449672
    %v2468 = vadd.f32 %v2464, -0.28449672
    %v2469 = vadd.f32 %v2465, -0.28449672
    %v2470 = vadd.f32 %v2466, -0.28449672
    %v2471 = vmul.f32 %v2467, %v2440
    %v2472 = vmul.f32 %v2468, %v2442
    %v2473 = vmul.f32 %v2469, %v2444
    %v2474 = vmul.f32 %v2470, %v2446
    %v2475 = vadd.f32 %v2471, 0.2548296
    %v2476 = vadd.f32 %v2472, 0.2548296
    %v2477 = vadd.f32 %v2473, 0.2548296
    %v2478 = vadd.f32 %v2474, 0.2548296
    %v2479 = vmul.f32 %v2475, %v2440
    %v2480 = vmul.f32 %v2476, %v2442
    %v2481 = vmul.f32 %v2477, %v2444
    %v2482 = vmul.f32 %v2478, %v2446
    %v2483 = vsub.f32 0.0, %v2427
    %v2484 = vsub.f32 0.0, %v2428
    %v2485 = vsub.f32 0.0, %v2429
    %v2486 = vsub.f32 0.0, %v2430
    %v2487 = vmul.f32 %v2483, %v2427
    %v2488 = vmul.f32 %v2484, %v2428
    %v2489 = vmul.f32 %v2485, %v2429
    %v2490 = vmul.f32 %v2486, %v2430
    %v2491 = vmul.f32 %v2487, 1.442695
    %v2492 = vpow.pop %v2491
    %v2493 = vmul.f32 %v2488, 1.442695
    %v2494 = vpow.pop %v2493
    %v2495 = vmul.f32 %v2489, 1.442695
    %v2496 = vpow.pop %v2495
    %v2497 = vmul.f32 %v2490, 1.442695
    %v2498 = vpow.pop %v2497
    %v2499 = vmul.f32 %v2479, %v2492
    %v2500 = vmul.f32 %v2480, %v2494
    %v2501 = vmul.f32 %v2481, %v2496
    %v2502 = vmul.f32 %v2482, %v2498
    %v2503 = vsub.f32 1.0, %v2499
    %v2504 = vsub.f32 1.0, %v2500
    %v2505 = vsub.f32 1.0, %v2501
    %v2506 = vsub.f32 1.0, %v2502
    %vm2507 = vcmp.ge.f32.partialorder %v2423, 0.0
    %vm2508 = vcmp.ge.f32.partialorder %v2424, 0.0
    %vm2509 = vcmp.ge.f32.partialorder %v2425, 0.0
    %vm2510 = vcmp.ge.f32.partialorder %v2426, 0.0
    %v2511 = vsub.f32 0.0, %v2503
    %v2512 = vsub.f32 0.0, %v2504
    %v2513 = vsub.f32 0.0, %v2505
    %v2514 = vsub.f32 0.0, %v2506
    %v2515 = vsel %vm2507, %v2503, %v2511
    %v2516 = vsel %vm2508, %v2504, %v2512
    %v2517 = vsel %vm2509, %v2505, %v2513
    %v2518 = vsel %vm2510, %v2506, %v2514
    %v2519 = vadd.f32 %v2515, 1.0
    %v2520 = vadd.f32 %v2516, 1.0
    %v2521 = vadd.f32 %v2517, 1.0
    %v2522 = vadd.f32 %v2518, 1.0
    %v2523 = vmul.f32 %v2419, %v2519
    %v2524 = vmul.f32 %v2420, %v2520
    %v2525 = vmul.f32 %v2421, %v2521
    %v2526 = vmul.f32 %v2422, %v2522
    %2527 = vmatprep.subr.mxu0 0.0
    %2528 = vmatpush1.xpose.msra.mxu0 0.0
    %2529 = vmatprep.subr.mxu0 0.0
    %2530 = vmatpush1.xpose.msra.mxu0 0.0
    %2531 = vmatprep.subr.mxu0 0.0
    %2532 = vmatpush1.xpose.msra.mxu0 0.0
    %2533 = vmatprep.subr.mxu0 0.0
    %2534 = vmatpush1.xpose.msra.mxu0 0.0
    %2535 = vmatprep.subr.mxu0 0.0
    %2536 = vmatpush1.xpose.msra.mxu0 0.0
    %2537 = vmatprep.subr.mxu0 0.0
    %2538 = vmatpush1.xpose.msra.mxu0 0.0
    %2539 = vmatprep.subr.mxu0 0.0
    %2540 = vmatpush1.xpose.msra.mxu0 0.0
    %2541 = vmatprep.subr.mxu0 0.0
    %2542 = vmatpush1.xpose.msra.mxu0 0.0
    %2543 = vmatprep.subr.mxu0 %v125
    %2544 = vmatpush1.xpose.msra.mxu0 %v124
    %2545 = vmatprep.subr.mxu0 %v123
    %2546 = vmatpush1.xpose.msra.mxu0 %v122
    %2547 = vmatprep.subr.mxu0 %v121
    %2548 = vmatpush1.xpose.msra.mxu0 %v120
    %2549 = vmatprep.subr.mxu0 %v119
    %2550 = vmatpush1.xpose.msra.mxu0 %v118
    %2551 = vmatprep.subr.mxu0 %v117
    %2552 = vmatpush1.xpose.msra.mxu0 %v116
    %2553 = vmatprep.subr.mxu0 %v115
    %2554 = vmatpush1.xpose.msra.mxu0 %v114
    %2555 = vmatprep.subr.mxu0 %v113
    %2556 = vmatpush1.xpose.msra.mxu0 %v112
    %2557 = vmatprep.subr.mxu0 %v111
    %2558 = vmatpush1.xpose.msra.mxu0 %v110
    %2559 = vmatprep.subr.mxu0 0.0
    %2560 = vmatpush2.xpose.msra.mxu0 0.0
    %2561 = vmatprep.subr.mxu0 0.0
    %2562 = vmatpush2.xpose.msra.mxu0 0.0
    %2563 = vmatprep.subr.mxu0 0.0
    %2564 = vmatpush2.xpose.msra.mxu0 0.0
    %2565 = vmatprep.subr.mxu0 0.0
    %2566 = vmatpush2.xpose.msra.mxu0 0.0
    %2567 = vmatprep.subr.mxu0 0.0
    %2568 = vmatpush2.xpose.msra.mxu0 0.0
    %2569 = vmatprep.subr.mxu0 0.0
    %2570 = vmatpush2.xpose.msra.mxu0 0.0
    %2571 = vmatprep.subr.mxu0 0.0
    %2572 = vmatpush2.xpose.msra.mxu0 0.0
    %2573 = vmatprep.subr.mxu0 0.0
    %2574 = vmatpush2.xpose.msra.mxu0 0.0
    %2575 = vmatprep.subr.mxu0 0.0
    %2576 = vmatpush2.xpose.msra.mxu0 0.0
    %2577 = vmatprep.subr.mxu0 0.0
    %2578 = vmatpush2.xpose.msra.mxu0 0.0
    %2579 = vmatprep.subr.mxu0 0.0
    %2580 = vmatpush2.xpose.msra.mxu0 0.0
    %2581 = vmatprep.subr.mxu0 0.0
    %2582 = vmatpush2.xpose.msra.mxu0 0.0
    %2583 = vmatprep.subr.mxu0 0.0
    %2584 = vmatpush2.xpose.msra.mxu0 0.0
    %2585 = vmatprep.subr.mxu0 0.0
    %2586 = vmatpush2.xpose.msra.mxu0 0.0
    %2587 = vmatprep.subr.mxu0 0.0
    %2588 = vmatpush2.xpose.msra.mxu0 0.0
    %2589 = vmatprep.subr.mxu0 0.0
    %2590 = vmatpush2.xpose.msra.mxu0 0.0
    %2591 = vmatprep.mubr.f32.mxu0 %v2524
    %2592 = vmatmul.mubr.f32.gmra.mxu0 %v2523
    %v2593 = vpop.f32.mrf.mxu0
    %v2594 = vadd.f32 %v73, %v2593
    %v2595 = vpop.f32.mrf.mxu0
    %2596 = vmatprep.mubr.f32.mxu0 %v2526
    %2597 = vmatmul.mubr.f32.gmra.mxu0 %v2525
    %v2598 = vpop.f32.mrf.mxu0
    %v2599 = vadd.f32 %v73, %v2598
    %v2600 = vpop.f32.mrf.mxu0
    %2601 = vdwg.mxu0
    %v2602 = vadd.f32 %v2293, %v2594
    %v2603 = vadd.f32 %v2294, %v2599
    %2604 = vst.msk [vmem:[#allocation8] sm:$0xff] %vm475, %v2602
    %2605 = vst.msk [vmem:[#allocation8 + $0x8] sm:$0xff] %vm475, %v2603
    // Predicated region
    $region26: #{tpu_custom_call.1} parent=1 // pred_check
      _
    $region27: #{tpu_custom_call.1} parent=1 // pred_check_branch
      %2607 = sbr.rel (0) target = $region29
    $region28: #{tpu_custom_call.1} parent=1 // pred_region
      %s2609 = ssub.s32 256, 256
      %2610 = vsyncadd [#allocation4], %s2609
      %s2611 = sshll.u32 [#allocation8], 4
      %s2612 = int_to_ptr.vmem [resolvable:$true] %s2611
      %2617 = dma.vmem_to_hbm [thread:$0]  %s2612, 256, %s3, [#allocation4], 128, 128, 8
    $region29: #{tpu_custom_call.1} parent=1 // pred_fallthru
      _
    // Predicated region
    $region30: #{tpu_custom_call.1} parent=1 // pred_check
      _
    $region31: #{tpu_custom_call.1} parent=1 // pred_check_branch
      %2619 = sbr.rel (0) target = $region33
    $region32: #{tpu_custom_call.1} parent=1 // pred_region
      %2620 = dma.done [#allocation4], 256
    $region33: #{tpu_custom_call.1} parent=1 // pred_fallthru
      _
    %2621 = vsyncpa [#allocation3], 1
    %2622 = vsyncpa [#allocation6], 1
    %2623 = vsyncpa [#allocation4], 1

</llo_original>
